<compile_context>
chip_gen: v5e
topology: v5e:2x2
jax: 0.10.0
libtpu: 0.0.40
codegen_flags: <defaults>
</compile_context>

<pallas_src>
import functools

import jax
import jax.numpy as jnp
from jax import lax
from jax.experimental import pallas as pl
from jax.experimental.pallas import tpu as pltpu

C = 64          # ChannelAttention(64)
CH = C // 16    # hidden channels of the shared MLP
KS = 7          # SpatialAttention kernel size
PAD = 3
LANE = 128


# ---------------------------------------------------------------------------
# Fused kernel: one grid step per Bt batch elements.
# ---------------------------------------------------------------------------
def _sga_kernel(w_sa_ref, clean_ref, noise_ref, w1_ref, w2_ref, out_ref,
                *, H, W, HW, HWpad, Bt):
    # w_sa_ref : (2*KS*KS,)        SMEM  flat conv taps, OIHW order (c, dy, dx)
    # clean_ref: (Bt, C, HWpad)    VMEM  lane-dense
    # noise_ref: (Bt, C, HWpad)    VMEM  lane-dense (read once from HBM)
    # w1_ref   : (CH, C)           VMEM
    # w2_ref   : (C, CH)           VMEM
    # out_ref  : (Bt, C, HWpad)    VMEM  lane-dense

    # ---- hoist all 98 conv taps out of the loops (single SMEM read pass) ----
    taps = [w_sa_ref[i] for i in range(2 * KS * KS)]

    # ---- precompute conv validity masks in output coordinates (f32) --------
    lane = lax.broadcasted_iota(jnp.int32, (1, HWpad), 1)
    col = lane % W
    colmask = {}
    rowmask = {}
    for d in range(-PAD, PAD + 1):
        if d != 0:
            lo_c, hi_c = max(0, -d), min(W - 1, W - 1 - d)
            colmask[d] = ((col >= lo_c) & (col <= hi_c)).astype(jnp.float32)
            lo_r, hi_r = max(0, -d), min(H, H - d)
            rowmask[d] = ((lane >= lo_r * W) & (lane < hi_r * W)).astype(jnp.float32)

    # ---- channel attention: pools + shared MLP, batched over Bt and both
    #      (avg, max) branches -> exactly 2 small MXU dispatches per step -----
    pooled_cols = []
    if HW == HWpad:
        for b in range(Bt):
            pooled_cols.append(jnp.mean(clean_ref[b], axis=1, keepdims=True))   # (C,1)
        for b in range(Bt):
            pooled_cols.append(jnp.max(clean_ref[b], axis=1, keepdims=True))    # (C,1)
    else:
        # padded lanes are zero: fix the mean divisor and mask the max with -inf
        lane_valid = lane < HW
        inv_hw = jnp.float32(1.0 / HW)
        for b in range(Bt):
            pooled_cols.append(jnp.sum(clean_ref[b], axis=1, keepdims=True) * inv_hw)
        for b in range(Bt):
            pooled_cols.append(jnp.max(jnp.where(lane_valid, clean_ref[b], -jnp.inf),
                                       axis=1, keepdims=True))
    pooled = jnp.concatenate(pooled_cols, axis=1)                # (C, 2*Bt)
    h = jnp.maximum(
        jnp.dot(w1_ref[...], pooled, preferred_element_type=jnp.float32), 0.0)  # (CH, 2*Bt)
    o = jnp.dot(w2_ref[...], h, preferred_element_type=jnp.float32)             # (C, 2*Bt)
    ca = jax.nn.sigmoid(o[:, :Bt] + o[:, Bt:2 * Bt])             # (C, Bt)

    # ---- channel gate + per-image spatial mean/max maps (stay in vregs) ----
    avg_rows = []
    max_rows = []
    for b in range(Bt):
        ca_x = ca[:, b:b + 1] * noise_ref[b]                     # (C, HWpad)
        avg_rows.append(jnp.mean(ca_x, axis=0, keepdims=True))   # (1, HWpad)
        max_rows.append(jnp.max(ca_x, axis=0, keepdims=True))    # (1, HWpad)
    A = jnp.concatenate(avg_rows, axis=0)                        # (Bt, HWpad)
    M = jnp.concatenate(max_rows, axis=0)                        # (Bt, HWpad)

    # ---- 7x7 conv (2 -> 1 channel, pad=3, no bias) in flat layout ----------
    # output[i] = sum_{c,dy,dx} tap * map_c[i + (dy-PAD)*W + (dx-PAD)], gated
    # by column/row validity masks.  Column rolls are hoisted and reused over
    # the 7 row taps; rolls go to the XLU so they overlap the VPU FMAs.
    acc = jnp.zeros((Bt, HWpad), jnp.float32)
    for d_c in range(-PAD, PAD + 1):
        sc = (-d_c) % HWpad
        ta = pltpu.roll(A, sc, 1) if sc else A
        tm = pltpu.roll(M, sc, 1) if sc else M
        if d_c != 0:
            ta = ta * colmask[d_c]
            tm = tm * colmask[d_c]
        for d_r in range(-PAD, PAD + 1):
            sr = (-d_r * W) % HWpad
            ua = pltpu.roll(ta, sr, 1) if sr else ta
            um = pltpu.roll(tm, sr, 1) if sr else tm
            dy, dx = d_r + PAD, d_c + PAD
            term = taps[dy * KS + dx] * ua + taps[KS * KS + dy * KS + dx] * um
            if d_r != 0:
                term = term * rowmask[d_r]
            acc = acc + term

    sa = jax.nn.sigmoid(acc)                                     # (Bt, HWpad), exp on EUP

    # ---- final gate: full-width lane-dense broadcast multiply + stores -----
    for b in range(Bt):
        out_ref[b] = sa[b:b + 1, :] * noise_ref[b]


# ---------------------------------------------------------------------------
# Wrapper
# ---------------------------------------------------------------------------
def sga_forward(noise, clean, w1, w2, w_sa):
    """noise, clean: (N, C, H, W) f32. Returns sa_x: (N, C, H, W) f32."""
    N, Cc, H, W = noise.shape
    assert Cc == C
    HW = H * W
    HWpad = ((HW + LANE - 1) // LANE) * LANE   # keep bulk loads/stores unmasked

    clean_r = clean.reshape(N, C, HW)
    noise_r = noise.reshape(N, C, HW)
    if HWpad != HW:
        pad = ((0, 0), (0, 0), (0, HWpad - HW))
        clean_r = jnp.pad(clean_r, pad)
        noise_r = jnp.pad(noise_r, pad)
    w_flat = w_sa.reshape(-1).astype(jnp.float32)   # (2*KS*KS,) taps: c*49 + dy*7 + dx

    # Generation-aware VMEM budget; pick Bt = largest divisor of N (<= 8) whose
    # double-buffered clean/noise/out blocks fit comfortably.
    try:
        vmem_cap = int(pltpu.get_tpu_info().vmem_capacity_bytes)
    except Exception:
        vmem_cap = 64 * 1024 * 1024
    budget = vmem_cap // 3
    per_image = 3 * C * HWpad * 4                  # clean + noise + out blocks (f32)
    Bt = 1
    for cand in range(min(N, 8), 0, -1):
        if N % cand == 0 and 2 * cand * per_image + (2 << 20) <= budget:
            Bt = cand
            break
    # TODO(synk): for very large H*W (whole-image blocks no longer fit VMEM,
    # esp. v7x's 64 MiB) tile the HW axis with an 'arbitrary' grid dim, pool
    # accumulation in scratch and PAD-row halo overlap for the conv tiles.

    vmem_limit = int(min(int(vmem_cap * 0.9),
                         max(2 * Bt * per_image + (4 << 20), 32 * 1024 * 1024)))

    kernel = functools.partial(_sga_kernel, H=H, W=W, HW=HW, HWpad=HWpad, Bt=Bt)

    out = pl.pallas_call(
        kernel,
        out_shape=jax.ShapeDtypeStruct((N, C, HWpad), jnp.float32),
        grid=(N // Bt,),
        in_specs=[
            pl.BlockSpec(memory_space=pltpu.MemorySpace.SMEM),       # conv taps (scalars)
            pl.BlockSpec((Bt, C, HWpad), lambda g: (g, 0, 0)),       # clean
            pl.BlockSpec((Bt, C, HWpad), lambda g: (g, 0, 0)),       # noise (read once)
            pl.BlockSpec((CH, C), lambda g: (0, 0)),                 # MLP w1
            pl.BlockSpec((C, CH), lambda g: (0, 0)),                 # MLP w2
        ],
        out_specs=pl.BlockSpec((Bt, C, HWpad), lambda g: (g, 0, 0)),
        compiler_params=pltpu.CompilerParams(
            dimension_semantics=("parallel",),
            vmem_limit_bytes=vmem_limit),
    )(w_flat, clean_r, noise_r, w1, w2)

    if HWpad != HW:
        out = out[:, :, :HW]
    return out.reshape(N, C, H, W)


# ---------------------------------------------------------------------------
# Pure-JAX reference (mirrors the PyTorch module)
# ---------------------------------------------------------------------------
def sga_ref(noise, clean, w1, w2, w_sa):
    avg = clean.mean(axis=(2, 3))                         # (N, C)
    mx = clean.max(axis=(2, 3))                           # (N, C)

    def mlp(v):
        h = jnp.maximum(v @ w1.T, 0.0)                    # (N, CH)
        return h @ w2.T                                   # (N, C)

    ca = jax.nn.sigmoid(mlp(avg) + mlp(mx))[:, :, None, None]
    ca_x = ca * noise
    avgm = ca_x.mean(axis=1, keepdims=True)
    maxm = ca_x.max(axis=1, keepdims=True)
    sm = jnp.concatenate([avgm, maxm], axis=1)            # (N, 2, H, W)
    conv = lax.conv_general_dilated(
        sm, w_sa, window_strides=(1, 1),
        padding=((PAD, PAD), (PAD, PAD)),
        dimension_numbers=("NCHW", "OIHW", "NCHW"))       # (N, 1, H, W)
    sa = jax.nn.sigmoid(conv)
    return sa * noise


if __name__ == "__main__":
    N, H, W = 2, 16, 16
    key = jax.random.PRNGKey(0)
    k_noise, k_clean, k_w1, k_w2, k_sa = jax.random.split(key, 5)

    noise = jax.random.normal(k_noise, (N, C, H, W), jnp.float32)
    clean = jax.random.normal(k_clean, (N, C, H, W), jnp.float32)

    # deterministic synthetic parameters (PyTorch shapes: (4,64,1,1), (64,4,1,1), (1,2,7,7))
    w1 = 0.1 * jax.random.normal(k_w1, (CH, C), jnp.float32)          # Conv2d(64,4,1) weight, squeezed
    w2 = 0.1 * jax.random.normal(k_w2, (C, CH), jnp.float32)          # Conv2d(4,64,1) weight, squeezed
    w_sa = 0.1 * jax.random.normal(k_sa, (1, 2, KS, KS), jnp.float32)  # Conv2d(2,1,7) weight

    out = jax.block_until_ready(sga_forward(noise, clean, w1, w2, w_sa))
    ref = jax.block_until_ready(sga_ref(noise, clean, w1, w2, w_sa))

    if not jnp.allclose(out, ref, atol=1e-4, rtol=1e-4):
        raise AssertionError("Pallas SGA output mismatch vs JAX reference")
    print("KERNEL_OK")
</pallas_src>

<mosaic_0001>
module attributes {stable_mosaic.version = 11 : i64} {
  func.func @_sga_kernel(%arg0: i32, %arg1: memref<98xf32, #tpu.memory_space<smem>>, %arg2: memref<2x64x256xf32, #tpu.memory_space<vmem>>, %arg3: memref<2x64x256xf32, #tpu.memory_space<vmem>>, %arg4: memref<4x64xf32, #tpu.memory_space<vmem>>, %arg5: memref<64x4xf32, #tpu.memory_space<vmem>>, %arg6: memref<2x64x256xf32, #tpu.memory_space<vmem>>) attributes {dimension_semantics = [#tpu.dimension_semantics<parallel>], iteration_bounds = array<i64: 1>, scalar_prefetch = 0 : i64, scratch_operands = 0 : i64, tpu.core_type = #tpu.core_type<tc>, window_params = [{transform_indices = @transform_0, window_bounds = array<i64: 98>}, {transform_indices = @transform_1, window_bounds = array<i64: 2, 64, 256>}, {transform_indices = @transform_2, window_bounds = array<i64: 2, 64, 256>}, {pipeline_mode = #tpu.pipeline_mode<synchronous>, transform_indices = @transform_3, window_bounds = array<i64: 4, 64>}, {pipeline_mode = #tpu.pipeline_mode<synchronous>, transform_indices = @transform_4, window_bounds = array<i64: 64, 4>}, {transform_indices = @transform_5, window_bounds = array<i64: 2, 64, 256>}]} {
    %c0 = arith.constant 0 : index
    %0 = memref.load %arg1[%c0] : memref<98xf32, #tpu.memory_space<smem>>
    %c1 = arith.constant 1 : index
    %1 = memref.load %arg1[%c1] : memref<98xf32, #tpu.memory_space<smem>>
    %c2 = arith.constant 2 : index
    %2 = memref.load %arg1[%c2] : memref<98xf32, #tpu.memory_space<smem>>
    %c3 = arith.constant 3 : index
    %3 = memref.load %arg1[%c3] : memref<98xf32, #tpu.memory_space<smem>>
    %c4 = arith.constant 4 : index
    %4 = memref.load %arg1[%c4] : memref<98xf32, #tpu.memory_space<smem>>
    %c5 = arith.constant 5 : index
    %5 = memref.load %arg1[%c5] : memref<98xf32, #tpu.memory_space<smem>>
    %c6 = arith.constant 6 : index
    %6 = memref.load %arg1[%c6] : memref<98xf32, #tpu.memory_space<smem>>
    %c7 = arith.constant 7 : index
    %7 = memref.load %arg1[%c7] : memref<98xf32, #tpu.memory_space<smem>>
    %c8 = arith.constant 8 : index
    %8 = memref.load %arg1[%c8] : memref<98xf32, #tpu.memory_space<smem>>
    %c9 = arith.constant 9 : index
    %9 = memref.load %arg1[%c9] : memref<98xf32, #tpu.memory_space<smem>>
    %c10 = arith.constant 10 : index
    %10 = memref.load %arg1[%c10] : memref<98xf32, #tpu.memory_space<smem>>
    %c11 = arith.constant 11 : index
    %11 = memref.load %arg1[%c11] : memref<98xf32, #tpu.memory_space<smem>>
    %c12 = arith.constant 12 : index
    %12 = memref.load %arg1[%c12] : memref<98xf32, #tpu.memory_space<smem>>
    %c13 = arith.constant 13 : index
    %13 = memref.load %arg1[%c13] : memref<98xf32, #tpu.memory_space<smem>>
    %c14 = arith.constant 14 : index
    %14 = memref.load %arg1[%c14] : memref<98xf32, #tpu.memory_space<smem>>
    %c15 = arith.constant 15 : index
    %15 = memref.load %arg1[%c15] : memref<98xf32, #tpu.memory_space<smem>>
    %c16 = arith.constant 16 : index
    %16 = memref.load %arg1[%c16] : memref<98xf32, #tpu.memory_space<smem>>
    %c17 = arith.constant 17 : index
    %17 = memref.load %arg1[%c17] : memref<98xf32, #tpu.memory_space<smem>>
    %c18 = arith.constant 18 : index
    %18 = memref.load %arg1[%c18] : memref<98xf32, #tpu.memory_space<smem>>
    %c19 = arith.constant 19 : index
    %19 = memref.load %arg1[%c19] : memref<98xf32, #tpu.memory_space<smem>>
    %c20 = arith.constant 20 : index
    %20 = memref.load %arg1[%c20] : memref<98xf32, #tpu.memory_space<smem>>
    %c21 = arith.constant 21 : index
    %21 = memref.load %arg1[%c21] : memref<98xf32, #tpu.memory_space<smem>>
    %c22 = arith.constant 22 : index
    %22 = memref.load %arg1[%c22] : memref<98xf32, #tpu.memory_space<smem>>
    %c23 = arith.constant 23 : index
    %23 = memref.load %arg1[%c23] : memref<98xf32, #tpu.memory_space<smem>>
    %c24 = arith.constant 24 : index
    %24 = memref.load %arg1[%c24] : memref<98xf32, #tpu.memory_space<smem>>
    %c25 = arith.constant 25 : index
    %25 = memref.load %arg1[%c25] : memref<98xf32, #tpu.memory_space<smem>>
    %c26 = arith.constant 26 : index
    %26 = memref.load %arg1[%c26] : memref<98xf32, #tpu.memory_space<smem>>
    %c27 = arith.constant 27 : index
    %27 = memref.load %arg1[%c27] : memref<98xf32, #tpu.memory_space<smem>>
    %c28 = arith.constant 28 : index
    %28 = memref.load %arg1[%c28] : memref<98xf32, #tpu.memory_space<smem>>
    %c29 = arith.constant 29 : index
    %29 = memref.load %arg1[%c29] : memref<98xf32, #tpu.memory_space<smem>>
    %c30 = arith.constant 30 : index
    %30 = memref.load %arg1[%c30] : memref<98xf32, #tpu.memory_space<smem>>
    %c31 = arith.constant 31 : index
    %31 = memref.load %arg1[%c31] : memref<98xf32, #tpu.memory_space<smem>>
    %c32 = arith.constant 32 : index
    %32 = memref.load %arg1[%c32] : memref<98xf32, #tpu.memory_space<smem>>
    %c33 = arith.constant 33 : index
    %33 = memref.load %arg1[%c33] : memref<98xf32, #tpu.memory_space<smem>>
    %c34 = arith.constant 34 : index
    %34 = memref.load %arg1[%c34] : memref<98xf32, #tpu.memory_space<smem>>
    %c35 = arith.constant 35 : index
    %35 = memref.load %arg1[%c35] : memref<98xf32, #tpu.memory_space<smem>>
    %c36 = arith.constant 36 : index
    %36 = memref.load %arg1[%c36] : memref<98xf32, #tpu.memory_space<smem>>
    %c37 = arith.constant 37 : index
    %37 = memref.load %arg1[%c37] : memref<98xf32, #tpu.memory_space<smem>>
    %c38 = arith.constant 38 : index
    %38 = memref.load %arg1[%c38] : memref<98xf32, #tpu.memory_space<smem>>
    %c39 = arith.constant 39 : index
    %39 = memref.load %arg1[%c39] : memref<98xf32, #tpu.memory_space<smem>>
    %c40 = arith.constant 40 : index
    %40 = memref.load %arg1[%c40] : memref<98xf32, #tpu.memory_space<smem>>
    %c41 = arith.constant 41 : index
    %41 = memref.load %arg1[%c41] : memref<98xf32, #tpu.memory_space<smem>>
    %c42 = arith.constant 42 : index
    %42 = memref.load %arg1[%c42] : memref<98xf32, #tpu.memory_space<smem>>
    %c43 = arith.constant 43 : index
    %43 = memref.load %arg1[%c43] : memref<98xf32, #tpu.memory_space<smem>>
    %c44 = arith.constant 44 : index
    %44 = memref.load %arg1[%c44] : memref<98xf32, #tpu.memory_space<smem>>
    %c45 = arith.constant 45 : index
    %45 = memref.load %arg1[%c45] : memref<98xf32, #tpu.memory_space<smem>>
    %c46 = arith.constant 46 : index
    %46 = memref.load %arg1[%c46] : memref<98xf32, #tpu.memory_space<smem>>
    %c47 = arith.constant 47 : index
    %47 = memref.load %arg1[%c47] : memref<98xf32, #tpu.memory_space<smem>>
    %c48 = arith.constant 48 : index
    %48 = memref.load %arg1[%c48] : memref<98xf32, #tpu.memory_space<smem>>
    %c49 = arith.constant 49 : index
    %49 = memref.load %arg1[%c49] : memref<98xf32, #tpu.memory_space<smem>>
    %c50 = arith.constant 50 : index
    %50 = memref.load %arg1[%c50] : memref<98xf32, #tpu.memory_space<smem>>
    %c51 = arith.constant 51 : index
    %51 = memref.load %arg1[%c51] : memref<98xf32, #tpu.memory_space<smem>>
    %c52 = arith.constant 52 : index
    %52 = memref.load %arg1[%c52] : memref<98xf32, #tpu.memory_space<smem>>
    %c53 = arith.constant 53 : index
    %53 = memref.load %arg1[%c53] : memref<98xf32, #tpu.memory_space<smem>>
    %c54 = arith.constant 54 : index
    %54 = memref.load %arg1[%c54] : memref<98xf32, #tpu.memory_space<smem>>
    %c55 = arith.constant 55 : index
    %55 = memref.load %arg1[%c55] : memref<98xf32, #tpu.memory_space<smem>>
    %c56 = arith.constant 56 : index
    %56 = memref.load %arg1[%c56] : memref<98xf32, #tpu.memory_space<smem>>
    %c57 = arith.constant 57 : index
    %57 = memref.load %arg1[%c57] : memref<98xf32, #tpu.memory_space<smem>>
    %c58 = arith.constant 58 : index
    %58 = memref.load %arg1[%c58] : memref<98xf32, #tpu.memory_space<smem>>
    %c59 = arith.constant 59 : index
    %59 = memref.load %arg1[%c59] : memref<98xf32, #tpu.memory_space<smem>>
    %c60 = arith.constant 60 : index
    %60 = memref.load %arg1[%c60] : memref<98xf32, #tpu.memory_space<smem>>
    %c61 = arith.constant 61 : index
    %61 = memref.load %arg1[%c61] : memref<98xf32, #tpu.memory_space<smem>>
    %c62 = arith.constant 62 : index
    %62 = memref.load %arg1[%c62] : memref<98xf32, #tpu.memory_space<smem>>
    %c63 = arith.constant 63 : index
    %63 = memref.load %arg1[%c63] : memref<98xf32, #tpu.memory_space<smem>>
    %c64 = arith.constant 64 : index
    %64 = memref.load %arg1[%c64] : memref<98xf32, #tpu.memory_space<smem>>
    %c65 = arith.constant 65 : index
    %65 = memref.load %arg1[%c65] : memref<98xf32, #tpu.memory_space<smem>>
    %c66 = arith.constant 66 : index
    %66 = memref.load %arg1[%c66] : memref<98xf32, #tpu.memory_space<smem>>
    %c67 = arith.constant 67 : index
    %67 = memref.load %arg1[%c67] : memref<98xf32, #tpu.memory_space<smem>>
    %c68 = arith.constant 68 : index
    %68 = memref.load %arg1[%c68] : memref<98xf32, #tpu.memory_space<smem>>
    %c69 = arith.constant 69 : index
    %69 = memref.load %arg1[%c69] : memref<98xf32, #tpu.memory_space<smem>>
    %c70 = arith.constant 70 : index
    %70 = memref.load %arg1[%c70] : memref<98xf32, #tpu.memory_space<smem>>
    %c71 = arith.constant 71 : index
    %71 = memref.load %arg1[%c71] : memref<98xf32, #tpu.memory_space<smem>>
    %c72 = arith.constant 72 : index
    %72 = memref.load %arg1[%c72] : memref<98xf32, #tpu.memory_space<smem>>
    %c73 = arith.constant 73 : index
    %73 = memref.load %arg1[%c73] : memref<98xf32, #tpu.memory_space<smem>>
    %c74 = arith.constant 74 : index
    %74 = memref.load %arg1[%c74] : memref<98xf32, #tpu.memory_space<smem>>
    %c75 = arith.constant 75 : index
    %75 = memref.load %arg1[%c75] : memref<98xf32, #tpu.memory_space<smem>>
    %c76 = arith.constant 76 : index
    %76 = memref.load %arg1[%c76] : memref<98xf32, #tpu.memory_space<smem>>
    %c77 = arith.constant 77 : index
    %77 = memref.load %arg1[%c77] : memref<98xf32, #tpu.memory_space<smem>>
    %c78 = arith.constant 78 : index
    %78 = memref.load %arg1[%c78] : memref<98xf32, #tpu.memory_space<smem>>
    %c79 = arith.constant 79 : index
    %79 = memref.load %arg1[%c79] : memref<98xf32, #tpu.memory_space<smem>>
    %c80 = arith.constant 80 : index
    %80 = memref.load %arg1[%c80] : memref<98xf32, #tpu.memory_space<smem>>
    %c81 = arith.constant 81 : index
    %81 = memref.load %arg1[%c81] : memref<98xf32, #tpu.memory_space<smem>>
    %c82 = arith.constant 82 : index
    %82 = memref.load %arg1[%c82] : memref<98xf32, #tpu.memory_space<smem>>
    %c83 = arith.constant 83 : index
    %83 = memref.load %arg1[%c83] : memref<98xf32, #tpu.memory_space<smem>>
    %c84 = arith.constant 84 : index
    %84 = memref.load %arg1[%c84] : memref<98xf32, #tpu.memory_space<smem>>
    %c85 = arith.constant 85 : index
    %85 = memref.load %arg1[%c85] : memref<98xf32, #tpu.memory_space<smem>>
    %c86 = arith.constant 86 : index
    %86 = memref.load %arg1[%c86] : memref<98xf32, #tpu.memory_space<smem>>
    %c87 = arith.constant 87 : index
    %87 = memref.load %arg1[%c87] : memref<98xf32, #tpu.memory_space<smem>>
    %c88 = arith.constant 88 : index
    %88 = memref.load %arg1[%c88] : memref<98xf32, #tpu.memory_space<smem>>
    %c89 = arith.constant 89 : index
    %89 = memref.load %arg1[%c89] : memref<98xf32, #tpu.memory_space<smem>>
    %c90 = arith.constant 90 : index
    %90 = memref.load %arg1[%c90] : memref<98xf32, #tpu.memory_space<smem>>
    %c91 = arith.constant 91 : index
    %91 = memref.load %arg1[%c91] : memref<98xf32, #tpu.memory_space<smem>>
    %c92 = arith.constant 92 : index
    %92 = memref.load %arg1[%c92] : memref<98xf32, #tpu.memory_space<smem>>
    %c93 = arith.constant 93 : index
    %93 = memref.load %arg1[%c93] : memref<98xf32, #tpu.memory_space<smem>>
    %c94 = arith.constant 94 : index
    %94 = memref.load %arg1[%c94] : memref<98xf32, #tpu.memory_space<smem>>
    %c95 = arith.constant 95 : index
    %95 = memref.load %arg1[%c95] : memref<98xf32, #tpu.memory_space<smem>>
    %c96 = arith.constant 96 : index
    %96 = memref.load %arg1[%c96] : memref<98xf32, #tpu.memory_space<smem>>
    %c97 = arith.constant 97 : index
    %97 = memref.load %arg1[%c97] : memref<98xf32, #tpu.memory_space<smem>>
    %98 = tpu.iota {dimensions = array<i32: 1>} : vector<1x256xi32>
    %c16_i32 = arith.constant 16 : i32
    %c0_i32 = arith.constant 0 : i32
    %99 = arith.cmpi eq, %c16_i32, %c0_i32 : i32
    %c1_i32 = arith.constant 1 : i32
    %100 = arith.select %99, %c1_i32, %c16_i32 : i32
    %101 = vector.broadcast %100 : i32 to vector<1x256xi32>
    %102 = arith.remsi %98, %101 : vector<1x256xi32>
    %c0_i32_0 = arith.constant 0 : i32
    %103 = vector.broadcast %c0_i32_0 : i32 to vector<1x256xi32>
    %104 = arith.cmpi ne, %102, %103 : vector<1x256xi32>
    %c0_i32_1 = arith.constant 0 : i32
    %105 = vector.broadcast %c0_i32_1 : i32 to vector<1x256xi32>
    %106 = arith.cmpi slt, %102, %105 : vector<1x256xi32>
    %c0_i32_2 = arith.constant 0 : i32
    %107 = arith.cmpi slt, %100, %c0_i32_2 : i32
    %108 = vector.broadcast %107 : i1 to vector<1x256xi1>
    %109 = vector.broadcast %108 : vector<1x256xi1> to vector<1x256xi1>
    %110 = arith.xori %106, %109 : vector<1x256xi1>
    %111 = arith.andi %110, %104 : vector<1x256xi1>
    %112 = vector.broadcast %100 : i32 to vector<1x256xi32>
    %113 = arith.addi %102, %112 : vector<1x256xi32>
    %114 = arith.select %111, %113, %102 : vector<1x256xi1>, vector<1x256xi32>
    %c3_i32 = arith.constant 3 : i32
    %115 = vector.broadcast %c3_i32 : i32 to vector<1x256xi32>
    %116 = arith.cmpi sge, %114, %115 : vector<1x256xi32>
    %c15_i32 = arith.constant 15 : i32
    %117 = vector.broadcast %c15_i32 : i32 to vector<1x256xi32>
    %118 = arith.cmpi sle, %114, %117 : vector<1x256xi32>
    %119 = arith.andi %116, %118 : vector<1x256xi1>
    %120 = arith.extui %119 : vector<1x256xi1> to vector<1x256xi32>
    %121 = arith.sitofp %120 : vector<1x256xi32> to vector<1x256xf32>
    %c48_i32 = arith.constant 48 : i32
    %122 = vector.broadcast %c48_i32 : i32 to vector<1x256xi32>
    %123 = arith.cmpi sge, %98, %122 : vector<1x256xi32>
    %c256_i32 = arith.constant 256 : i32
    %124 = vector.broadcast %c256_i32 : i32 to vector<1x256xi32>
    %125 = arith.cmpi slt, %98, %124 : vector<1x256xi32>
    %126 = arith.andi %123, %125 : vector<1x256xi1>
    %127 = arith.extui %126 : vector<1x256xi1> to vector<1x256xi32>
    %128 = arith.sitofp %127 : vector<1x256xi32> to vector<1x256xf32>
    %c2_i32 = arith.constant 2 : i32
    %129 = vector.broadcast %c2_i32 : i32 to vector<1x256xi32>
    %130 = arith.cmpi sge, %114, %129 : vector<1x256xi32>
    %c15_i32_3 = arith.constant 15 : i32
    %131 = vector.broadcast %c15_i32_3 : i32 to vector<1x256xi32>
    %132 = arith.cmpi sle, %114, %131 : vector<1x256xi32>
    %133 = arith.andi %130, %132 : vector<1x256xi1>
    %134 = arith.extui %133 : vector<1x256xi1> to vector<1x256xi32>
    %135 = arith.sitofp %134 : vector<1x256xi32> to vector<1x256xf32>
    %c32_i32 = arith.constant 32 : i32
    %136 = vector.broadcast %c32_i32 : i32 to vector<1x256xi32>
    %137 = arith.cmpi sge, %98, %136 : vector<1x256xi32>
    %c256_i32_4 = arith.constant 256 : i32
    %138 = vector.broadcast %c256_i32_4 : i32 to vector<1x256xi32>
    %139 = arith.cmpi slt, %98, %138 : vector<1x256xi32>
    %140 = arith.andi %137, %139 : vector<1x256xi1>
    %141 = arith.extui %140 : vector<1x256xi1> to vector<1x256xi32>
    %142 = arith.sitofp %141 : vector<1x256xi32> to vector<1x256xf32>
    %c1_i32_5 = arith.constant 1 : i32
    %143 = vector.broadcast %c1_i32_5 : i32 to vector<1x256xi32>
    %144 = arith.cmpi sge, %114, %143 : vector<1x256xi32>
    %c15_i32_6 = arith.constant 15 : i32
    %145 = vector.broadcast %c15_i32_6 : i32 to vector<1x256xi32>
    %146 = arith.cmpi sle, %114, %145 : vector<1x256xi32>
    %147 = arith.andi %144, %146 : vector<1x256xi1>
    %148 = arith.extui %147 : vector<1x256xi1> to vector<1x256xi32>
    %149 = arith.sitofp %148 : vector<1x256xi32> to vector<1x256xf32>
    %c16_i32_7 = arith.constant 16 : i32
    %150 = vector.broadcast %c16_i32_7 : i32 to vector<1x256xi32>
    %151 = arith.cmpi sge, %98, %150 : vector<1x256xi32>
    %c256_i32_8 = arith.constant 256 : i32
    %152 = vector.broadcast %c256_i32_8 : i32 to vector<1x256xi32>
    %153 = arith.cmpi slt, %98, %152 : vector<1x256xi32>
    %154 = arith.andi %151, %153 : vector<1x256xi1>
    %155 = arith.extui %154 : vector<1x256xi1> to vector<1x256xi32>
    %156 = arith.sitofp %155 : vector<1x256xi32> to vector<1x256xf32>
    %c0_i32_9 = arith.constant 0 : i32
    %157 = vector.broadcast %c0_i32_9 : i32 to vector<1x256xi32>
    %158 = arith.cmpi sge, %114, %157 : vector<1x256xi32>
    %c14_i32 = arith.constant 14 : i32
    %159 = vector.broadcast %c14_i32 : i32 to vector<1x256xi32>
    %160 = arith.cmpi sle, %114, %159 : vector<1x256xi32>
    %161 = arith.andi %158, %160 : vector<1x256xi1>
    %162 = arith.extui %161 : vector<1x256xi1> to vector<1x256xi32>
    %163 = arith.sitofp %162 : vector<1x256xi32> to vector<1x256xf32>
    %c0_i32_10 = arith.constant 0 : i32
    %164 = vector.broadcast %c0_i32_10 : i32 to vector<1x256xi32>
    %165 = arith.cmpi sge, %98, %164 : vector<1x256xi32>
    %c240_i32 = arith.constant 240 : i32
    %166 = vector.broadcast %c240_i32 : i32 to vector<1x256xi32>
    %167 = arith.cmpi slt, %98, %166 : vector<1x256xi32>
    %168 = arith.andi %165, %167 : vector<1x256xi1>
    %169 = arith.extui %168 : vector<1x256xi1> to vector<1x256xi32>
    %170 = arith.sitofp %169 : vector<1x256xi32> to vector<1x256xf32>
    %c0_i32_11 = arith.constant 0 : i32
    %171 = vector.broadcast %c0_i32_11 : i32 to vector<1x256xi32>
    %172 = arith.cmpi sge, %114, %171 : vector<1x256xi32>
    %c13_i32 = arith.constant 13 : i32
    %173 = vector.broadcast %c13_i32 : i32 to vector<1x256xi32>
    %174 = arith.cmpi sle, %114, %173 : vector<1x256xi32>
    %175 = arith.andi %172, %174 : vector<1x256xi1>
    %176 = arith.extui %175 : vector<1x256xi1> to vector<1x256xi32>
    %177 = arith.sitofp %176 : vector<1x256xi32> to vector<1x256xf32>
    %c0_i32_12 = arith.constant 0 : i32
    %178 = vector.broadcast %c0_i32_12 : i32 to vector<1x256xi32>
    %179 = arith.cmpi sge, %98, %178 : vector<1x256xi32>
    %c224_i32 = arith.constant 224 : i32
    %180 = vector.broadcast %c224_i32 : i32 to vector<1x256xi32>
    %181 = arith.cmpi slt, %98, %180 : vector<1x256xi32>
    %182 = arith.andi %179, %181 : vector<1x256xi1>
    %183 = arith.extui %182 : vector<1x256xi1> to vector<1x256xi32>
    %184 = arith.sitofp %183 : vector<1x256xi32> to vector<1x256xf32>
    %c0_i32_13 = arith.constant 0 : i32
    %185 = vector.broadcast %c0_i32_13 : i32 to vector<1x256xi32>
    %186 = arith.cmpi sge, %114, %185 : vector<1x256xi32>
    %c12_i32 = arith.constant 12 : i32
    %187 = vector.broadcast %c12_i32 : i32 to vector<1x256xi32>
    %188 = arith.cmpi sle, %114, %187 : vector<1x256xi32>
    %189 = arith.andi %186, %188 : vector<1x256xi1>
    %190 = arith.extui %189 : vector<1x256xi1> to vector<1x256xi32>
    %191 = arith.sitofp %190 : vector<1x256xi32> to vector<1x256xf32>
    %c0_i32_14 = arith.constant 0 : i32
    %192 = vector.broadcast %c0_i32_14 : i32 to vector<1x256xi32>
    %193 = arith.cmpi sge, %98, %192 : vector<1x256xi32>
    %c208_i32 = arith.constant 208 : i32
    %194 = vector.broadcast %c208_i32 : i32 to vector<1x256xi32>
    %195 = arith.cmpi slt, %98, %194 : vector<1x256xi32>
    %196 = arith.andi %193, %195 : vector<1x256xi1>
    %197 = arith.extui %196 : vector<1x256xi1> to vector<1x256xi32>
    %198 = arith.sitofp %197 : vector<1x256xi32> to vector<1x256xf32>
    %c0_15 = arith.constant 0 : index
    %c0_16 = arith.constant 0 : index
    %c0_17 = arith.constant 0 : index
    %199 = vector.load %arg2[%c0_15, %c0_16, %c0_17] : memref<2x64x256xf32, #tpu.memory_space<vmem>>, vector<1x64x256xf32>
    %200 = vector.shape_cast %199 : vector<1x64x256xf32> to vector<64x256xf32>
    %cst = arith.constant dense<0.000000e+00> : vector<64xf32>
    %201 = vector.multi_reduction <add>, %200, %cst [1] : vector<64x256xf32> to vector<64xf32>
    %202 = vector.shape_cast %201 : vector<64xf32> to vector<64x1xf32>
    %cst_18 = arith.constant 2.560000e+02 : f32
    %203 = vector.broadcast %cst_18 : f32 to vector<64x1xf32>
    %204 = arith.divf %202, %203 : vector<64x1xf32>
    %c1_19 = arith.constant 1 : index
    %c0_20 = arith.constant 0 : index
    %c0_21 = arith.constant 0 : index
    %205 = vector.load %arg2[%c1_19, %c0_20, %c0_21] : memref<2x64x256xf32, #tpu.memory_space<vmem>>, vector<1x64x256xf32>
    %206 = vector.shape_cast %205 : vector<1x64x256xf32> to vector<64x256xf32>
    %cst_22 = arith.constant dense<0.000000e+00> : vector<64xf32>
    %207 = vector.multi_reduction <add>, %206, %cst_22 [1] : vector<64x256xf32> to vector<64xf32>
    %208 = vector.shape_cast %207 : vector<64xf32> to vector<64x1xf32>
    %cst_23 = arith.constant 2.560000e+02 : f32
    %209 = vector.broadcast %cst_23 : f32 to vector<64x1xf32>
    %210 = arith.divf %208, %209 : vector<64x1xf32>
    %c0_24 = arith.constant 0 : index
    %c0_25 = arith.constant 0 : index
    %c0_26 = arith.constant 0 : index
    %211 = vector.load %arg2[%c0_24, %c0_25, %c0_26] : memref<2x64x256xf32, #tpu.memory_space<vmem>>, vector<1x64x256xf32>
    %212 = vector.shape_cast %211 : vector<1x64x256xf32> to vector<64x256xf32>
    %cst_27 = arith.constant dense<0xFF800000> : vector<64xf32>
    %213 = vector.multi_reduction <maximumf>, %212, %cst_27 [1] : vector<64x256xf32> to vector<64xf32>
    %214 = vector.shape_cast %213 : vector<64xf32> to vector<64x1xf32>
    %c1_28 = arith.constant 1 : index
    %c0_29 = arith.constant 0 : index
    %c0_30 = arith.constant 0 : index
    %215 = vector.load %arg2[%c1_28, %c0_29, %c0_30] : memref<2x64x256xf32, #tpu.memory_space<vmem>>, vector<1x64x256xf32>
    %216 = vector.shape_cast %215 : vector<1x64x256xf32> to vector<64x256xf32>
    %cst_31 = arith.constant dense<0xFF800000> : vector<64xf32>
    %217 = vector.multi_reduction <maximumf>, %216, %cst_31 [1] : vector<64x256xf32> to vector<64xf32>
    %218 = vector.shape_cast %217 : vector<64xf32> to vector<64x1xf32>
    %219 = tpu.concatenate %204, %210, %214, %218 in 1 : vector<64x1xf32>, vector<64x1xf32>, vector<64x1xf32>, vector<64x1xf32> -> vector<64x4xf32>
    %c0_32 = arith.constant 0 : index
    %c0_33 = arith.constant 0 : index
    %220 = vector.load %arg4[%c0_32, %c0_33] : memref<4x64xf32, #tpu.memory_space<vmem>>, vector<4x64xf32>
    %cst_34 = arith.constant dense<0.000000e+00> : vector<4x4xf32>
    %221 = tpu.matmul %220, %219, %cst_34 {dimension_numbers = #tpu.dot_dimension_numbers<[1], [0], [0], [1], [0, 0, 1, 1], [], []>} : vector<4x64xf32>, vector<64x4xf32>, vector<4x4xf32> -> vector<4x4xf32>
    %cst_35 = arith.constant 0.000000e+00 : f32
    %222 = vector.broadcast %cst_35 : f32 to vector<4x4xf32>
    %223 = arith.maximumf %221, %222 : vector<4x4xf32>
    %c0_36 = arith.constant 0 : index
    %c0_37 = arith.constant 0 : index
    %224 = vector.load %arg5[%c0_36, %c0_37] : memref<64x4xf32, #tpu.memory_space<vmem>>, vector<64x4xf32>
    %cst_38 = arith.constant dense<0.000000e+00> : vector<64x4xf32>
    %225 = tpu.matmul %224, %223, %cst_38 {dimension_numbers = #tpu.dot_dimension_numbers<[1], [0], [0], [1], [0, 0, 1, 1], [], []>} : vector<64x4xf32>, vector<4x4xf32>, vector<64x4xf32> -> vector<64x4xf32>
    %226 = vector.extract_strided_slice %225 {offsets = [0, 0], sizes = [64, 2], strides = [1, 1]} : vector<64x4xf32> to vector<64x2xf32>
    %227 = vector.extract_strided_slice %225 {offsets = [0, 2], sizes = [64, 2], strides = [1, 1]} : vector<64x4xf32> to vector<64x2xf32>
    %228 = arith.addf %226, %227 : vector<64x2xf32>
    %229 = arith.negf %228 : vector<64x2xf32>
    %230 = math.exp %229 : vector<64x2xf32>
    %cst_39 = arith.constant 1.000000e+00 : f32
    %231 = vector.broadcast %cst_39 : f32 to vector<64x2xf32>
    %232 = arith.addf %231, %230 : vector<64x2xf32>
    %233 = arith.divf %231, %232 : vector<64x2xf32>
    %234 = vector.extract_strided_slice %233 {offsets = [0, 0], sizes = [64, 1], strides = [1, 1]} : vector<64x2xf32> to vector<64x1xf32>
    %c0_40 = arith.constant 0 : index
    %c0_41 = arith.constant 0 : index
    %c0_42 = arith.constant 0 : index
    %235 = vector.load %arg3[%c0_40, %c0_41, %c0_42] : memref<2x64x256xf32, #tpu.memory_space<vmem>>, vector<1x64x256xf32>
    %236 = vector.shape_cast %235 : vector<1x64x256xf32> to vector<64x256xf32>
    %237 = vector.broadcast %234 : vector<64x1xf32> to vector<64x256xf32>
    %238 = arith.mulf %237, %236 : vector<64x256xf32>
    %cst_43 = arith.constant dense<0.000000e+00> : vector<256xf32>
    %239 = vector.multi_reduction <add>, %238, %cst_43 [0] : vector<64x256xf32> to vector<256xf32>
    %240 = vector.shape_cast %239 : vector<256xf32> to vector<1x256xf32>
    %cst_44 = arith.constant 6.400000e+01 : f32
    %241 = vector.broadcast %cst_44 : f32 to vector<1x256xf32>
    %242 = arith.divf %240, %241 : vector<1x256xf32>
    %cst_45 = arith.constant dense<0xFF800000> : vector<256xf32>
    %243 = vector.multi_reduction <maximumf>, %238, %cst_45 [0] : vector<64x256xf32> to vector<256xf32>
    %244 = vector.shape_cast %243 : vector<256xf32> to vector<1x256xf32>
    %245 = vector.extract_strided_slice %233 {offsets = [0, 1], sizes = [64, 1], strides = [1, 1]} : vector<64x2xf32> to vector<64x1xf32>
    %c1_46 = arith.constant 1 : index
    %c0_47 = arith.constant 0 : index
    %c0_48 = arith.constant 0 : index
    %246 = vector.load %arg3[%c1_46, %c0_47, %c0_48] : memref<2x64x256xf32, #tpu.memory_space<vmem>>, vector<1x64x256xf32>
    %247 = vector.shape_cast %246 : vector<1x64x256xf32> to vector<64x256xf32>
    %248 = vector.broadcast %245 : vector<64x1xf32> to vector<64x256xf32>
    %249 = arith.mulf %248, %247 : vector<64x256xf32>
    %cst_49 = arith.constant dense<0.000000e+00> : vector<256xf32>
    %250 = vector.multi_reduction <add>, %249, %cst_49 [0] : vector<64x256xf32> to vector<256xf32>
    %251 = vector.shape_cast %250 : vector<256xf32> to vector<1x256xf32>
    %cst_50 = arith.constant 6.400000e+01 : f32
    %252 = vector.broadcast %cst_50 : f32 to vector<1x256xf32>
    %253 = arith.divf %251, %252 : vector<1x256xf32>
    %cst_51 = arith.constant dense<0xFF800000> : vector<256xf32>
    %254 = vector.multi_reduction <maximumf>, %249, %cst_51 [0] : vector<64x256xf32> to vector<256xf32>
    %255 = vector.shape_cast %254 : vector<256xf32> to vector<1x256xf32>
    %256 = tpu.concatenate %242, %253 in 0 : vector<1x256xf32>, vector<1x256xf32> -> vector<2x256xf32>
    %257 = tpu.concatenate %244, %255 in 0 : vector<1x256xf32>, vector<1x256xf32> -> vector<2x256xf32>
    %cst_52 = arith.constant 0.000000e+00 : f32
    %258 = vector.broadcast %cst_52 : f32 to vector<2x256xf32>
    %c3_i32_53 = arith.constant 3 : i32
    %259 = tpu.dynamic_rotate %256 by %c3_i32_53 dim 1 : vector<2x256xf32>, i32 -> vector<2x256xf32>
    %c3_i32_54 = arith.constant 3 : i32
    %260 = tpu.dynamic_rotate %257 by %c3_i32_54 dim 1 : vector<2x256xf32>, i32 -> vector<2x256xf32>
    %261 = vector.broadcast %121 : vector<1x256xf32> to vector<2x256xf32>
    %262 = arith.mulf %259, %261 : vector<2x256xf32>
    %263 = vector.broadcast %121 : vector<1x256xf32> to vector<2x256xf32>
    %264 = arith.mulf %260, %263 : vector<2x256xf32>
    %c48_i32_55 = arith.constant 48 : i32
    %265 = tpu.dynamic_rotate %262 by %c48_i32_55 dim 1 : vector<2x256xf32>, i32 -> vector<2x256xf32>
    %c48_i32_56 = arith.constant 48 : i32
    %266 = tpu.dynamic_rotate %264 by %c48_i32_56 dim 1 : vector<2x256xf32>, i32 -> vector<2x256xf32>
    %267 = vector.broadcast %0 : f32 to vector<2x256xf32>
    %268 = arith.mulf %267, %265 : vector<2x256xf32>
    %269 = vector.broadcast %49 : f32 to vector<2x256xf32>
    %270 = arith.mulf %269, %266 : vector<2x256xf32>
    %271 = arith.addf %268, %270 : vector<2x256xf32>
    %272 = vector.broadcast %128 : vector<1x256xf32> to vector<2x256xf32>
    %273 = arith.mulf %271, %272 : vector<2x256xf32>
    %274 = arith.addf %258, %273 : vector<2x256xf32>
    %c32_i32_57 = arith.constant 32 : i32
    %275 = tpu.dynamic_rotate %262 by %c32_i32_57 dim 1 : vector<2x256xf32>, i32 -> vector<2x256xf32>
    %c32_i32_58 = arith.constant 32 : i32
    %276 = tpu.dynamic_rotate %264 by %c32_i32_58 dim 1 : vector<2x256xf32>, i32 -> vector<2x256xf32>
    %277 = vector.broadcast %7 : f32 to vector<2x256xf32>
    %278 = arith.mulf %277, %275 : vector<2x256xf32>
    %279 = vector.broadcast %56 : f32 to vector<2x256xf32>
    %280 = arith.mulf %279, %276 : vector<2x256xf32>
    %281 = arith.addf %278, %280 : vector<2x256xf32>
    %282 = vector.broadcast %142 : vector<1x256xf32> to vector<2x256xf32>
    %283 = arith.mulf %281, %282 : vector<2x256xf32>
    %284 = arith.addf %274, %283 : vector<2x256xf32>
    %c16_i32_59 = arith.constant 16 : i32
    %285 = tpu.dynamic_rotate %262 by %c16_i32_59 dim 1 : vector<2x256xf32>, i32 -> vector<2x256xf32>
    %c16_i32_60 = arith.constant 16 : i32
    %286 = tpu.dynamic_rotate %264 by %c16_i32_60 dim 1 : vector<2x256xf32>, i32 -> vector<2x256xf32>
    %287 = vector.broadcast %14 : f32 to vector<2x256xf32>
    %288 = arith.mulf %287, %285 : vector<2x256xf32>
    %289 = vector.broadcast %63 : f32 to vector<2x256xf32>
    %290 = arith.mulf %289, %286 : vector<2x256xf32>
    %291 = arith.addf %288, %290 : vector<2x256xf32>
    %292 = vector.broadcast %156 : vector<1x256xf32> to vector<2x256xf32>
    %293 = arith.mulf %291, %292 : vector<2x256xf32>
    %294 = arith.addf %284, %293 : vector<2x256xf32>
    %295 = vector.broadcast %21 : f32 to vector<2x256xf32>
    %296 = arith.mulf %295, %262 : vector<2x256xf32>
    %297 = vector.broadcast %70 : f32 to vector<2x256xf32>
    %298 = arith.mulf %297, %264 : vector<2x256xf32>
    %299 = arith.addf %296, %298 : vector<2x256xf32>
    %300 = arith.addf %294, %299 : vector<2x256xf32>
    %c240_i32_61 = arith.constant 240 : i32
    %301 = tpu.dynamic_rotate %262 by %c240_i32_61 dim 1 : vector<2x256xf32>, i32 -> vector<2x256xf32>
    %c240_i32_62 = arith.constant 240 : i32
    %302 = tpu.dynamic_rotate %264 by %c240_i32_62 dim 1 : vector<2x256xf32>, i32 -> vector<2x256xf32>
    %303 = vector.broadcast %28 : f32 to vector<2x256xf32>
    %304 = arith.mulf %303, %301 : vector<2x256xf32>
    %305 = vector.broadcast %77 : f32 to vector<2x256xf32>
    %306 = arith.mulf %305, %302 : vector<2x256xf32>
    %307 = arith.addf %304, %306 : vector<2x256xf32>
    %308 = vector.broadcast %170 : vector<1x256xf32> to vector<2x256xf32>
    %309 = arith.mulf %307, %308 : vector<2x256xf32>
    %310 = arith.addf %300, %309 : vector<2x256xf32>
    %c224_i32_63 = arith.constant 224 : i32
    %311 = tpu.dynamic_rotate %262 by %c224_i32_63 dim 1 : vector<2x256xf32>, i32 -> vector<2x256xf32>
    %c224_i32_64 = arith.constant 224 : i32
    %312 = tpu.dynamic_rotate %264 by %c224_i32_64 dim 1 : vector<2x256xf32>, i32 -> vector<2x256xf32>
    %313 = vector.broadcast %35 : f32 to vector<2x256xf32>
    %314 = arith.mulf %313, %311 : vector<2x256xf32>
    %315 = vector.broadcast %84 : f32 to vector<2x256xf32>
    %316 = arith.mulf %315, %312 : vector<2x256xf32>
    %317 = arith.addf %314, %316 : vector<2x256xf32>
    %318 = vector.broadcast %184 : vector<1x256xf32> to vector<2x256xf32>
    %319 = arith.mulf %317, %318 : vector<2x256xf32>
    %320 = arith.addf %310, %319 : vector<2x256xf32>
    %c208_i32_65 = arith.constant 208 : i32
    %321 = tpu.dynamic_rotate %262 by %c208_i32_65 dim 1 : vector<2x256xf32>, i32 -> vector<2x256xf32>
    %c208_i32_66 = arith.constant 208 : i32
    %322 = tpu.dynamic_rotate %264 by %c208_i32_66 dim 1 : vector<2x256xf32>, i32 -> vector<2x256xf32>
    %323 = vector.broadcast %42 : f32 to vector<2x256xf32>
    %324 = arith.mulf %323, %321 : vector<2x256xf32>
    %325 = vector.broadcast %91 : f32 to vector<2x256xf32>
    %326 = arith.mulf %325, %322 : vector<2x256xf32>
    %327 = arith.addf %324, %326 : vector<2x256xf32>
    %328 = vector.broadcast %198 : vector<1x256xf32> to vector<2x256xf32>
    %329 = arith.mulf %327, %328 : vector<2x256xf32>
    %330 = arith.addf %320, %329 : vector<2x256xf32>
    %c2_i32_67 = arith.constant 2 : i32
    %331 = tpu.dynamic_rotate %256 by %c2_i32_67 dim 1 : vector<2x256xf32>, i32 -> vector<2x256xf32>
    %c2_i32_68 = arith.constant 2 : i32
    %332 = tpu.dynamic_rotate %257 by %c2_i32_68 dim 1 : vector<2x256xf32>, i32 -> vector<2x256xf32>
    %333 = vector.broadcast %135 : vector<1x256xf32> to vector<2x256xf32>
    %334 = arith.mulf %331, %333 : vector<2x256xf32>
    %335 = vector.broadcast %135 : vector<1x256xf32> to vector<2x256xf32>
    %336 = arith.mulf %332, %335 : vector<2x256xf32>
    %c48_i32_69 = arith.constant 48 : i32
    %337 = tpu.dynamic_rotate %334 by %c48_i32_69 dim 1 : vector<2x256xf32>, i32 -> vector<2x256xf32>
    %c48_i32_70 = arith.constant 48 : i32
    %338 = tpu.dynamic_rotate %336 by %c48_i32_70 dim 1 : vector<2x256xf32>, i32 -> vector<2x256xf32>
    %339 = vector.broadcast %1 : f32 to vector<2x256xf32>
    %340 = arith.mulf %339, %337 : vector<2x256xf32>
    %341 = vector.broadcast %50 : f32 to vector<2x256xf32>
    %342 = arith.mulf %341, %338 : vector<2x256xf32>
    %343 = arith.addf %340, %342 : vector<2x256xf32>
    %344 = vector.broadcast %128 : vector<1x256xf32> to vector<2x256xf32>
    %345 = arith.mulf %343, %344 : vector<2x256xf32>
    %346 = arith.addf %330, %345 : vector<2x256xf32>
    %c32_i32_71 = arith.constant 32 : i32
    %347 = tpu.dynamic_rotate %334 by %c32_i32_71 dim 1 : vector<2x256xf32>, i32 -> vector<2x256xf32>
    %c32_i32_72 = arith.constant 32 : i32
    %348 = tpu.dynamic_rotate %336 by %c32_i32_72 dim 1 : vector<2x256xf32>, i32 -> vector<2x256xf32>
    %349 = vector.broadcast %8 : f32 to vector<2x256xf32>
    %350 = arith.mulf %349, %347 : vector<2x256xf32>
    %351 = vector.broadcast %57 : f32 to vector<2x256xf32>
    %352 = arith.mulf %351, %348 : vector<2x256xf32>
    %353 = arith.addf %350, %352 : vector<2x256xf32>
    %354 = vector.broadcast %142 : vector<1x256xf32> to vector<2x256xf32>
    %355 = arith.mulf %353, %354 : vector<2x256xf32>
    %356 = arith.addf %346, %355 : vector<2x256xf32>
    %c16_i32_73 = arith.constant 16 : i32
    %357 = tpu.dynamic_rotate %334 by %c16_i32_73 dim 1 : vector<2x256xf32>, i32 -> vector<2x256xf32>
    %c16_i32_74 = arith.constant 16 : i32
    %358 = tpu.dynamic_rotate %336 by %c16_i32_74 dim 1 : vector<2x256xf32>, i32 -> vector<2x256xf32>
    %359 = vector.broadcast %15 : f32 to vector<2x256xf32>
    %360 = arith.mulf %359, %357 : vector<2x256xf32>
    %361 = vector.broadcast %64 : f32 to vector<2x256xf32>
    %362 = arith.mulf %361, %358 : vector<2x256xf32>
    %363 = arith.addf %360, %362 : vector<2x256xf32>
    %364 = vector.broadcast %156 : vector<1x256xf32> to vector<2x256xf32>
    %365 = arith.mulf %363, %364 : vector<2x256xf32>
    %366 = arith.addf %356, %365 : vector<2x256xf32>
    %367 = vector.broadcast %22 : f32 to vector<2x256xf32>
    %368 = arith.mulf %367, %334 : vector<2x256xf32>
    %369 = vector.broadcast %71 : f32 to vector<2x256xf32>
    %370 = arith.mulf %369, %336 : vector<2x256xf32>
    %371 = arith.addf %368, %370 : vector<2x256xf32>
    %372 = arith.addf %366, %371 : vector<2x256xf32>
    %c240_i32_75 = arith.constant 240 : i32
    %373 = tpu.dynamic_rotate %334 by %c240_i32_75 dim 1 : vector<2x256xf32>, i32 -> vector<2x256xf32>
    %c240_i32_76 = arith.constant 240 : i32
    %374 = tpu.dynamic_rotate %336 by %c240_i32_76 dim 1 : vector<2x256xf32>, i32 -> vector<2x256xf32>
    %375 = vector.broadcast %29 : f32 to vector<2x256xf32>
    %376 = arith.mulf %375, %373 : vector<2x256xf32>
    %377 = vector.broadcast %78 : f32 to vector<2x256xf32>
    %378 = arith.mulf %377, %374 : vector<2x256xf32>
    %379 = arith.addf %376, %378 : vector<2x256xf32>
    %380 = vector.broadcast %170 : vector<1x256xf32> to vector<2x256xf32>
    %381 = arith.mulf %379, %380 : vector<2x256xf32>
    %382 = arith.addf %372, %381 : vector<2x256xf32>
    %c224_i32_77 = arith.constant 224 : i32
    %383 = tpu.dynamic_rotate %334 by %c224_i32_77 dim 1 : vector<2x256xf32>, i32 -> vector<2x256xf32>
    %c224_i32_78 = arith.constant 224 : i32
    %384 = tpu.dynamic_rotate %336 by %c224_i32_78 dim 1 : vector<2x256xf32>, i32 -> vector<2x256xf32>
    %385 = vector.broadcast %36 : f32 to vector<2x256xf32>
    %386 = arith.mulf %385, %383 : vector<2x256xf32>
    %387 = vector.broadcast %85 : f32 to vector<2x256xf32>
    %388 = arith.mulf %387, %384 : vector<2x256xf32>
    %389 = arith.addf %386, %388 : vector<2x256xf32>
    %390 = vector.broadcast %184 : vector<1x256xf32> to vector<2x256xf32>
    %391 = arith.mulf %389, %390 : vector<2x256xf32>
    %392 = arith.addf %382, %391 : vector<2x256xf32>
    %c208_i32_79 = arith.constant 208 : i32
    %393 = tpu.dynamic_rotate %334 by %c208_i32_79 dim 1 : vector<2x256xf32>, i32 -> vector<2x256xf32>
    %c208_i32_80 = arith.constant 208 : i32
    %394 = tpu.dynamic_rotate %336 by %c208_i32_80 dim 1 : vector<2x256xf32>, i32 -> vector<2x256xf32>
    %395 = vector.broadcast %43 : f32 to vector<2x256xf32>
    %396 = arith.mulf %395, %393 : vector<2x256xf32>
    %397 = vector.broadcast %92 : f32 to vector<2x256xf32>
    %398 = arith.mulf %397, %394 : vector<2x256xf32>
    %399 = arith.addf %396, %398 : vector<2x256xf32>
    %400 = vector.broadcast %198 : vector<1x256xf32> to vector<2x256xf32>
    %401 = arith.mulf %399, %400 : vector<2x256xf32>
    %402 = arith.addf %392, %401 : vector<2x256xf32>
    %c1_i32_81 = arith.constant 1 : i32
    %403 = tpu.dynamic_rotate %256 by %c1_i32_81 dim 1 : vector<2x256xf32>, i32 -> vector<2x256xf32>
    %c1_i32_82 = arith.constant 1 : i32
    %404 = tpu.dynamic_rotate %257 by %c1_i32_82 dim 1 : vector<2x256xf32>, i32 -> vector<2x256xf32>
    %405 = vector.broadcast %149 : vector<1x256xf32> to vector<2x256xf32>
    %406 = arith.mulf %403, %405 : vector<2x256xf32>
    %407 = vector.broadcast %149 : vector<1x256xf32> to vector<2x256xf32>
    %408 = arith.mulf %404, %407 : vector<2x256xf32>
    %c48_i32_83 = arith.constant 48 : i32
    %409 = tpu.dynamic_rotate %406 by %c48_i32_83 dim 1 : vector<2x256xf32>, i32 -> vector<2x256xf32>
    %c48_i32_84 = arith.constant 48 : i32
    %410 = tpu.dynamic_rotate %408 by %c48_i32_84 dim 1 : vector<2x256xf32>, i32 -> vector<2x256xf32>
    %411 = vector.broadcast %2 : f32 to vector<2x256xf32>
    %412 = arith.mulf %411, %409 : vector<2x256xf32>
    %413 = vector.broadcast %51 : f32 to vector<2x256xf32>
    %414 = arith.mulf %413, %410 : vector<2x256xf32>
    %415 = arith.addf %412, %414 : vector<2x256xf32>
    %416 = vector.broadcast %128 : vector<1x256xf32> to vector<2x256xf32>
    %417 = arith.mulf %415, %416 : vector<2x256xf32>
    %418 = arith.addf %402, %417 : vector<2x256xf32>
    %c32_i32_85 = arith.constant 32 : i32
    %419 = tpu.dynamic_rotate %406 by %c32_i32_85 dim 1 : vector<2x256xf32>, i32 -> vector<2x256xf32>
    %c32_i32_86 = arith.constant 32 : i32
    %420 = tpu.dynamic_rotate %408 by %c32_i32_86 dim 1 : vector<2x256xf32>, i32 -> vector<2x256xf32>
    %421 = vector.broadcast %9 : f32 to vector<2x256xf32>
    %422 = arith.mulf %421, %419 : vector<2x256xf32>
    %423 = vector.broadcast %58 : f32 to vector<2x256xf32>
    %424 = arith.mulf %423, %420 : vector<2x256xf32>
    %425 = arith.addf %422, %424 : vector<2x256xf32>
    %426 = vector.broadcast %142 : vector<1x256xf32> to vector<2x256xf32>
    %427 = arith.mulf %425, %426 : vector<2x256xf32>
    %428 = arith.addf %418, %427 : vector<2x256xf32>
    %c16_i32_87 = arith.constant 16 : i32
    %429 = tpu.dynamic_rotate %406 by %c16_i32_87 dim 1 : vector<2x256xf32>, i32 -> vector<2x256xf32>
    %c16_i32_88 = arith.constant 16 : i32
    %430 = tpu.dynamic_rotate %408 by %c16_i32_88 dim 1 : vector<2x256xf32>, i32 -> vector<2x256xf32>
    %431 = vector.broadcast %16 : f32 to vector<2x256xf32>
    %432 = arith.mulf %431, %429 : vector<2x256xf32>
    %433 = vector.broadcast %65 : f32 to vector<2x256xf32>
    %434 = arith.mulf %433, %430 : vector<2x256xf32>
    %435 = arith.addf %432, %434 : vector<2x256xf32>
    %436 = vector.broadcast %156 : vector<1x256xf32> to vector<2x256xf32>
    %437 = arith.mulf %435, %436 : vector<2x256xf32>
    %438 = arith.addf %428, %437 : vector<2x256xf32>
    %439 = vector.broadcast %23 : f32 to vector<2x256xf32>
    %440 = arith.mulf %439, %406 : vector<2x256xf32>
    %441 = vector.broadcast %72 : f32 to vector<2x256xf32>
    %442 = arith.mulf %441, %408 : vector<2x256xf32>
    %443 = arith.addf %440, %442 : vector<2x256xf32>
    %444 = arith.addf %438, %443 : vector<2x256xf32>
    %c240_i32_89 = arith.constant 240 : i32
    %445 = tpu.dynamic_rotate %406 by %c240_i32_89 dim 1 : vector<2x256xf32>, i32 -> vector<2x256xf32>
    %c240_i32_90 = arith.constant 240 : i32
    %446 = tpu.dynamic_rotate %408 by %c240_i32_90 dim 1 : vector<2x256xf32>, i32 -> vector<2x256xf32>
    %447 = vector.broadcast %30 : f32 to vector<2x256xf32>
    %448 = arith.mulf %447, %445 : vector<2x256xf32>
    %449 = vector.broadcast %79 : f32 to vector<2x256xf32>
    %450 = arith.mulf %449, %446 : vector<2x256xf32>
    %451 = arith.addf %448, %450 : vector<2x256xf32>
    %452 = vector.broadcast %170 : vector<1x256xf32> to vector<2x256xf32>
    %453 = arith.mulf %451, %452 : vector<2x256xf32>
    %454 = arith.addf %444, %453 : vector<2x256xf32>
    %c224_i32_91 = arith.constant 224 : i32
    %455 = tpu.dynamic_rotate %406 by %c224_i32_91 dim 1 : vector<2x256xf32>, i32 -> vector<2x256xf32>
    %c224_i32_92 = arith.constant 224 : i32
    %456 = tpu.dynamic_rotate %408 by %c224_i32_92 dim 1 : vector<2x256xf32>, i32 -> vector<2x256xf32>
    %457 = vector.broadcast %37 : f32 to vector<2x256xf32>
    %458 = arith.mulf %457, %455 : vector<2x256xf32>
    %459 = vector.broadcast %86 : f32 to vector<2x256xf32>
    %460 = arith.mulf %459, %456 : vector<2x256xf32>
    %461 = arith.addf %458, %460 : vector<2x256xf32>
    %462 = vector.broadcast %184 : vector<1x256xf32> to vector<2x256xf32>
    %463 = arith.mulf %461, %462 : vector<2x256xf32>
    %464 = arith.addf %454, %463 : vector<2x256xf32>
    %c208_i32_93 = arith.constant 208 : i32
    %465 = tpu.dynamic_rotate %406 by %c208_i32_93 dim 1 : vector<2x256xf32>, i32 -> vector<2x256xf32>
    %c208_i32_94 = arith.constant 208 : i32
    %466 = tpu.dynamic_rotate %408 by %c208_i32_94 dim 1 : vector<2x256xf32>, i32 -> vector<2x256xf32>
    %467 = vector.broadcast %44 : f32 to vector<2x256xf32>
    %468 = arith.mulf %467, %465 : vector<2x256xf32>
    %469 = vector.broadcast %93 : f32 to vector<2x256xf32>
    %470 = arith.mulf %469, %466 : vector<2x256xf32>
    %471 = arith.addf %468, %470 : vector<2x256xf32>
    %472 = vector.broadcast %198 : vector<1x256xf32> to vector<2x256xf32>
    %473 = arith.mulf %471, %472 : vector<2x256xf32>
    %474 = arith.addf %464, %473 : vector<2x256xf32>
    %c48_i32_95 = arith.constant 48 : i32
    %475 = tpu.dynamic_rotate %256 by %c48_i32_95 dim 1 : vector<2x256xf32>, i32 -> vector<2x256xf32>
    %c48_i32_96 = arith.constant 48 : i32
    %476 = tpu.dynamic_rotate %257 by %c48_i32_96 dim 1 : vector<2x256xf32>, i32 -> vector<2x256xf32>
    %477 = vector.broadcast %3 : f32 to vector<2x256xf32>
    %478 = arith.mulf %477, %475 : vector<2x256xf32>
    %479 = vector.broadcast %52 : f32 to vector<2x256xf32>
    %480 = arith.mulf %479, %476 : vector<2x256xf32>
    %481 = arith.addf %478, %480 : vector<2x256xf32>
    %482 = vector.broadcast %128 : vector<1x256xf32> to vector<2x256xf32>
    %483 = arith.mulf %481, %482 : vector<2x256xf32>
    %484 = arith.addf %474, %483 : vector<2x256xf32>
    %c32_i32_97 = arith.constant 32 : i32
    %485 = tpu.dynamic_rotate %256 by %c32_i32_97 dim 1 : vector<2x256xf32>, i32 -> vector<2x256xf32>
    %c32_i32_98 = arith.constant 32 : i32
    %486 = tpu.dynamic_rotate %257 by %c32_i32_98 dim 1 : vector<2x256xf32>, i32 -> vector<2x256xf32>
    %487 = vector.broadcast %10 : f32 to vector<2x256xf32>
    %488 = arith.mulf %487, %485 : vector<2x256xf32>
    %489 = vector.broadcast %59 : f32 to vector<2x256xf32>
    %490 = arith.mulf %489, %486 : vector<2x256xf32>
    %491 = arith.addf %488, %490 : vector<2x256xf32>
    %492 = vector.broadcast %142 : vector<1x256xf32> to vector<2x256xf32>
    %493 = arith.mulf %491, %492 : vector<2x256xf32>
    %494 = arith.addf %484, %493 : vector<2x256xf32>
    %c16_i32_99 = arith.constant 16 : i32
    %495 = tpu.dynamic_rotate %256 by %c16_i32_99 dim 1 : vector<2x256xf32>, i32 -> vector<2x256xf32>
    %c16_i32_100 = arith.constant 16 : i32
    %496 = tpu.dynamic_rotate %257 by %c16_i32_100 dim 1 : vector<2x256xf32>, i32 -> vector<2x256xf32>
    %497 = vector.broadcast %17 : f32 to vector<2x256xf32>
    %498 = arith.mulf %497, %495 : vector<2x256xf32>
    %499 = vector.broadcast %66 : f32 to vector<2x256xf32>
    %500 = arith.mulf %499, %496 : vector<2x256xf32>
    %501 = arith.addf %498, %500 : vector<2x256xf32>
    %502 = vector.broadcast %156 : vector<1x256xf32> to vector<2x256xf32>
    %503 = arith.mulf %501, %502 : vector<2x256xf32>
    %504 = arith.addf %494, %503 : vector<2x256xf32>
    %505 = vector.broadcast %24 : f32 to vector<2x256xf32>
    %506 = arith.mulf %505, %256 : vector<2x256xf32>
    %507 = vector.broadcast %73 : f32 to vector<2x256xf32>
    %508 = arith.mulf %507, %257 : vector<2x256xf32>
    %509 = arith.addf %506, %508 : vector<2x256xf32>
    %510 = arith.addf %504, %509 : vector<2x256xf32>
    %c240_i32_101 = arith.constant 240 : i32
    %511 = tpu.dynamic_rotate %256 by %c240_i32_101 dim 1 : vector<2x256xf32>, i32 -> vector<2x256xf32>
    %c240_i32_102 = arith.constant 240 : i32
    %512 = tpu.dynamic_rotate %257 by %c240_i32_102 dim 1 : vector<2x256xf32>, i32 -> vector<2x256xf32>
    %513 = vector.broadcast %31 : f32 to vector<2x256xf32>
    %514 = arith.mulf %513, %511 : vector<2x256xf32>
    %515 = vector.broadcast %80 : f32 to vector<2x256xf32>
    %516 = arith.mulf %515, %512 : vector<2x256xf32>
    %517 = arith.addf %514, %516 : vector<2x256xf32>
    %518 = vector.broadcast %170 : vector<1x256xf32> to vector<2x256xf32>
    %519 = arith.mulf %517, %518 : vector<2x256xf32>
    %520 = arith.addf %510, %519 : vector<2x256xf32>
    %c224_i32_103 = arith.constant 224 : i32
    %521 = tpu.dynamic_rotate %256 by %c224_i32_103 dim 1 : vector<2x256xf32>, i32 -> vector<2x256xf32>
    %c224_i32_104 = arith.constant 224 : i32
    %522 = tpu.dynamic_rotate %257 by %c224_i32_104 dim 1 : vector<2x256xf32>, i32 -> vector<2x256xf32>
    %523 = vector.broadcast %38 : f32 to vector<2x256xf32>
    %524 = arith.mulf %523, %521 : vector<2x256xf32>
    %525 = vector.broadcast %87 : f32 to vector<2x256xf32>
    %526 = arith.mulf %525, %522 : vector<2x256xf32>
    %527 = arith.addf %524, %526 : vector<2x256xf32>
    %528 = vector.broadcast %184 : vector<1x256xf32> to vector<2x256xf32>
    %529 = arith.mulf %527, %528 : vector<2x256xf32>
    %530 = arith.addf %520, %529 : vector<2x256xf32>
    %c208_i32_105 = arith.constant 208 : i32
    %531 = tpu.dynamic_rotate %256 by %c208_i32_105 dim 1 : vector<2x256xf32>, i32 -> vector<2x256xf32>
    %c208_i32_106 = arith.constant 208 : i32
    %532 = tpu.dynamic_rotate %257 by %c208_i32_106 dim 1 : vector<2x256xf32>, i32 -> vector<2x256xf32>
    %533 = vector.broadcast %45 : f32 to vector<2x256xf32>
    %534 = arith.mulf %533, %531 : vector<2x256xf32>
    %535 = vector.broadcast %94 : f32 to vector<2x256xf32>
    %536 = arith.mulf %535, %532 : vector<2x256xf32>
    %537 = arith.addf %534, %536 : vector<2x256xf32>
    %538 = vector.broadcast %198 : vector<1x256xf32> to vector<2x256xf32>
    %539 = arith.mulf %537, %538 : vector<2x256xf32>
    %540 = arith.addf %530, %539 : vector<2x256xf32>
    %c255_i32 = arith.constant 255 : i32
    %541 = tpu.dynamic_rotate %256 by %c255_i32 dim 1 : vector<2x256xf32>, i32 -> vector<2x256xf32>
    %c255_i32_107 = arith.constant 255 : i32
    %542 = tpu.dynamic_rotate %257 by %c255_i32_107 dim 1 : vector<2x256xf32>, i32 -> vector<2x256xf32>
    %543 = vector.broadcast %163 : vector<1x256xf32> to vector<2x256xf32>
    %544 = arith.mulf %541, %543 : vector<2x256xf32>
    %545 = vector.broadcast %163 : vector<1x256xf32> to vector<2x256xf32>
    %546 = arith.mulf %542, %545 : vector<2x256xf32>
    %c48_i32_108 = arith.constant 48 : i32
    %547 = tpu.dynamic_rotate %544 by %c48_i32_108 dim 1 : vector<2x256xf32>, i32 -> vector<2x256xf32>
    %c48_i32_109 = arith.constant 48 : i32
    %548 = tpu.dynamic_rotate %546 by %c48_i32_109 dim 1 : vector<2x256xf32>, i32 -> vector<2x256xf32>
    %549 = vector.broadcast %4 : f32 to vector<2x256xf32>
    %550 = arith.mulf %549, %547 : vector<2x256xf32>
    %551 = vector.broadcast %53 : f32 to vector<2x256xf32>
    %552 = arith.mulf %551, %548 : vector<2x256xf32>
    %553 = arith.addf %550, %552 : vector<2x256xf32>
    %554 = vector.broadcast %128 : vector<1x256xf32> to vector<2x256xf32>
    %555 = arith.mulf %553, %554 : vector<2x256xf32>
    %556 = arith.addf %540, %555 : vector<2x256xf32>
    %c32_i32_110 = arith.constant 32 : i32
    %557 = tpu.dynamic_rotate %544 by %c32_i32_110 dim 1 : vector<2x256xf32>, i32 -> vector<2x256xf32>
    %c32_i32_111 = arith.constant 32 : i32
    %558 = tpu.dynamic_rotate %546 by %c32_i32_111 dim 1 : vector<2x256xf32>, i32 -> vector<2x256xf32>
    %559 = vector.broadcast %11 : f32 to vector<2x256xf32>
    %560 = arith.mulf %559, %557 : vector<2x256xf32>
    %561 = vector.broadcast %60 : f32 to vector<2x256xf32>
    %562 = arith.mulf %561, %558 : vector<2x256xf32>
    %563 = arith.addf %560, %562 : vector<2x256xf32>
    %564 = vector.broadcast %142 : vector<1x256xf32> to vector<2x256xf32>
    %565 = arith.mulf %563, %564 : vector<2x256xf32>
    %566 = arith.addf %556, %565 : vector<2x256xf32>
    %c16_i32_112 = arith.constant 16 : i32
    %567 = tpu.dynamic_rotate %544 by %c16_i32_112 dim 1 : vector<2x256xf32>, i32 -> vector<2x256xf32>
    %c16_i32_113 = arith.constant 16 : i32
    %568 = tpu.dynamic_rotate %546 by %c16_i32_113 dim 1 : vector<2x256xf32>, i32 -> vector<2x256xf32>
    %569 = vector.broadcast %18 : f32 to vector<2x256xf32>
    %570 = arith.mulf %569, %567 : vector<2x256xf32>
    %571 = vector.broadcast %67 : f32 to vector<2x256xf32>
    %572 = arith.mulf %571, %568 : vector<2x256xf32>
    %573 = arith.addf %570, %572 : vector<2x256xf32>
    %574 = vector.broadcast %156 : vector<1x256xf32> to vector<2x256xf32>
    %575 = arith.mulf %573, %574 : vector<2x256xf32>
    %576 = arith.addf %566, %575 : vector<2x256xf32>
    %577 = vector.broadcast %25 : f32 to vector<2x256xf32>
    %578 = arith.mulf %577, %544 : vector<2x256xf32>
    %579 = vector.broadcast %74 : f32 to vector<2x256xf32>
    %580 = arith.mulf %579, %546 : vector<2x256xf32>
    %581 = arith.addf %578, %580 : vector<2x256xf32>
    %582 = arith.addf %576, %581 : vector<2x256xf32>
    %c240_i32_114 = arith.constant 240 : i32
    %583 = tpu.dynamic_rotate %544 by %c240_i32_114 dim 1 : vector<2x256xf32>, i32 -> vector<2x256xf32>
    %c240_i32_115 = arith.constant 240 : i32
    %584 = tpu.dynamic_rotate %546 by %c240_i32_115 dim 1 : vector<2x256xf32>, i32 -> vector<2x256xf32>
    %585 = vector.broadcast %32 : f32 to vector<2x256xf32>
    %586 = arith.mulf %585, %583 : vector<2x256xf32>
    %587 = vector.broadcast %81 : f32 to vector<2x256xf32>
    %588 = arith.mulf %587, %584 : vector<2x256xf32>
    %589 = arith.addf %586, %588 : vector<2x256xf32>
    %590 = vector.broadcast %170 : vector<1x256xf32> to vector<2x256xf32>
    %591 = arith.mulf %589, %590 : vector<2x256xf32>
    %592 = arith.addf %582, %591 : vector<2x256xf32>
    %c224_i32_116 = arith.constant 224 : i32
    %593 = tpu.dynamic_rotate %544 by %c224_i32_116 dim 1 : vector<2x256xf32>, i32 -> vector<2x256xf32>
    %c224_i32_117 = arith.constant 224 : i32
    %594 = tpu.dynamic_rotate %546 by %c224_i32_117 dim 1 : vector<2x256xf32>, i32 -> vector<2x256xf32>
    %595 = vector.broadcast %39 : f32 to vector<2x256xf32>
    %596 = arith.mulf %595, %593 : vector<2x256xf32>
    %597 = vector.broadcast %88 : f32 to vector<2x256xf32>
    %598 = arith.mulf %597, %594 : vector<2x256xf32>
    %599 = arith.addf %596, %598 : vector<2x256xf32>
    %600 = vector.broadcast %184 : vector<1x256xf32> to vector<2x256xf32>
    %601 = arith.mulf %599, %600 : vector<2x256xf32>
    %602 = arith.addf %592, %601 : vector<2x256xf32>
    %c208_i32_118 = arith.constant 208 : i32
    %603 = tpu.dynamic_rotate %544 by %c208_i32_118 dim 1 : vector<2x256xf32>, i32 -> vector<2x256xf32>
    %c208_i32_119 = arith.constant 208 : i32
    %604 = tpu.dynamic_rotate %546 by %c208_i32_119 dim 1 : vector<2x256xf32>, i32 -> vector<2x256xf32>
    %605 = vector.broadcast %46 : f32 to vector<2x256xf32>
    %606 = arith.mulf %605, %603 : vector<2x256xf32>
    %607 = vector.broadcast %95 : f32 to vector<2x256xf32>
    %608 = arith.mulf %607, %604 : vector<2x256xf32>
    %609 = arith.addf %606, %608 : vector<2x256xf32>
    %610 = vector.broadcast %198 : vector<1x256xf32> to vector<2x256xf32>
    %611 = arith.mulf %609, %610 : vector<2x256xf32>
    %612 = arith.addf %602, %611 : vector<2x256xf32>
    %c254_i32 = arith.constant 254 : i32
    %613 = tpu.dynamic_rotate %256 by %c254_i32 dim 1 : vector<2x256xf32>, i32 -> vector<2x256xf32>
    %c254_i32_120 = arith.constant 254 : i32
    %614 = tpu.dynamic_rotate %257 by %c254_i32_120 dim 1 : vector<2x256xf32>, i32 -> vector<2x256xf32>
    %615 = vector.broadcast %177 : vector<1x256xf32> to vector<2x256xf32>
    %616 = arith.mulf %613, %615 : vector<2x256xf32>
    %617 = vector.broadcast %177 : vector<1x256xf32> to vector<2x256xf32>
    %618 = arith.mulf %614, %617 : vector<2x256xf32>
    %c48_i32_121 = arith.constant 48 : i32
    %619 = tpu.dynamic_rotate %616 by %c48_i32_121 dim 1 : vector<2x256xf32>, i32 -> vector<2x256xf32>
    %c48_i32_122 = arith.constant 48 : i32
    %620 = tpu.dynamic_rotate %618 by %c48_i32_122 dim 1 : vector<2x256xf32>, i32 -> vector<2x256xf32>
    %621 = vector.broadcast %5 : f32 to vector<2x256xf32>
    %622 = arith.mulf %621, %619 : vector<2x256xf32>
    %623 = vector.broadcast %54 : f32 to vector<2x256xf32>
    %624 = arith.mulf %623, %620 : vector<2x256xf32>
    %625 = arith.addf %622, %624 : vector<2x256xf32>
    %626 = vector.broadcast %128 : vector<1x256xf32> to vector<2x256xf32>
    %627 = arith.mulf %625, %626 : vector<2x256xf32>
    %628 = arith.addf %612, %627 : vector<2x256xf32>
    %c32_i32_123 = arith.constant 32 : i32
    %629 = tpu.dynamic_rotate %616 by %c32_i32_123 dim 1 : vector<2x256xf32>, i32 -> vector<2x256xf32>
    %c32_i32_124 = arith.constant 32 : i32
    %630 = tpu.dynamic_rotate %618 by %c32_i32_124 dim 1 : vector<2x256xf32>, i32 -> vector<2x256xf32>
    %631 = vector.broadcast %12 : f32 to vector<2x256xf32>
    %632 = arith.mulf %631, %629 : vector<2x256xf32>
    %633 = vector.broadcast %61 : f32 to vector<2x256xf32>
    %634 = arith.mulf %633, %630 : vector<2x256xf32>
    %635 = arith.addf %632, %634 : vector<2x256xf32>
    %636 = vector.broadcast %142 : vector<1x256xf32> to vector<2x256xf32>
    %637 = arith.mulf %635, %636 : vector<2x256xf32>
    %638 = arith.addf %628, %637 : vector<2x256xf32>
    %c16_i32_125 = arith.constant 16 : i32
    %639 = tpu.dynamic_rotate %616 by %c16_i32_125 dim 1 : vector<2x256xf32>, i32 -> vector<2x256xf32>
    %c16_i32_126 = arith.constant 16 : i32
    %640 = tpu.dynamic_rotate %618 by %c16_i32_126 dim 1 : vector<2x256xf32>, i32 -> vector<2x256xf32>
    %641 = vector.broadcast %19 : f32 to vector<2x256xf32>
    %642 = arith.mulf %641, %639 : vector<2x256xf32>
    %643 = vector.broadcast %68 : f32 to vector<2x256xf32>
    %644 = arith.mulf %643, %640 : vector<2x256xf32>
    %645 = arith.addf %642, %644 : vector<2x256xf32>
    %646 = vector.broadcast %156 : vector<1x256xf32> to vector<2x256xf32>
    %647 = arith.mulf %645, %646 : vector<2x256xf32>
    %648 = arith.addf %638, %647 : vector<2x256xf32>
    %649 = vector.broadcast %26 : f32 to vector<2x256xf32>
    %650 = arith.mulf %649, %616 : vector<2x256xf32>
    %651 = vector.broadcast %75 : f32 to vector<2x256xf32>
    %652 = arith.mulf %651, %618 : vector<2x256xf32>
    %653 = arith.addf %650, %652 : vector<2x256xf32>
    %654 = arith.addf %648, %653 : vector<2x256xf32>
    %c240_i32_127 = arith.constant 240 : i32
    %655 = tpu.dynamic_rotate %616 by %c240_i32_127 dim 1 : vector<2x256xf32>, i32 -> vector<2x256xf32>
    %c240_i32_128 = arith.constant 240 : i32
    %656 = tpu.dynamic_rotate %618 by %c240_i32_128 dim 1 : vector<2x256xf32>, i32 -> vector<2x256xf32>
    %657 = vector.broadcast %33 : f32 to vector<2x256xf32>
    %658 = arith.mulf %657, %655 : vector<2x256xf32>
    %659 = vector.broadcast %82 : f32 to vector<2x256xf32>
    %660 = arith.mulf %659, %656 : vector<2x256xf32>
    %661 = arith.addf %658, %660 : vector<2x256xf32>
    %662 = vector.broadcast %170 : vector<1x256xf32> to vector<2x256xf32>
    %663 = arith.mulf %661, %662 : vector<2x256xf32>
    %664 = arith.addf %654, %663 : vector<2x256xf32>
    %c224_i32_129 = arith.constant 224 : i32
    %665 = tpu.dynamic_rotate %616 by %c224_i32_129 dim 1 : vector<2x256xf32>, i32 -> vector<2x256xf32>
    %c224_i32_130 = arith.constant 224 : i32
    %666 = tpu.dynamic_rotate %618 by %c224_i32_130 dim 1 : vector<2x256xf32>, i32 -> vector<2x256xf32>
    %667 = vector.broadcast %40 : f32 to vector<2x256xf32>
    %668 = arith.mulf %667, %665 : vector<2x256xf32>
    %669 = vector.broadcast %89 : f32 to vector<2x256xf32>
    %670 = arith.mulf %669, %666 : vector<2x256xf32>
    %671 = arith.addf %668, %670 : vector<2x256xf32>
    %672 = vector.broadcast %184 : vector<1x256xf32> to vector<2x256xf32>
    %673 = arith.mulf %671, %672 : vector<2x256xf32>
    %674 = arith.addf %664, %673 : vector<2x256xf32>
    %c208_i32_131 = arith.constant 208 : i32
    %675 = tpu.dynamic_rotate %616 by %c208_i32_131 dim 1 : vector<2x256xf32>, i32 -> vector<2x256xf32>
    %c208_i32_132 = arith.constant 208 : i32
    %676 = tpu.dynamic_rotate %618 by %c208_i32_132 dim 1 : vector<2x256xf32>, i32 -> vector<2x256xf32>
    %677 = vector.broadcast %47 : f32 to vector<2x256xf32>
    %678 = arith.mulf %677, %675 : vector<2x256xf32>
    %679 = vector.broadcast %96 : f32 to vector<2x256xf32>
    %680 = arith.mulf %679, %676 : vector<2x256xf32>
    %681 = arith.addf %678, %680 : vector<2x256xf32>
    %682 = vector.broadcast %198 : vector<1x256xf32> to vector<2x256xf32>
    %683 = arith.mulf %681, %682 : vector<2x256xf32>
    %684 = arith.addf %674, %683 : vector<2x256xf32>
    %c253_i32 = arith.constant 253 : i32
    %685 = tpu.dynamic_rotate %256 by %c253_i32 dim 1 : vector<2x256xf32>, i32 -> vector<2x256xf32>
    %c253_i32_133 = arith.constant 253 : i32
    %686 = tpu.dynamic_rotate %257 by %c253_i32_133 dim 1 : vector<2x256xf32>, i32 -> vector<2x256xf32>
    %687 = vector.broadcast %191 : vector<1x256xf32> to vector<2x256xf32>
    %688 = arith.mulf %685, %687 : vector<2x256xf32>
    %689 = vector.broadcast %191 : vector<1x256xf32> to vector<2x256xf32>
    %690 = arith.mulf %686, %689 : vector<2x256xf32>
    %c48_i32_134 = arith.constant 48 : i32
    %691 = tpu.dynamic_rotate %688 by %c48_i32_134 dim 1 : vector<2x256xf32>, i32 -> vector<2x256xf32>
    %c48_i32_135 = arith.constant 48 : i32
    %692 = tpu.dynamic_rotate %690 by %c48_i32_135 dim 1 : vector<2x256xf32>, i32 -> vector<2x256xf32>
    %693 = vector.broadcast %6 : f32 to vector<2x256xf32>
    %694 = arith.mulf %693, %691 : vector<2x256xf32>
    %695 = vector.broadcast %55 : f32 to vector<2x256xf32>
    %696 = arith.mulf %695, %692 : vector<2x256xf32>
    %697 = arith.addf %694, %696 : vector<2x256xf32>
    %698 = vector.broadcast %128 : vector<1x256xf32> to vector<2x256xf32>
    %699 = arith.mulf %697, %698 : vector<2x256xf32>
    %700 = arith.addf %684, %699 : vector<2x256xf32>
    %c32_i32_136 = arith.constant 32 : i32
    %701 = tpu.dynamic_rotate %688 by %c32_i32_136 dim 1 : vector<2x256xf32>, i32 -> vector<2x256xf32>
    %c32_i32_137 = arith.constant 32 : i32
    %702 = tpu.dynamic_rotate %690 by %c32_i32_137 dim 1 : vector<2x256xf32>, i32 -> vector<2x256xf32>
    %703 = vector.broadcast %13 : f32 to vector<2x256xf32>
    %704 = arith.mulf %703, %701 : vector<2x256xf32>
    %705 = vector.broadcast %62 : f32 to vector<2x256xf32>
    %706 = arith.mulf %705, %702 : vector<2x256xf32>
    %707 = arith.addf %704, %706 : vector<2x256xf32>
    %708 = vector.broadcast %142 : vector<1x256xf32> to vector<2x256xf32>
    %709 = arith.mulf %707, %708 : vector<2x256xf32>
    %710 = arith.addf %700, %709 : vector<2x256xf32>
    %c16_i32_138 = arith.constant 16 : i32
    %711 = tpu.dynamic_rotate %688 by %c16_i32_138 dim 1 : vector<2x256xf32>, i32 -> vector<2x256xf32>
    %c16_i32_139 = arith.constant 16 : i32
    %712 = tpu.dynamic_rotate %690 by %c16_i32_139 dim 1 : vector<2x256xf32>, i32 -> vector<2x256xf32>
    %713 = vector.broadcast %20 : f32 to vector<2x256xf32>
    %714 = arith.mulf %713, %711 : vector<2x256xf32>
    %715 = vector.broadcast %69 : f32 to vector<2x256xf32>
    %716 = arith.mulf %715, %712 : vector<2x256xf32>
    %717 = arith.addf %714, %716 : vector<2x256xf32>
    %718 = vector.broadcast %156 : vector<1x256xf32> to vector<2x256xf32>
    %719 = arith.mulf %717, %718 : vector<2x256xf32>
    %720 = arith.addf %710, %719 : vector<2x256xf32>
    %721 = vector.broadcast %27 : f32 to vector<2x256xf32>
    %722 = arith.mulf %721, %688 : vector<2x256xf32>
    %723 = vector.broadcast %76 : f32 to vector<2x256xf32>
    %724 = arith.mulf %723, %690 : vector<2x256xf32>
    %725 = arith.addf %722, %724 : vector<2x256xf32>
    %726 = arith.addf %720, %725 : vector<2x256xf32>
    %c240_i32_140 = arith.constant 240 : i32
    %727 = tpu.dynamic_rotate %688 by %c240_i32_140 dim 1 : vector<2x256xf32>, i32 -> vector<2x256xf32>
    %c240_i32_141 = arith.constant 240 : i32
    %728 = tpu.dynamic_rotate %690 by %c240_i32_141 dim 1 : vector<2x256xf32>, i32 -> vector<2x256xf32>
    %729 = vector.broadcast %34 : f32 to vector<2x256xf32>
    %730 = arith.mulf %729, %727 : vector<2x256xf32>
    %731 = vector.broadcast %83 : f32 to vector<2x256xf32>
    %732 = arith.mulf %731, %728 : vector<2x256xf32>
    %733 = arith.addf %730, %732 : vector<2x256xf32>
    %734 = vector.broadcast %170 : vector<1x256xf32> to vector<2x256xf32>
    %735 = arith.mulf %733, %734 : vector<2x256xf32>
    %736 = arith.addf %726, %735 : vector<2x256xf32>
    %c224_i32_142 = arith.constant 224 : i32
    %737 = tpu.dynamic_rotate %688 by %c224_i32_142 dim 1 : vector<2x256xf32>, i32 -> vector<2x256xf32>
    %c224_i32_143 = arith.constant 224 : i32
    %738 = tpu.dynamic_rotate %690 by %c224_i32_143 dim 1 : vector<2x256xf32>, i32 -> vector<2x256xf32>
    %739 = vector.broadcast %41 : f32 to vector<2x256xf32>
    %740 = arith.mulf %739, %737 : vector<2x256xf32>
    %741 = vector.broadcast %90 : f32 to vector<2x256xf32>
    %742 = arith.mulf %741, %738 : vector<2x256xf32>
    %743 = arith.addf %740, %742 : vector<2x256xf32>
    %744 = vector.broadcast %184 : vector<1x256xf32> to vector<2x256xf32>
    %745 = arith.mulf %743, %744 : vector<2x256xf32>
    %746 = arith.addf %736, %745 : vector<2x256xf32>
    %c208_i32_144 = arith.constant 208 : i32
    %747 = tpu.dynamic_rotate %688 by %c208_i32_144 dim 1 : vector<2x256xf32>, i32 -> vector<2x256xf32>
    %c208_i32_145 = arith.constant 208 : i32
    %748 = tpu.dynamic_rotate %690 by %c208_i32_145 dim 1 : vector<2x256xf32>, i32 -> vector<2x256xf32>
    %749 = vector.broadcast %48 : f32 to vector<2x256xf32>
    %750 = arith.mulf %749, %747 : vector<2x256xf32>
    %751 = vector.broadcast %97 : f32 to vector<2x256xf32>
    %752 = arith.mulf %751, %748 : vector<2x256xf32>
    %753 = arith.addf %750, %752 : vector<2x256xf32>
    %754 = vector.broadcast %198 : vector<1x256xf32> to vector<2x256xf32>
    %755 = arith.mulf %753, %754 : vector<2x256xf32>
    %756 = arith.addf %746, %755 : vector<2x256xf32>
    %757 = arith.negf %756 : vector<2x256xf32>
    %758 = math.exp %757 : vector<2x256xf32>
    %cst_146 = arith.constant 1.000000e+00 : f32
    %759 = vector.broadcast %cst_146 : f32 to vector<2x256xf32>
    %760 = arith.addf %759, %758 : vector<2x256xf32>
    %761 = arith.divf %759, %760 : vector<2x256xf32>
    %762 = vector.extract_strided_slice %761 {offsets = [0, 0], sizes = [1, 256], strides = [1, 1]} : vector<2x256xf32> to vector<1x256xf32>
    %c0_147 = arith.constant 0 : index
    %c0_148 = arith.constant 0 : index
    %c0_149 = arith.constant 0 : index
    %763 = vector.load %arg3[%c0_147, %c0_148, %c0_149] : memref<2x64x256xf32, #tpu.memory_space<vmem>>, vector<1x64x256xf32>
    %764 = vector.shape_cast %763 : vector<1x64x256xf32> to vector<64x256xf32>
    %765 = vector.broadcast %762 : vector<1x256xf32> to vector<64x256xf32>
    %766 = arith.mulf %765, %764 : vector<64x256xf32>
    %c0_150 = arith.constant 0 : index
    %c0_151 = arith.constant 0 : index
    %c0_152 = arith.constant 0 : index
    %767 = vector.load %arg6[%c0_150, %c0_151, %c0_152] : memref<2x64x256xf32, #tpu.memory_space<vmem>>, vector<1x64x256xf32>
    %768 = vector.shape_cast %767 : vector<1x64x256xf32> to vector<64x256xf32>
    %769 = vector.shape_cast %766 : vector<64x256xf32> to vector<1x64x256xf32>
    tpu.vector_store %arg6[%c0_150, %c0_151, %c0_152], %769 {strides = array<i32>} : memref<2x64x256xf32, #tpu.memory_space<vmem>>, vector<1x64x256xf32>,
    %770 = vector.extract_strided_slice %761 {offsets = [1, 0], sizes = [1, 256], strides = [1, 1]} : vector<2x256xf32> to vector<1x256xf32>
    %c1_153 = arith.constant 1 : index
    %c0_154 = arith.constant 0 : index
    %c0_155 = arith.constant 0 : index
    %771 = vector.load %arg3[%c1_153, %c0_154, %c0_155] : memref<2x64x256xf32, #tpu.memory_space<vmem>>, vector<1x64x256xf32>
    %772 = vector.shape_cast %771 : vector<1x64x256xf32> to vector<64x256xf32>
    %773 = vector.broadcast %770 : vector<1x256xf32> to vector<64x256xf32>
    %774 = arith.mulf %773, %772 : vector<64x256xf32>
    %c1_156 = arith.constant 1 : index
    %c0_157 = arith.constant 0 : index
    %c0_158 = arith.constant 0 : index
    %775 = vector.load %arg6[%c1_156, %c0_157, %c0_158] : memref<2x64x256xf32, #tpu.memory_space<vmem>>, vector<1x64x256xf32>
    %776 = vector.shape_cast %775 : vector<1x64x256xf32> to vector<64x256xf32>
    %777 = vector.shape_cast %774 : vector<64x256xf32> to vector<1x64x256xf32>
    tpu.vector_store %arg6[%c1_156, %c0_157, %c0_158], %777 {strides = array<i32>} : memref<2x64x256xf32, #tpu.memory_space<vmem>>, vector<1x64x256xf32>,
    return
  }
  func.func @transform_0(%arg0: i32) -> i32 {
    %c0_i32 = arith.constant 0 : i32
    %c0_i32_0 = arith.constant 0 : i32
    return %c0_i32 : i32
  }
  func.func @transform_1(%arg0: i32) -> (i32, i32, i32) {
    %c0_i32 = arith.constant 0 : i32
    %c0_i32_0 = arith.constant 0 : i32
    %c0_i32_1 = arith.constant 0 : i32
    return %arg0, %c0_i32, %c0_i32_0 : i32, i32, i32
  }
  func.func @transform_2(%arg0: i32) -> (i32, i32, i32) {
    %c0_i32 = arith.constant 0 : i32
    %c0_i32_0 = arith.constant 0 : i32
    %c0_i32_1 = arith.constant 0 : i32
    return %arg0, %c0_i32, %c0_i32_0 : i32, i32, i32
  }
  func.func @transform_3(%arg0: i32) -> (i32, i32) {
    %c0_i32 = arith.constant 0 : i32
    %c0_i32_0 = arith.constant 0 : i32
    %c0_i32_1 = arith.constant 0 : i32
    return %c0_i32, %c0_i32_0 : i32, i32
  }
  func.func @transform_4(%arg0: i32) -> (i32, i32) {
    %c0_i32 = arith.constant 0 : i32
    %c0_i32_0 = arith.constant 0 : i32
    %c0_i32_1 = arith.constant 0 : i32
    return %c0_i32, %c0_i32_0 : i32, i32
  }
  func.func @transform_5(%arg0: i32) -> (i32, i32, i32) {
    %c0_i32 = arith.constant 0 : i32
    %c0_i32_0 = arith.constant 0 : i32
    %c0_i32_1 = arith.constant 0 : i32
    return %arg0, %c0_i32, %c0_i32_0 : i32, i32, i32
  }
}

</mosaic_0001>

<llo_original>
// kernel: tpu_custom_call.1
$region0: #{tpu_custom_call.1}
  #allocation0 [shape = 'u32[]', space=smem, size = 0x4, offset = 0x4, fixed_abs, tag = 'smem constant byte address 0x4 - core index']
  #allocation1 [shape = 'u32[72,128]{1,0:T(1,128)}', space=vmem, size = 0x9000, scoped, tag = 'internal scratch']
  %s0 = inlined_call_operand.vmem [shape: f32[98], index: 0, kind: input, shape index: {}]
  %s1 = inlined_call_operand.hbm [shape: f32[2,64,256], index: 1, kind: input, shape index: {}]
  %s2 = inlined_call_operand.hbm [shape: f32[2,64,256], index: 2, kind: input, shape index: {}]
  %s3 = inlined_call_operand.vmem [shape: f32[4,64], index: 3, kind: input, shape index: {}]
  %s4 = inlined_call_operand.vmem [shape: f32[64,4], index: 4, kind: input, shape index: {}]
  %s5 = inlined_call_operand.hbm [shape: f32[2,64,256], index: 5, kind: output, shape index: {}]
  %s6 = sld [smem:[#allocation0]]
  $region42: #{tpu_custom_call.1} parent=0
    _
  %s8 = ssub.s32 1, %s6
  %s9 = scalar_select 0, %s8, %s6
  $region1: #{tpu_custom_call.1} parent=0
    #allocation2 [shape = 'u8[512]{0}', space=smem, size = 0x200, scoped, tag = 'input window, operand 0, single buffered']
    #allocation3 [shape = 's32[1]{0}', space=sflag, size = 0x4, scoped, tag = 'scoped memory for tpu_custom_call.1']
    #allocation4 [shape = 's32[1]{0}', space=sflag, size = 0x4, scoped, tag = 'scoped memory for tpu_custom_call.1']
    #allocation5 [shape = 's32[1]{0}', space=sflag, size = 0x4, scoped, tag = 'scoped memory for tpu_custom_call.1']
    #allocation6 [shape = 'u8[131072]{0}', space=vmem, size = 0x20000, scoped, tag = 'input window, operand 1, single buffered']
    #allocation7 [shape = 'u8[131072]{0}', space=vmem, size = 0x20000, scoped, tag = 'input window, operand 2, single buffered']
    #allocation8 [shape = 's32[1]{0}', space=sflag, size = 0x4, scoped, tag = 'scoped memory for tpu_custom_call.1']
    #allocation9 [shape = 'u8[131072]{0}', space=vmem, size = 0x20000, scoped, tag = 'output window, operand 0, single buffered']
    %10 = vsyncpa [#allocation5], 0
    %11 = vsyncpa [#allocation3], 0
    %12 = vsyncpa [#allocation8], 0
    %13 = vsyncpa [#allocation4], 0
    // Predicated region
    $region2: #{tpu_custom_call.1} parent=1 // pred_check
      _
    $region3: #{tpu_custom_call.1} parent=1 // pred_check_branch
      %15 = sbr.rel (0) target = $region5
    $region4: #{tpu_custom_call.1} parent=1 // pred_region
      %17 = vsyncadd [#allocation5], 0
      %s19 = sshll.u32 %s0, 4
      %s20 = int_to_ptr.vmem [resolvable:$true] %s19
      %22 = dma.vmem_to_smem %s20, 16, [#allocation2], [#allocation5]
    $region5: #{tpu_custom_call.1} parent=1 // pred_fallthru
      _
    // Predicated region
    $region6: #{tpu_custom_call.1} parent=1 // pred_check
      _
    $region7: #{tpu_custom_call.1} parent=1 // pred_check_branch
      %24 = sbr.rel (0) target = $region9
    $region8: #{tpu_custom_call.1} parent=1 // pred_region
      %26 = vsyncadd [#allocation3], 0
      %s27 = sshll.u32 %s1, 4
      %s28 = int_to_ptr.hbm [resolvable:$true] %s27
      %s29 = sshll.u32 [#allocation6], 4
      %s30 = int_to_ptr.vmem [resolvable:$true] %s29
      %35 = dma.hbm_to_vmem [thread:$0]  %s28, 4096, %s30, [#allocation3], 256, 256, 16
    $region9: #{tpu_custom_call.1} parent=1 // pred_fallthru
      _
    // Predicated region
    $region10: #{tpu_custom_call.1} parent=1 // pred_check
      _
    $region11: #{tpu_custom_call.1} parent=1 // pred_check_branch
      %37 = sbr.rel (0) target = $region13
    $region12: #{tpu_custom_call.1} parent=1 // pred_region
      %39 = vsyncadd [#allocation8], 0
      %s40 = sshll.u32 %s2, 4
      %s41 = int_to_ptr.hbm [resolvable:$true] %s40
      %s42 = sshll.u32 [#allocation7], 4
      %s43 = int_to_ptr.vmem [resolvable:$true] %s42
      %48 = dma.hbm_to_vmem [thread:$0]  %s41, 4096, %s43, [#allocation8], 256, 256, 16
    $region13: #{tpu_custom_call.1} parent=1 // pred_fallthru
      _
    // Predicated region
    $region14: #{tpu_custom_call.1} parent=1 // pred_check
      _
    $region15: #{tpu_custom_call.1} parent=1 // pred_check_branch
      %50 = sbr.rel (0) target = $region17
    $region16: #{tpu_custom_call.1} parent=1 // pred_region
      _
    $region17: #{tpu_custom_call.1} parent=1 // pred_fallthru
      _
    // Predicated region
    $region18: #{tpu_custom_call.1} parent=1 // pred_check
      _
    $region19: #{tpu_custom_call.1} parent=1 // pred_check_branch
      %52 = sbr.rel (0) target = $region21
    $region20: #{tpu_custom_call.1} parent=1 // pred_region
      _
    $region21: #{tpu_custom_call.1} parent=1 // pred_fallthru
      _
    // Predicated region
    $region22: #{tpu_custom_call.1} parent=1 // pred_check
      _
    $region23: #{tpu_custom_call.1} parent=1 // pred_check_branch
      %54 = sbr.rel (0) target = $region25
    $region24: #{tpu_custom_call.1} parent=1 // pred_region
      %56 = dma.done [#allocation5], 16
    $region25: #{tpu_custom_call.1} parent=1 // pred_fallthru
      _
    // Predicated region
    $region26: #{tpu_custom_call.1} parent=1 // pred_check
      _
    $region27: #{tpu_custom_call.1} parent=1 // pred_check_branch
      %58 = sbr.rel (0) target = $region29
    $region28: #{tpu_custom_call.1} parent=1 // pred_region
      %60 = dma.done [#allocation3], 4096
    $region29: #{tpu_custom_call.1} parent=1 // pred_fallthru
      _
    // Predicated region
    $region30: #{tpu_custom_call.1} parent=1 // pred_check
      _
    $region31: #{tpu_custom_call.1} parent=1 // pred_check_branch
      %62 = sbr.rel (0) target = $region33
    $region32: #{tpu_custom_call.1} parent=1 // pred_region
      %64 = dma.done [#allocation8], 4096
    $region33: #{tpu_custom_call.1} parent=1 // pred_fallthru
      _
    %65 = sfence
    %s66 = sld [smem:[#allocation2]]
    %s67 = sld [smem:[#allocation2 + $0x1]]
    %s68 = sld [smem:[#allocation2 + $0x2]]
    %s69 = sld [smem:[#allocation2 + $0x3]]
    %s70 = sld [smem:[#allocation2 + $0x4]]
    %s71 = sld [smem:[#allocation2 + $0x5]]
    %s72 = sld [smem:[#allocation2 + $0x6]]
    %s73 = sld [smem:[#allocation2 + $0x7]]
    %s74 = sld [smem:[#allocation2 + $0x8]]
    %s75 = sld [smem:[#allocation2 + $0x9]]
    %s76 = sld [smem:[#allocation2 + $0xa]]
    %s77 = sld [smem:[#allocation2 + $0xb]]
    %s78 = sld [smem:[#allocation2 + $0xc]]
    %s79 = sld [smem:[#allocation2 + $0xd]]
    %s80 = sld [smem:[#allocation2 + $0xe]]
    %s81 = sld [smem:[#allocation2 + $0xf]]
    %s82 = sld [smem:[#allocation2 + $0x10]]
    %s83 = sld [smem:[#allocation2 + $0x11]]
    %s84 = sld [smem:[#allocation2 + $0x12]]
    %s85 = sld [smem:[#allocation2 + $0x13]]
    %s86 = sld [smem:[#allocation2 + $0x14]]
    %s87 = sld [smem:[#allocation2 + $0x15]]
    %s88 = sld [smem:[#allocation2 + $0x16]]
    %s89 = sld [smem:[#allocation2 + $0x17]]
    %s90 = sld [smem:[#allocation2 + $0x18]]
    %s91 = sld [smem:[#allocation2 + $0x19]]
    %s92 = sld [smem:[#allocation2 + $0x1a]]
    %s93 = sld [smem:[#allocation2 + $0x1b]]
    %s94 = sld [smem:[#allocation2 + $0x1c]]
    %s95 = sld [smem:[#allocation2 + $0x1d]]
    %s96 = sld [smem:[#allocation2 + $0x1e]]
    %s97 = sld [smem:[#allocation2 + $0x1f]]
    %s98 = sld [smem:[#allocation2 + $0x20]]
    %s99 = sld [smem:[#allocation2 + $0x21]]
    %s100 = sld [smem:[#allocation2 + $0x22]]
    %s101 = sld [smem:[#allocation2 + $0x23]]
    %s102 = sld [smem:[#allocation2 + $0x24]]
    %s103 = sld [smem:[#allocation2 + $0x25]]
    %s104 = sld [smem:[#allocation2 + $0x26]]
    %s105 = sld [smem:[#allocation2 + $0x27]]
    %s106 = sld [smem:[#allocation2 + $0x28]]
    %s107 = sld [smem:[#allocation2 + $0x29]]
    %s108 = sld [smem:[#allocation2 + $0x2a]]
    %s109 = sld [smem:[#allocation2 + $0x2b]]
    %s110 = sld [smem:[#allocation2 + $0x2c]]
    %s111 = sld [smem:[#allocation2 + $0x2d]]
    %s112 = sld [smem:[#allocation2 + $0x2e]]
    %s113 = sld [smem:[#allocation2 + $0x2f]]
    %s114 = sld [smem:[#allocation2 + $0x30]]
    %s115 = sld [smem:[#allocation2 + $0x31]]
    %s116 = sld [smem:[#allocation2 + $0x32]]
    %s117 = sld [smem:[#allocation2 + $0x33]]
    %s118 = sld [smem:[#allocation2 + $0x34]]
    %s119 = sld [smem:[#allocation2 + $0x35]]
    %s120 = sld [smem:[#allocation2 + $0x36]]
    %s121 = sld [smem:[#allocation2 + $0x37]]
    %s122 = sld [smem:[#allocation2 + $0x38]]
    %s123 = sld [smem:[#allocation2 + $0x39]]
    %s124 = sld [smem:[#allocation2 + $0x3a]]
    %s125 = sld [smem:[#allocation2 + $0x3b]]
    %s126 = sld [smem:[#allocation2 + $0x3c]]
    %s127 = sld [smem:[#allocation2 + $0x3d]]
    %s128 = sld [smem:[#allocation2 + $0x3e]]
    %s129 = sld [smem:[#allocation2 + $0x3f]]
    %s130 = sld [smem:[#allocation2 + $0x40]]
    %s131 = sld [smem:[#allocation2 + $0x41]]
    %s132 = sld [smem:[#allocation2 + $0x42]]
    %s133 = sld [smem:[#allocation2 + $0x43]]
    %s134 = sld [smem:[#allocation2 + $0x44]]
    %s135 = sld [smem:[#allocation2 + $0x45]]
    %s136 = sld [smem:[#allocation2 + $0x46]]
    %s137 = sld [smem:[#allocation2 + $0x47]]
    %s138 = sld [smem:[#allocation2 + $0x48]]
    %s139 = sld [smem:[#allocation2 + $0x49]]
    %s140 = sld [smem:[#allocation2 + $0x4a]]
    %s141 = sld [smem:[#allocation2 + $0x4b]]
    %s142 = sld [smem:[#allocation2 + $0x4c]]
    %s143 = sld [smem:[#allocation2 + $0x4d]]
    %s144 = sld [smem:[#allocation2 + $0x4e]]
    %s145 = sld [smem:[#allocation2 + $0x4f]]
    %s146 = sld [smem:[#allocation2 + $0x50]]
    %s147 = sld [smem:[#allocation2 + $0x51]]
    %s148 = sld [smem:[#allocation2 + $0x52]]
    %s149 = sld [smem:[#allocation2 + $0x53]]
    %s150 = sld [smem:[#allocation2 + $0x54]]
    %s151 = sld [smem:[#allocation2 + $0x55]]
    %s152 = sld [smem:[#allocation2 + $0x56]]
    %s153 = sld [smem:[#allocation2 + $0x57]]
    %s154 = sld [smem:[#allocation2 + $0x58]]
    %s155 = sld [smem:[#allocation2 + $0x59]]
    %s156 = sld [smem:[#allocation2 + $0x5a]]
    %s157 = sld [smem:[#allocation2 + $0x5b]]
    %s158 = sld [smem:[#allocation2 + $0x5c]]
    %s159 = sld [smem:[#allocation2 + $0x5d]]
    %s160 = sld [smem:[#allocation2 + $0x5e]]
    %s161 = sld [smem:[#allocation2 + $0x5f]]
    %s162 = sld [smem:[#allocation2 + $0x60]]
    %s163 = sld [smem:[#allocation2 + $0x61]]
    %v164 = vlaneseq
    %v165 = vand.u32 %v164, 127
    %v166 = vadd.s32 %v165, 128
    %vm167 = vcmp.lt.s32.totalorder %v165, 0
    %v168 = vsub.s32 0, %v165
    %v169 = vsel %vm167, %v168, %v165
    %v170 = vshrl.u32 %v169, 4
    %v171 = vand.u32 %v169, 15
    %v172 = vsub.s32 0, %v171
    %v173 = vsel %vm167, %v172, %v171
    %vm174 = vcmp.lt.s32.totalorder %v166, 0
    %v175 = vsub.s32 0, %v166
    %v176 = vsel %vm174, %v175, %v166
    %v177 = vshrl.u32 %v176, 4
    %v178 = vand.u32 %v176, 15
    %v179 = vsub.s32 0, %v178
    %v180 = vsel %vm174, %v179, %v178
    %vm181 = vcmp.ne.s32.totalorder %v173, 0
    %vm182 = vcmp.ne.s32.totalorder %v180, 0
    %vm183 = vcmp.lt.s32.totalorder %v173, 0
    %vm184 = vcmp.lt.s32.totalorder %v180, 0
    %vm185 = vmand %vm183, %vm181
    %vm186 = vmand %vm184, %vm182
    %v187 = vadd.s32 %v173, 16
    %v188 = vadd.s32 %v180, 16
    %v189 = vsel %vm185, %v187, %v173
    %v190 = vsel %vm186, %v188, %v180
    %vm191 = vcmp.ge.s32.totalorder %v189, 3
    %vm192 = vcmp.ge.s32.totalorder %v190, 3
    %vm193 = vcmp.le.s32.totalorder %v189, 15
    %vm194 = vcmp.le.s32.totalorder %v190, 15
    %vm195 = vmand %vm191, %vm193
    %vm196 = vmand %vm192, %vm194
    %v197 = vsel %vm195, 1, 0
    %v198 = vsel %vm196, 1, 0
    %v199 = vcvt.s32.f32 %v197
    %v200 = vcvt.s32.f32 %v198
    %vm201 = vcmp.ge.s32.totalorder %v165, 48
    %vm202 = vcmp.ge.s32.totalorder %v166, 48
    %vm203 = vcmp.lt.s32.totalorder %v165, 256
    %vm204 = vcmp.lt.s32.totalorder %v166, 256
    %vm205 = vmand %vm201, %vm203
    %vm206 = vmand %vm202, %vm204
    %v207 = vsel %vm205, 1, 0
    %v208 = vsel %vm206, 1, 0
    %v209 = vcvt.s32.f32 %v207
    %v210 = vcvt.s32.f32 %v208
    %vm211 = vcmp.ge.s32.totalorder %v189, 2
    %vm212 = vcmp.ge.s32.totalorder %v190, 2
    %vm213 = vmand %vm211, %vm193
    %vm214 = vmand %vm212, %vm194
    %v215 = vsel %vm213, 1, 0
    %v216 = vsel %vm214, 1, 0
    %v217 = vcvt.s32.f32 %v215
    %v218 = vcvt.s32.f32 %v216
    %vm219 = vcmp.ge.s32.totalorder %v165, 32
    %vm220 = vcmp.ge.s32.totalorder %v166, 32
    %vm221 = vmand %vm219, %vm203
    %vm222 = vmand %vm220, %vm204
    %v223 = vsel %vm221, 1, 0
    %v224 = vsel %vm222, 1, 0
    %v225 = vcvt.s32.f32 %v223
    %v226 = vcvt.s32.f32 %v224
    %vm227 = vcmp.ge.s32.totalorder %v189, 1
    %vm228 = vcmp.ge.s32.totalorder %v190, 1
    %vm229 = vmand %vm227, %vm193
    %vm230 = vmand %vm228, %vm194
    %v231 = vsel %vm229, 1, 0
    %v232 = vsel %vm230, 1, 0
    %v233 = vcvt.s32.f32 %v231
    %v234 = vcvt.s32.f32 %v232
    %vm235 = vcmp.ge.s32.totalorder %v165, 16
    %vm236 = vcmp.ge.s32.totalorder %v166, 16
    %vm237 = vmand %vm235, %vm203
    %vm238 = vmand %vm236, %vm204
    %v239 = vsel %vm237, 1, 0
    %v240 = vsel %vm238, 1, 0
    %v241 = vcvt.s32.f32 %v239
    %v242 = vcvt.s32.f32 %v240
    %vm243 = vcmp.ge.s32.totalorder %v189, 0
    %vm244 = vcmp.ge.s32.totalorder %v190, 0
    %vm245 = vcmp.le.s32.totalorder %v189, 14
    %vm246 = vcmp.le.s32.totalorder %v190, 14
    %vm247 = vmand %vm243, %vm245
    %vm248 = vmand %vm244, %vm246
    %v249 = vsel %vm247, 1, 0
    %v250 = vsel %vm248, 1, 0
    %v251 = vcvt.s32.f32 %v249
    %v252 = vcvt.s32.f32 %v250
    %vm253 = vcmp.ge.s32.totalorder %v165, 0
    %vm254 = vcmp.ge.s32.totalorder %v166, 0
    %vm255 = vcmp.lt.s32.totalorder %v165, 240
    %vm256 = vcmp.lt.s32.totalorder %v166, 240
    %vm257 = vmand %vm253, %vm255
    %vm258 = vmand %vm254, %vm256
    %v259 = vsel %vm257, 1, 0
    %v260 = vsel %vm258, 1, 0
    %v261 = vcvt.s32.f32 %v259
    %v262 = vcvt.s32.f32 %v260
    %vm263 = vcmp.le.s32.totalorder %v189, 13
    %vm264 = vcmp.le.s32.totalorder %v190, 13
    %vm265 = vmand %vm243, %vm263
    %vm266 = vmand %vm244, %vm264
    %v267 = vsel %vm265, 1, 0
    %v268 = vsel %vm266, 1, 0
    %v269 = vcvt.s32.f32 %v267
    %v270 = vcvt.s32.f32 %v268
    %vm271 = vcmp.lt.s32.totalorder %v165, 224
    %vm272 = vcmp.lt.s32.totalorder %v166, 224
    %vm273 = vmand %vm253, %vm271
    %vm274 = vmand %vm254, %vm272
    %v275 = vsel %vm273, 1, 0
    %v276 = vsel %vm274, 1, 0
    %v277 = vcvt.s32.f32 %v275
    %v278 = vcvt.s32.f32 %v276
    %vm279 = vcmp.le.s32.totalorder %v189, 12
    %vm280 = vcmp.le.s32.totalorder %v190, 12
    %vm281 = vmand %vm243, %vm279
    %vm282 = vmand %vm244, %vm280
    %v283 = vsel %vm281, 1, 0
    %v284 = vsel %vm282, 1, 0
    %v285 = vcvt.s32.f32 %v283
    %v286 = vcvt.s32.f32 %v284
    %vm287 = vcmp.lt.s32.totalorder %v165, 208
    %vm288 = vcmp.lt.s32.totalorder %v166, 208
    %vm289 = vmand %vm253, %vm287
    %vm290 = vmand %vm254, %vm288
    %v291 = vsel %vm289, 1, 0
    %v292 = vsel %vm290, 1, 0
    %v293 = vcvt.s32.f32 %v291
    %v294 = vcvt.s32.f32 %v292
    %v295 = vld [vmem:[#allocation6] sm:$0xff]
    %v296 = vld [vmem:[#allocation6 + $0x8] sm:$0xff]
    %v297 = vld [vmem:[#allocation6 + $0x10] sm:$0xff]
    %v298 = vld [vmem:[#allocation6 + $0x18] sm:$0xff]
    %v299 = vld [vmem:[#allocation6 + $0x20] sm:$0xff]
    %v300 = vld [vmem:[#allocation6 + $0x28] sm:$0xff]
    %v301 = vld [vmem:[#allocation6 + $0x30] sm:$0xff]
    %v302 = vld [vmem:[#allocation6 + $0x38] sm:$0xff]
    %v303 = vld [vmem:[#allocation6 + $0x40] sm:$0xff]
    %v304 = vld [vmem:[#allocation6 + $0x48] sm:$0xff]
    %v305 = vld [vmem:[#allocation6 + $0x50] sm:$0xff]
    %v306 = vld [vmem:[#allocation6 + $0x58] sm:$0xff]
    %v307 = vld [vmem:[#allocation6 + $0x60] sm:$0xff]
    %v308 = vld [vmem:[#allocation6 + $0x68] sm:$0xff]
    %v309 = vld [vmem:[#allocation6 + $0x70] sm:$0xff]
    %v310 = vld [vmem:[#allocation6 + $0x78] sm:$0xff]
    %v311 = vadd.f32 %v295, %v296
    %312 = vadd.xlane.f32.xlu0 %v311
    %v313 = vpop.xlane.xlu0 %312
    %v314 = vadd.f32 %v297, %v298
    %315 = vadd.xlane.f32.xlu0 %v314
    %v316 = vpop.xlane.xlu0 %315
    %v317 = vadd.f32 %v299, %v300
    %318 = vadd.xlane.f32.xlu0 %v317
    %v319 = vpop.xlane.xlu0 %318
    %v320 = vadd.f32 %v301, %v302
    %321 = vadd.xlane.f32.xlu0 %v320
    %v322 = vpop.xlane.xlu0 %321
    %v323 = vadd.f32 %v303, %v304
    %324 = vadd.xlane.f32.xlu0 %v323
    %v325 = vpop.xlane.xlu0 %324
    %v326 = vadd.f32 %v305, %v306
    %327 = vadd.xlane.f32.xlu0 %v326
    %v328 = vpop.xlane.xlu0 %327
    %v329 = vadd.f32 %v307, %v308
    %330 = vadd.xlane.f32.xlu0 %v329
    %v331 = vpop.xlane.xlu0 %330
    %v332 = vadd.f32 %v309, %v310
    %333 = vadd.xlane.f32.xlu0 %v332
    %v334 = vpop.xlane.xlu0 %333
    %v335 = vrcp.pop 256.0
    %v336 = vmul.f32 256.0, %v335
    %v337 = vsub.f32 1.0, %v336
    %v338 = vmul.f32 %v335, %v337
    %v339 = vadd.f32 %v335, %v338
    %vm340 = vweird.f32 %v335
    %v341 = vsel %vm340, %v335, %v339
    %v342 = vmul.f32 %v313, %v341
    %v343 = vmul.f32 %v316, %v341
    %v344 = vmul.f32 %v319, %v341
    %v345 = vmul.f32 %v322, %v341
    %v346 = vmul.f32 %v325, %v341
    %v347 = vmul.f32 %v328, %v341
    %v348 = vmul.f32 %v331, %v341
    %v349 = vmul.f32 %v334, %v341
    %s350 = scalar_lea.vmem [#allocation6], 128
    %v351 = vld [vmem:[%s350] sm:$0xff]
    %v352 = vld [vmem:[%s350 + $0x8] sm:$0xff]
    %v353 = vld [vmem:[%s350 + $0x10] sm:$0xff]
    %v354 = vld [vmem:[%s350 + $0x18] sm:$0xff]
    %v355 = vld [vmem:[%s350 + $0x20] sm:$0xff]
    %v356 = vld [vmem:[%s350 + $0x28] sm:$0xff]
    %v357 = vld [vmem:[%s350 + $0x30] sm:$0xff]
    %v358 = vld [vmem:[%s350 + $0x38] sm:$0xff]
    %v359 = vld [vmem:[%s350 + $0x40] sm:$0xff]
    %v360 = vld [vmem:[%s350 + $0x48] sm:$0xff]
    %v361 = vld [vmem:[%s350 + $0x50] sm:$0xff]
    %v362 = vld [vmem:[%s350 + $0x58] sm:$0xff]
    %v363 = vld [vmem:[%s350 + $0x60] sm:$0xff]
    %v364 = vld [vmem:[%s350 + $0x68] sm:$0xff]
    %v365 = vld [vmem:[%s350 + $0x70] sm:$0xff]
    %v366 = vld [vmem:[%s350 + $0x78] sm:$0xff]
    %v367 = vadd.f32 %v351, %v352
    %368 = vadd.xlane.f32.xlu0 %v367
    %v369 = vpop.xlane.xlu0 %368
    %v370 = vadd.f32 %v353, %v354
    %371 = vadd.xlane.f32.xlu0 %v370
    %v372 = vpop.xlane.xlu0 %371
    %v373 = vadd.f32 %v355, %v356
    %374 = vadd.xlane.f32.xlu0 %v373
    %v375 = vpop.xlane.xlu0 %374
    %v376 = vadd.f32 %v357, %v358
    %377 = vadd.xlane.f32.xlu0 %v376
    %v378 = vpop.xlane.xlu0 %377
    %v379 = vadd.f32 %v359, %v360
    %380 = vadd.xlane.f32.xlu0 %v379
    %v381 = vpop.xlane.xlu0 %380
    %v382 = vadd.f32 %v361, %v362
    %383 = vadd.xlane.f32.xlu0 %v382
    %v384 = vpop.xlane.xlu0 %383
    %v385 = vadd.f32 %v363, %v364
    %386 = vadd.xlane.f32.xlu0 %v385
    %v387 = vpop.xlane.xlu0 %386
    %v388 = vadd.f32 %v365, %v366
    %389 = vadd.xlane.f32.xlu0 %v388
    %v390 = vpop.xlane.xlu0 %389
    %v391 = vmul.f32 %v369, %v341
    %v392 = vmul.f32 %v372, %v341
    %v393 = vmul.f32 %v375, %v341
    %v394 = vmul.f32 %v378, %v341
    %v395 = vmul.f32 %v381, %v341
    %v396 = vmul.f32 %v384, %v341
    %v397 = vmul.f32 %v387, %v341
    %v398 = vmul.f32 %v390, %v341
    %v399 = vmax.f32 %v295, %v296
    %400 = vmax.xlane.f32.xlu0 %v399
    %v401 = vpop.xlane.xlu0 %400
    %v402 = vmax.f32 %v297, %v298
    %403 = vmax.xlane.f32.xlu0 %v402
    %v404 = vpop.xlane.xlu0 %403
    %v405 = vmax.f32 %v299, %v300
    %406 = vmax.xlane.f32.xlu0 %v405
    %v407 = vpop.xlane.xlu0 %406
    %v408 = vmax.f32 %v301, %v302
    %409 = vmax.xlane.f32.xlu0 %v408
    %v410 = vpop.xlane.xlu0 %409
    %v411 = vmax.f32 %v303, %v304
    %412 = vmax.xlane.f32.xlu0 %v411
    %v413 = vpop.xlane.xlu0 %412
    %v414 = vmax.f32 %v305, %v306
    %415 = vmax.xlane.f32.xlu0 %v414
    %v416 = vpop.xlane.xlu0 %415
    %v417 = vmax.f32 %v307, %v308
    %418 = vmax.xlane.f32.xlu0 %v417
    %v419 = vpop.xlane.xlu0 %418
    %v420 = vmax.f32 %v309, %v310
    %421 = vmax.xlane.f32.xlu0 %v420
    %v422 = vpop.xlane.xlu0 %421
    %v423 = vmax.f32 %v351, %v352
    %424 = vmax.xlane.f32.xlu0 %v423
    %v425 = vpop.xlane.xlu0 %424
    %v426 = vmax.f32 %v353, %v354
    %427 = vmax.xlane.f32.xlu0 %v426
    %v428 = vpop.xlane.xlu0 %427
    %v429 = vmax.f32 %v355, %v356
    %430 = vmax.xlane.f32.xlu0 %v429
    %v431 = vpop.xlane.xlu0 %430
    %v432 = vmax.f32 %v357, %v358
    %433 = vmax.xlane.f32.xlu0 %v432
    %v434 = vpop.xlane.xlu0 %433
    %v435 = vmax.f32 %v359, %v360
    %436 = vmax.xlane.f32.xlu0 %v435
    %v437 = vpop.xlane.xlu0 %436
    %v438 = vmax.f32 %v361, %v362
    %439 = vmax.xlane.f32.xlu0 %v438
    %v440 = vpop.xlane.xlu0 %439
    %v441 = vmax.f32 %v363, %v364
    %442 = vmax.xlane.f32.xlu0 %v441
    %v443 = vpop.xlane.xlu0 %442
    %v444 = vmax.f32 %v365, %v366
    %445 = vmax.xlane.f32.xlu0 %v444
    %v446 = vpop.xlane.xlu0 %445
    %vm447 = vcmask 7168
    %v448 = vsel %vm447, %v342, %v391
    %v449 = vsel %vm447, %v343, %v392
    %v450 = vsel %vm447, %v344, %v393
    %v451 = vsel %vm447, %v345, %v394
    %v452 = vsel %vm447, %v346, %v395
    %v453 = vsel %vm447, %v347, %v396
    %v454 = vsel %vm447, %v348, %v397
    %v455 = vsel %vm447, %v349, %v398
    %vm456 = vcmask 15360
    %v457 = vsel %vm456, %v448, %v401
    %v458 = vsel %vm456, %v449, %v404
    %v459 = vsel %vm456, %v450, %v407
    %v460 = vsel %vm456, %v451, %v410
    %v461 = vsel %vm456, %v452, %v413
    %v462 = vsel %vm456, %v453, %v416
    %v463 = vsel %vm456, %v454, %v419
    %v464 = vsel %vm456, %v455, %v422
    %vm465 = vcmask 23552
    %v466 = vsel %vm465, %v457, %v425
    %v467 = vsel %vm465, %v458, %v428
    %v468 = vsel %vm465, %v459, %v431
    %v469 = vsel %vm465, %v460, %v434
    %v470 = vsel %vm465, %v461, %v437
    %v471 = vsel %vm465, %v462, %v440
    %v472 = vsel %vm465, %v463, %v443
    %v473 = vsel %vm465, %v464, %v446
    %v474 = vld [vmem:[%s3] sm:$0xf]
    %vm475 = vcmask 523264
    %v477 = vsel %vm475, %v474, 0
    %479 = vmatpush.msra.mxu0 0.0
    %480 = vmatpush.msra.mxu0 0.0
    %481 = vmatpush.msra.mxu0 0.0
    %482 = vmatpush.msra.mxu0 0.0
    %483 = vmatpush.msra.mxu0 0.0
    %484 = vmatpush.msra.mxu0 0.0
    %485 = vmatpush.msra.mxu0 0.0
    %486 = vmatpush.msra.mxu0 0.0
    %487 = vmatpush.msra.mxu0 %v473
    %488 = vmatpush.msra.mxu0 %v472
    %489 = vmatpush.msra.mxu0 %v471
    %490 = vmatpush.msra.mxu0 %v470
    %491 = vmatpush.msra.mxu0 %v469
    %492 = vmatpush.msra.mxu0 %v468
    %493 = vmatpush.msra.mxu0 %v467
    %494 = vmatpush.msra.mxu0 %v466
    %495 = vmatmul.f32.gmra.mxu0 %v477
    %v496 = vpop.f32.mrf.mxu0
    %v497 = vadd.f32 0.0, %v496
    %498 = vdwg.mxu0
    %v499 = vmax.f32 %v497, 0.0
    %v500 = vld [vmem:[%s4] sm:$0xff]
    %v501 = vld [vmem:[%s4 + $0x8] sm:$0xff]
    %v502 = vld [vmem:[%s4 + $0x10] sm:$0xff]
    %v503 = vld [vmem:[%s4 + $0x18] sm:$0xff]
    %v504 = vld [vmem:[%s4 + $0x20] sm:$0xff]
    %v505 = vld [vmem:[%s4 + $0x28] sm:$0xff]
    %v506 = vld [vmem:[%s4 + $0x30] sm:$0xff]
    %v507 = vld [vmem:[%s4 + $0x38] sm:$0xff]
    %vm508 = vcmask 31744
    %v510 = vsel %vm508, %v500, 0
    %v513 = vsel %vm508, %v501, 0
    %v516 = vsel %vm508, %v502, 0
    %v519 = vsel %vm508, %v503, 0
    %v522 = vsel %vm508, %v504, 0
    %v525 = vsel %vm508, %v505, 0
    %v528 = vsel %vm508, %v506, 0
    %v531 = vsel %vm508, %v507, 0
    %vm533 = vcmask 1043456
    %v535 = vsel %vm533, %v499, 0
    %537 = vmatpush.msra.mxu0 0.0
    %538 = vmatpush.msra.mxu0 0.0
    %539 = vmatpush.msra.mxu0 0.0
    %540 = vmatpush.msra.mxu0 0.0
    %541 = vmatpush.msra.mxu0 0.0
    %542 = vmatpush.msra.mxu0 0.0
    %543 = vmatpush.msra.mxu0 0.0
    %544 = vmatpush.msra.mxu0 0.0
    %545 = vmatpush.msra.mxu0 0.0
    %546 = vmatpush.msra.mxu0 0.0
    %547 = vmatpush.msra.mxu0 0.0
    %548 = vmatpush.msra.mxu0 0.0
    %549 = vmatpush.msra.mxu0 0.0
    %550 = vmatpush.msra.mxu0 0.0
    %551 = vmatpush.msra.mxu0 0.0
    %552 = vmatpush.msra.mxu0 %v535
    %553 = vmatmul.f32.gmra.mxu0 %v510
    %v554 = vpop.f32.mrf.mxu0
    %v555 = vadd.f32 0.0, %v554
    %556 = vmatmul.f32.gmra.mxu0 %v513
    %v557 = vpop.f32.mrf.mxu0
    %v558 = vadd.f32 0.0, %v557
    %559 = vmatmul.f32.gmra.mxu0 %v516
    %v560 = vpop.f32.mrf.mxu0
    %v561 = vadd.f32 0.0, %v560
    %562 = vmatmul.f32.gmra.mxu0 %v519
    %v563 = vpop.f32.mrf.mxu0
    %v564 = vadd.f32 0.0, %v563
    %565 = vmatmul.f32.gmra.mxu0 %v522
    %v566 = vpop.f32.mrf.mxu0
    %v567 = vadd.f32 0.0, %v566
    %568 = vmatmul.f32.gmra.mxu0 %v525
    %v569 = vpop.f32.mrf.mxu0
    %v570 = vadd.f32 0.0, %v569
    %571 = vmatmul.f32.gmra.mxu0 %v528
    %v572 = vpop.f32.mrf.mxu0
    %v573 = vadd.f32 0.0, %v572
    %574 = vmatmul.f32.gmra.mxu0 %v531
    %v575 = vpop.f32.mrf.mxu0
    %v576 = vadd.f32 0.0, %v575
    %577 = vdwg.mxu0
    %586 = vrot.lane.b32.xlu0 %v555, 126
    %v587 = vpop.permute.xlu0 %586
    %588 = vrot.lane.b32.xlu0 %v558, 126
    %v589 = vpop.permute.xlu0 %588
    %590 = vrot.lane.b32.xlu0 %v561, 126
    %v591 = vpop.permute.xlu0 %590
    %592 = vrot.lane.b32.xlu0 %v564, 126
    %v593 = vpop.permute.xlu0 %592
    %594 = vrot.lane.b32.xlu0 %v567, 126
    %v595 = vpop.permute.xlu0 %594
    %596 = vrot.lane.b32.xlu0 %v570, 126
    %v597 = vpop.permute.xlu0 %596
    %598 = vrot.lane.b32.xlu0 %v573, 126
    %v599 = vpop.permute.xlu0 %598
    %600 = vrot.lane.b32.xlu0 %v576, 126
    %v601 = vpop.permute.xlu0 %600
    %v610 = vadd.f32 %v555, %v587
    %v611 = vadd.f32 %v558, %v589
    %v612 = vadd.f32 %v561, %v591
    %v613 = vadd.f32 %v564, %v593
    %v614 = vadd.f32 %v567, %v595
    %v615 = vadd.f32 %v570, %v597
    %v616 = vadd.f32 %v573, %v599
    %v617 = vadd.f32 %v576, %v601
    %v618 = vxor.u32 %v610, 2147483648
    %v619 = vxor.u32 %v611, 2147483648
    %v620 = vxor.u32 %v612, 2147483648
    %v621 = vxor.u32 %v613, 2147483648
    %v622 = vxor.u32 %v614, 2147483648
    %v623 = vxor.u32 %v615, 2147483648
    %v624 = vxor.u32 %v616, 2147483648
    %v625 = vxor.u32 %v617, 2147483648
    %v626 = vmul.f32 %v618, 1.442695
    %v627 = vpow.pop %v626
    %v628 = vmul.f32 %v619, 1.442695
    %v629 = vpow.pop %v628
    %v630 = vmul.f32 %v620, 1.442695
    %v631 = vpow.pop %v630
    %v632 = vmul.f32 %v621, 1.442695
    %v633 = vpow.pop %v632
    %v634 = vmul.f32 %v622, 1.442695
    %v635 = vpow.pop %v634
    %v636 = vmul.f32 %v623, 1.442695
    %v637 = vpow.pop %v636
    %v638 = vmul.f32 %v624, 1.442695
    %v639 = vpow.pop %v638
    %v640 = vmul.f32 %v625, 1.442695
    %v641 = vpow.pop %v640
    %v642 = vadd.f32 %v627, 1.0
    %v643 = vadd.f32 %v629, 1.0
    %v644 = vadd.f32 %v631, 1.0
    %v645 = vadd.f32 %v633, 1.0
    %v646 = vadd.f32 %v635, 1.0
    %v647 = vadd.f32 %v637, 1.0
    %v648 = vadd.f32 %v639, 1.0
    %v649 = vadd.f32 %v641, 1.0
    %v650 = vrcp.pop %v642
    %v651 = vmul.f32 %v642, %v650
    %v652 = vsub.f32 1.0, %v651
    %v653 = vmul.f32 %v650, %v652
    %v654 = vadd.f32 %v650, %v653
    %vm655 = vweird.f32 %v642
    %vm656 = vweird.f32 %v650
    %vm657 = vmor %vm655, %vm656
    %v658 = vsel %vm657, %v650, %v654
    %v659 = vand.u32 2147483647, %v642
    %vm660 = vcmp.eq.f32.partialorder %v659, 8.507059e+37
    %v661 = vand.u32 %v642, 2147483648
    %v662 = vor.u32 1.1754944e-38, %v661
    %v663 = vsel %vm660, %v662, %v658
    %v664 = vmul.f32 1.0, %v663
    %v665 = vrcp.pop %v643
    %v666 = vmul.f32 %v643, %v665
    %v667 = vsub.f32 1.0, %v666
    %v668 = vmul.f32 %v665, %v667
    %v669 = vadd.f32 %v665, %v668
    %vm670 = vweird.f32 %v643
    %vm671 = vweird.f32 %v665
    %vm672 = vmor %vm670, %vm671
    %v673 = vsel %vm672, %v665, %v669
    %v674 = vand.u32 2147483647, %v643
    %vm675 = vcmp.eq.f32.partialorder %v674, 8.507059e+37
    %v676 = vand.u32 %v643, 2147483648
    %v677 = vor.u32 1.1754944e-38, %v676
    %v678 = vsel %vm675, %v677, %v673
    %v679 = vmul.f32 1.0, %v678
    %v680 = vrcp.pop %v644
    %v681 = vmul.f32 %v644, %v680
    %v682 = vsub.f32 1.0, %v681
    %v683 = vmul.f32 %v680, %v682
    %v684 = vadd.f32 %v680, %v683
    %vm685 = vweird.f32 %v644
    %vm686 = vweird.f32 %v680
    %vm687 = vmor %vm685, %vm686
    %v688 = vsel %vm687, %v680, %v684
    %v689 = vand.u32 2147483647, %v644
    %vm690 = vcmp.eq.f32.partialorder %v689, 8.507059e+37
    %v691 = vand.u32 %v644, 2147483648
    %v692 = vor.u32 1.1754944e-38, %v691
    %v693 = vsel %vm690, %v692, %v688
    %v694 = vmul.f32 1.0, %v693
    %v695 = vrcp.pop %v645
    %v696 = vmul.f32 %v645, %v695
    %v697 = vsub.f32 1.0, %v696
    %v698 = vmul.f32 %v695, %v697
    %v699 = vadd.f32 %v695, %v698
    %vm700 = vweird.f32 %v645
    %vm701 = vweird.f32 %v695
    %vm702 = vmor %vm700, %vm701
    %v703 = vsel %vm702, %v695, %v699
    %v704 = vand.u32 2147483647, %v645
    %vm705 = vcmp.eq.f32.partialorder %v704, 8.507059e+37
    %v706 = vand.u32 %v645, 2147483648
    %v707 = vor.u32 1.1754944e-38, %v706
    %v708 = vsel %vm705, %v707, %v703
    %v709 = vmul.f32 1.0, %v708
    %v710 = vrcp.pop %v646
    %v711 = vmul.f32 %v646, %v710
    %v712 = vsub.f32 1.0, %v711
    %v713 = vmul.f32 %v710, %v712
    %v714 = vadd.f32 %v710, %v713
    %vm715 = vweird.f32 %v646
    %vm716 = vweird.f32 %v710
    %vm717 = vmor %vm715, %vm716
    %v718 = vsel %vm717, %v710, %v714
    %v719 = vand.u32 2147483647, %v646
    %vm720 = vcmp.eq.f32.partialorder %v719, 8.507059e+37
    %v721 = vand.u32 %v646, 2147483648
    %v722 = vor.u32 1.1754944e-38, %v721
    %v723 = vsel %vm720, %v722, %v718
    %v724 = vmul.f32 1.0, %v723
    %v725 = vrcp.pop %v647
    %v726 = vmul.f32 %v647, %v725
    %v727 = vsub.f32 1.0, %v726
    %v728 = vmul.f32 %v725, %v727
    %v729 = vadd.f32 %v725, %v728
    %vm730 = vweird.f32 %v647
    %vm731 = vweird.f32 %v725
    %vm732 = vmor %vm730, %vm731
    %v733 = vsel %vm732, %v725, %v729
    %v734 = vand.u32 2147483647, %v647
    %vm735 = vcmp.eq.f32.partialorder %v734, 8.507059e+37
    %v736 = vand.u32 %v647, 2147483648
    %v737 = vor.u32 1.1754944e-38, %v736
    %v738 = vsel %vm735, %v737, %v733
    %v739 = vmul.f32 1.0, %v738
    %v740 = vrcp.pop %v648
    %v741 = vmul.f32 %v648, %v740
    %v742 = vsub.f32 1.0, %v741
    %v743 = vmul.f32 %v740, %v742
    %v744 = vadd.f32 %v740, %v743
    %vm745 = vweird.f32 %v648
    %vm746 = vweird.f32 %v740
    %vm747 = vmor %vm745, %vm746
    %v748 = vsel %vm747, %v740, %v744
    %v749 = vand.u32 2147483647, %v648
    %vm750 = vcmp.eq.f32.partialorder %v749, 8.507059e+37
    %v751 = vand.u32 %v648, 2147483648
    %v752 = vor.u32 1.1754944e-38, %v751
    %v753 = vsel %vm750, %v752, %v748
    %v754 = vmul.f32 1.0, %v753
    %v755 = vrcp.pop %v649
    %v756 = vmul.f32 %v649, %v755
    %v757 = vsub.f32 1.0, %v756
    %v758 = vmul.f32 %v755, %v757
    %v759 = vadd.f32 %v755, %v758
    %vm760 = vweird.f32 %v649
    %vm761 = vweird.f32 %v755
    %vm762 = vmor %vm760, %vm761
    %v763 = vsel %vm762, %v755, %v759
    %v764 = vand.u32 2147483647, %v649
    %vm765 = vcmp.eq.f32.partialorder %v764, 8.507059e+37
    %v766 = vand.u32 %v649, 2147483648
    %v767 = vor.u32 1.1754944e-38, %v766
    %v768 = vsel %vm765, %v767, %v763
    %v769 = vmul.f32 1.0, %v768
    %v770 = vld [vmem:[#allocation7] sm:$0xff]
    %v771 = vld [vmem:[#allocation7 + $0x8] sm:$0xff]
    %v772 = vld [vmem:[#allocation7 + $0x10] sm:$0xff]
    %v773 = vld [vmem:[#allocation7 + $0x18] sm:$0xff]
    %v774 = vld [vmem:[#allocation7 + $0x20] sm:$0xff]
    %v775 = vld [vmem:[#allocation7 + $0x28] sm:$0xff]
    %v776 = vld [vmem:[#allocation7 + $0x30] sm:$0xff]
    %v777 = vld [vmem:[#allocation7 + $0x38] sm:$0xff]
    %v778 = vld [vmem:[#allocation7 + $0x40] sm:$0xff]
    %v779 = vld [vmem:[#allocation7 + $0x48] sm:$0xff]
    %v780 = vld [vmem:[#allocation7 + $0x50] sm:$0xff]
    %v781 = vld [vmem:[#allocation7 + $0x58] sm:$0xff]
    %v782 = vld [vmem:[#allocation7 + $0x60] sm:$0xff]
    %v783 = vld [vmem:[#allocation7 + $0x68] sm:$0xff]
    %v784 = vld [vmem:[#allocation7 + $0x70] sm:$0xff]
    %v785 = vld [vmem:[#allocation7 + $0x78] sm:$0xff]
    %787 = vset.pattern.permute.xlu0 0
    %788 = vperm.xlu0 %787, %v664
    %v789 = vpop.permute.xlu0 %788
    %792 = vset.pattern.permute.xlu0 0
    %793 = vperm.xlu0 %792, %v679
    %v794 = vpop.permute.xlu0 %793
    %797 = vset.pattern.permute.xlu0 0
    %798 = vperm.xlu0 %797, %v694
    %v799 = vpop.permute.xlu0 %798
    %802 = vset.pattern.permute.xlu0 0
    %803 = vperm.xlu0 %802, %v709
    %v804 = vpop.permute.xlu0 %803
    %807 = vset.pattern.permute.xlu0 0
    %808 = vperm.xlu0 %807, %v724
    %v809 = vpop.permute.xlu0 %808
    %812 = vset.pattern.permute.xlu0 0
    %813 = vperm.xlu0 %812, %v739
    %v814 = vpop.permute.xlu0 %813
    %817 = vset.pattern.permute.xlu0 0
    %818 = vperm.xlu0 %817, %v754
    %v819 = vpop.permute.xlu0 %818
    %822 = vset.pattern.permute.xlu0 0
    %823 = vperm.xlu0 %822, %v769
    %v824 = vpop.permute.xlu0 %823
    %v826 = vmul.f32 %v789, %v770
    %v827 = vmul.f32 %v789, %v771
    %v828 = vmul.f32 %v794, %v772
    %v829 = vmul.f32 %v794, %v773
    %v830 = vmul.f32 %v799, %v774
    %v831 = vmul.f32 %v799, %v775
    %v832 = vmul.f32 %v804, %v776
    %v833 = vmul.f32 %v804, %v777
    %v834 = vmul.f32 %v809, %v778
    %v835 = vmul.f32 %v809, %v779
    %v836 = vmul.f32 %v814, %v780
    %v837 = vmul.f32 %v814, %v781
    %v838 = vmul.f32 %v819, %v782
    %v839 = vmul.f32 %v819, %v783
    %v840 = vmul.f32 %v824, %v784
    %v841 = vmul.f32 %v824, %v785
    %v842 = vadd.f32 %v826, %v828
    %v843 = vadd.f32 %v842, %v830
    %v844 = vadd.f32 %v843, %v832
    %v845 = vadd.f32 %v844, %v834
    %v846 = vadd.f32 %v845, %v836
    %v847 = vadd.f32 %v846, %v838
    %v848 = vadd.f32 %v847, %v840
    %v849 = vrot.slane %v848, 4
    %v850 = vadd.f32 %v848, %v849
    %v851 = vrot.slane %v850, 2
    %v852 = vadd.f32 %v850, %v851
    %v853 = vrot.slane %v852, 1
    %v854 = vadd.f32 %v852, %v853
    %v855 = vadd.f32 %v827, %v829
    %v856 = vadd.f32 %v855, %v831
    %v857 = vadd.f32 %v856, %v833
    %v858 = vadd.f32 %v857, %v835
    %v859 = vadd.f32 %v858, %v837
    %v860 = vadd.f32 %v859, %v839
    %v861 = vadd.f32 %v860, %v841
    %v862 = vrot.slane %v861, 4
    %v863 = vadd.f32 %v861, %v862
    %v864 = vrot.slane %v863, 2
    %v865 = vadd.f32 %v863, %v864
    %v866 = vrot.slane %v865, 1
    %v867 = vadd.f32 %v865, %v866
    %v868 = vrcp.pop 64.0
    %v869 = vmul.f32 64.0, %v868
    %v870 = vsub.f32 1.0, %v869
    %v871 = vmul.f32 %v868, %v870
    %v872 = vadd.f32 %v868, %v871
    %vm873 = vweird.f32 %v868
    %v874 = vsel %vm873, %v868, %v872
    %v875 = vmul.f32 %v854, %v874
    %v876 = vmul.f32 %v867, %v874
    %v877 = vmax.f32 %v826, %v830
    %v878 = vmax.f32 %v828, %v832
    %v879 = vmax.f32 %v877, %v834
    %v880 = vmax.f32 %v878, %v836
    %v881 = vmax.f32 %v879, %v838
    %v882 = vmax.f32 %v880, %v840
    %v883 = vmax.f32 %v881, %v882
    %v884 = vrot.slane %v883, 4
    %v885 = vmax.f32 %v883, %v884
    %v886 = vrot.slane %v885, 2
    %v887 = vmax.f32 %v885, %v886
    %v888 = vrot.slane %v887, 1
    %v889 = vmax.f32 %v887, %v888
    %v890 = vmax.f32 %v827, %v831
    %v891 = vmax.f32 %v829, %v833
    %v892 = vmax.f32 %v890, %v835
    %v893 = vmax.f32 %v891, %v837
    %v894 = vmax.f32 %v892, %v839
    %v895 = vmax.f32 %v893, %v841
    %v896 = vmax.f32 %v894, %v895
    %v897 = vrot.slane %v896, 4
    %v898 = vmax.f32 %v896, %v897
    %v899 = vrot.slane %v898, 2
    %v900 = vmax.f32 %v898, %v899
    %v901 = vrot.slane %v900, 1
    %v902 = vmax.f32 %v900, %v901
    %s903 = scalar_lea.vmem [#allocation7], 128
    %v904 = vld [vmem:[%s903] sm:$0xff]
    %v905 = vld [vmem:[%s903 + $0x8] sm:$0xff]
    %v906 = vld [vmem:[%s903 + $0x10] sm:$0xff]
    %v907 = vld [vmem:[%s903 + $0x18] sm:$0xff]
    %v908 = vld [vmem:[%s903 + $0x20] sm:$0xff]
    %v909 = vld [vmem:[%s903 + $0x28] sm:$0xff]
    %v910 = vld [vmem:[%s903 + $0x30] sm:$0xff]
    %v911 = vld [vmem:[%s903 + $0x38] sm:$0xff]
    %v912 = vld [vmem:[%s903 + $0x40] sm:$0xff]
    %v913 = vld [vmem:[%s903 + $0x48] sm:$0xff]
    %v914 = vld [vmem:[%s903 + $0x50] sm:$0xff]
    %v915 = vld [vmem:[%s903 + $0x58] sm:$0xff]
    %v916 = vld [vmem:[%s903 + $0x60] sm:$0xff]
    %v917 = vld [vmem:[%s903 + $0x68] sm:$0xff]
    %v918 = vld [vmem:[%s903 + $0x70] sm:$0xff]
    %v919 = vld [vmem:[%s903 + $0x78] sm:$0xff]
    %920 = vset.pattern.permute.xlu0 1
    %921 = vperm.xlu0 %920, %v664
    %v922 = vpop.permute.xlu0 %921
    %924 = vset.pattern.permute.xlu0 1
    %925 = vperm.xlu0 %924, %v679
    %v926 = vpop.permute.xlu0 %925
    %928 = vset.pattern.permute.xlu0 1
    %929 = vperm.xlu0 %928, %v694
    %v930 = vpop.permute.xlu0 %929
    %932 = vset.pattern.permute.xlu0 1
    %933 = vperm.xlu0 %932, %v709
    %v934 = vpop.permute.xlu0 %933
    %936 = vset.pattern.permute.xlu0 1
    %937 = vperm.xlu0 %936, %v724
    %v938 = vpop.permute.xlu0 %937
    %940 = vset.pattern.permute.xlu0 1
    %941 = vperm.xlu0 %940, %v739
    %v942 = vpop.permute.xlu0 %941
    %944 = vset.pattern.permute.xlu0 1
    %945 = vperm.xlu0 %944, %v754
    %v946 = vpop.permute.xlu0 %945
    %948 = vset.pattern.permute.xlu0 1
    %949 = vperm.xlu0 %948, %v769
    %v950 = vpop.permute.xlu0 %949
    %v952 = vmul.f32 %v922, %v904
    %v953 = vmul.f32 %v922, %v905
    %v954 = vmul.f32 %v926, %v906
    %v955 = vmul.f32 %v926, %v907
    %v956 = vmul.f32 %v930, %v908
    %v957 = vmul.f32 %v930, %v909
    %v958 = vmul.f32 %v934, %v910
    %v959 = vmul.f32 %v934, %v911
    %v960 = vmul.f32 %v938, %v912
    %v961 = vmul.f32 %v938, %v913
    %v962 = vmul.f32 %v942, %v914
    %v963 = vmul.f32 %v942, %v915
    %v964 = vmul.f32 %v946, %v916
    %v965 = vmul.f32 %v946, %v917
    %v966 = vmul.f32 %v950, %v918
    %v967 = vmul.f32 %v950, %v919
    %v968 = vadd.f32 %v952, %v954
    %v969 = vadd.f32 %v968, %v956
    %v970 = vadd.f32 %v969, %v958
    %v971 = vadd.f32 %v970, %v960
    %v972 = vadd.f32 %v971, %v962
    %v973 = vadd.f32 %v972, %v964
    %v974 = vadd.f32 %v973, %v966
    %v975 = vrot.slane %v974, 4
    %v976 = vadd.f32 %v974, %v975
    %v977 = vrot.slane %v976, 2
    %v978 = vadd.f32 %v976, %v977
    %v979 = vrot.slane %v978, 1
    %v980 = vadd.f32 %v978, %v979
    %v981 = vadd.f32 %v953, %v955
    %v982 = vadd.f32 %v981, %v957
    %v983 = vadd.f32 %v982, %v959
    %v984 = vadd.f32 %v983, %v961
    %v985 = vadd.f32 %v984, %v963
    %v986 = vadd.f32 %v985, %v965
    %v987 = vadd.f32 %v986, %v967
    %v988 = vrot.slane %v987, 4
    %v989 = vadd.f32 %v987, %v988
    %v990 = vrot.slane %v989, 2
    %v991 = vadd.f32 %v989, %v990
    %v992 = vrot.slane %v991, 1
    %v993 = vadd.f32 %v991, %v992
    %v994 = vmul.f32 %v980, %v874
    %v995 = vmul.f32 %v993, %v874
    %v996 = vmax.f32 %v952, %v956
    %v997 = vmax.f32 %v954, %v958
    %v998 = vmax.f32 %v996, %v960
    %v999 = vmax.f32 %v997, %v962
    %v1000 = vmax.f32 %v998, %v964
    %v1001 = vmax.f32 %v999, %v966
    %v1002 = vmax.f32 %v1000, %v1001
    %v1003 = vrot.slane %v1002, 4
    %v1004 = vmax.f32 %v1002, %v1003
    %v1005 = vrot.slane %v1004, 2
    %v1006 = vmax.f32 %v1004, %v1005
    %v1007 = vrot.slane %v1006, 1
    %v1008 = vmax.f32 %v1006, %v1007
    %v1009 = vmax.f32 %v953, %v957
    %v1010 = vmax.f32 %v955, %v959
    %v1011 = vmax.f32 %v1009, %v961
    %v1012 = vmax.f32 %v1010, %v963
    %v1013 = vmax.f32 %v1011, %v965
    %v1014 = vmax.f32 %v1012, %v967
    %v1015 = vmax.f32 %v1013, %v1014
    %v1016 = vrot.slane %v1015, 4
    %v1017 = vmax.f32 %v1015, %v1016
    %v1018 = vrot.slane %v1017, 2
    %v1019 = vmax.f32 %v1017, %v1018
    %v1020 = vrot.slane %v1019, 1
    %v1021 = vmax.f32 %v1019, %v1020
    %vm1022 = vcmask 1040384
    %v1023 = vsel %vm1022, %v875, %v994
    %v1024 = vsel %vm1022, %v876, %v995
    %v1025 = vsel %vm1022, %v889, %v1008
    %v1026 = vsel %vm1022, %v902, %v1021
    %1027 = vrot.lane.b32.xlu0 %v1023, 3
    %v1028 = vpop.permute.xlu0 %1027
    %1029 = vrot.lane.b32.xlu0 %v1024, 3
    %v1030 = vpop.permute.xlu0 %1029
    %vm1031 = vcmp.lt.s32.totalorder %v165, 3
    %v1032 = vsel %vm1031, %v1028, %v1030
    %v1033 = vsel %vm1031, %v1030, %v1028
    %1034 = vrot.lane.b32.xlu0 %v1025, 3
    %v1035 = vpop.permute.xlu0 %1034
    %1036 = vrot.lane.b32.xlu0 %v1026, 3
    %v1037 = vpop.permute.xlu0 %1036
    %v1038 = vsel %vm1031, %v1035, %v1037
    %v1039 = vsel %vm1031, %v1037, %v1035
    %v1040 = vmul.f32 %v1033, %v199
    %v1041 = vmul.f32 %v1032, %v200
    %v1042 = vmul.f32 %v1039, %v199
    %v1043 = vmul.f32 %v1038, %v200
    %1044 = vrot.lane.b32.xlu0 %v1040, 48
    %v1045 = vpop.permute.xlu0 %1044
    %1046 = vrot.lane.b32.xlu0 %v1041, 48
    %v1047 = vpop.permute.xlu0 %1046
    %vm1048 = vcmp.lt.s32.totalorder %v165, 48
    %v1049 = vsel %vm1048, %v1045, %v1047
    %v1050 = vsel %vm1048, %v1047, %v1045
    %1051 = vrot.lane.b32.xlu0 %v1042, 48
    %v1052 = vpop.permute.xlu0 %1051
    %1053 = vrot.lane.b32.xlu0 %v1043, 48
    %v1054 = vpop.permute.xlu0 %1053
    %v1055 = vsel %vm1048, %v1052, %v1054
    %v1056 = vsel %vm1048, %v1054, %v1052
    %v1057 = vstv %s66
    %v1058 = vmul.f32 %v1057, %v1050
    %v1059 = vmul.f32 %v1057, %v1049
    %v1060 = vstv %s115
    %v1061 = vmul.f32 %v1060, %v1056
    %v1062 = vmul.f32 %v1060, %v1055
    %v1063 = vadd.f32 %v1058, %v1061
    %v1064 = vadd.f32 %v1059, %v1062
    %v1065 = vmul.f32 %v1063, %v209
    %v1066 = vmul.f32 %v1064, %v210
    %v1067 = vadd.f32 %v1065, 0.0
    %v1068 = vadd.f32 %v1066, 0.0
    %1069 = vrot.lane.b32.xlu0 %v1040, 32
    %v1070 = vpop.permute.xlu0 %1069
    %1071 = vrot.lane.b32.xlu0 %v1041, 32
    %v1072 = vpop.permute.xlu0 %1071
    %vm1073 = vcmp.lt.s32.totalorder %v165, 32
    %v1074 = vsel %vm1073, %v1070, %v1072
    %v1075 = vsel %vm1073, %v1072, %v1070
    %1076 = vrot.lane.b32.xlu0 %v1042, 32
    %v1077 = vpop.permute.xlu0 %1076
    %1078 = vrot.lane.b32.xlu0 %v1043, 32
    %v1079 = vpop.permute.xlu0 %1078
    %v1080 = vsel %vm1073, %v1077, %v1079
    %v1081 = vsel %vm1073, %v1079, %v1077
    %v1082 = vstv %s73
    %v1083 = vmul.f32 %v1082, %v1075
    %v1084 = vmul.f32 %v1082, %v1074
    %v1085 = vstv %s122
    %v1086 = vmul.f32 %v1085, %v1081
    %v1087 = vmul.f32 %v1085, %v1080
    %v1088 = vadd.f32 %v1083, %v1086
    %v1089 = vadd.f32 %v1084, %v1087
    %v1090 = vmul.f32 %v1088, %v225
    %v1091 = vmul.f32 %v1089, %v226
    %v1092 = vadd.f32 %v1067, %v1090
    %v1093 = vadd.f32 %v1068, %v1091
    %1094 = vrot.lane.b32.xlu0 %v1040, 16
    %v1095 = vpop.permute.xlu0 %1094
    %1096 = vrot.lane.b32.xlu0 %v1041, 16
    %v1097 = vpop.permute.xlu0 %1096
    %vm1098 = vcmp.lt.s32.totalorder %v165, 16
    %v1099 = vsel %vm1098, %v1095, %v1097
    %v1100 = vsel %vm1098, %v1097, %v1095
    %1101 = vrot.lane.b32.xlu0 %v1042, 16
    %v1102 = vpop.permute.xlu0 %1101
    %1103 = vrot.lane.b32.xlu0 %v1043, 16
    %v1104 = vpop.permute.xlu0 %1103
    %v1105 = vsel %vm1098, %v1102, %v1104
    %v1106 = vsel %vm1098, %v1104, %v1102
    %v1107 = vstv %s80
    %v1108 = vmul.f32 %v1107, %v1100
    %v1109 = vmul.f32 %v1107, %v1099
    %v1110 = vstv %s129
    %v1111 = vmul.f32 %v1110, %v1106
    %v1112 = vmul.f32 %v1110, %v1105
    %v1113 = vadd.f32 %v1108, %v1111
    %v1114 = vadd.f32 %v1109, %v1112
    %v1115 = vmul.f32 %v1113, %v241
    %v1116 = vmul.f32 %v1114, %v242
    %v1117 = vadd.f32 %v1092, %v1115
    %v1118 = vadd.f32 %v1093, %v1116
    %v1119 = vstv %s87
    %v1120 = vmul.f32 %v1119, %v1040
    %v1121 = vmul.f32 %v1119, %v1041
    %v1122 = vstv %s136
    %v1123 = vmul.f32 %v1122, %v1042
    %v1124 = vmul.f32 %v1122, %v1043
    %v1125 = vadd.f32 %v1120, %v1123
    %v1126 = vadd.f32 %v1121, %v1124
    %v1127 = vadd.f32 %v1117, %v1125
    %v1128 = vadd.f32 %v1118, %v1126
    %1129 = vrot.lane.b32.xlu0 %v1040, 112
    %v1130 = vpop.permute.xlu0 %1129
    %1131 = vrot.lane.b32.xlu0 %v1041, 112
    %v1132 = vpop.permute.xlu0 %1131
    %vm1133 = vcmp.lt.s32.totalorder %v165, 112
    %v1134 = vsel %vm1133, %v1130, %v1132
    %v1135 = vsel %vm1133, %v1132, %v1130
    %1136 = vrot.lane.b32.xlu0 %v1042, 112
    %v1137 = vpop.permute.xlu0 %1136
    %1138 = vrot.lane.b32.xlu0 %v1043, 112
    %v1139 = vpop.permute.xlu0 %1138
    %v1140 = vsel %vm1133, %v1137, %v1139
    %v1141 = vsel %vm1133, %v1139, %v1137
    %v1142 = vstv %s94
    %v1143 = vmul.f32 %v1142, %v1134
    %v1144 = vmul.f32 %v1142, %v1135
    %v1145 = vstv %s143
    %v1146 = vmul.f32 %v1145, %v1140
    %v1147 = vmul.f32 %v1145, %v1141
    %v1148 = vadd.f32 %v1143, %v1146
    %v1149 = vadd.f32 %v1144, %v1147
    %v1150 = vmul.f32 %v1148, %v261
    %v1151 = vmul.f32 %v1149, %v262
    %v1152 = vadd.f32 %v1127, %v1150
    %v1153 = vadd.f32 %v1128, %v1151
    %1154 = vrot.lane.b32.xlu0 %v1040, 96
    %v1155 = vpop.permute.xlu0 %1154
    %1156 = vrot.lane.b32.xlu0 %v1041, 96
    %v1157 = vpop.permute.xlu0 %1156
    %vm1158 = vcmp.lt.s32.totalorder %v165, 96
    %v1159 = vsel %vm1158, %v1155, %v1157
    %v1160 = vsel %vm1158, %v1157, %v1155
    %1161 = vrot.lane.b32.xlu0 %v1042, 96
    %v1162 = vpop.permute.xlu0 %1161
    %1163 = vrot.lane.b32.xlu0 %v1043, 96
    %v1164 = vpop.permute.xlu0 %1163
    %v1165 = vsel %vm1158, %v1162, %v1164
    %v1166 = vsel %vm1158, %v1164, %v1162
    %v1167 = vstv %s101
    %v1168 = vmul.f32 %v1167, %v1159
    %v1169 = vmul.f32 %v1167, %v1160
    %v1170 = vstv %s150
    %v1171 = vmul.f32 %v1170, %v1165
    %v1172 = vmul.f32 %v1170, %v1166
    %v1173 = vadd.f32 %v1168, %v1171
    %v1174 = vadd.f32 %v1169, %v1172
    %v1175 = vmul.f32 %v1173, %v277
    %v1176 = vmul.f32 %v1174, %v278
    %v1177 = vadd.f32 %v1152, %v1175
    %v1178 = vadd.f32 %v1153, %v1176
    %1179 = vrot.lane.b32.xlu0 %v1040, 80
    %v1180 = vpop.permute.xlu0 %1179
    %1181 = vrot.lane.b32.xlu0 %v1041, 80
    %v1182 = vpop.permute.xlu0 %1181
    %vm1183 = vcmp.lt.s32.totalorder %v165, 80
    %v1184 = vsel %vm1183, %v1180, %v1182
    %v1185 = vsel %vm1183, %v1182, %v1180
    %1186 = vrot.lane.b32.xlu0 %v1042, 80
    %v1187 = vpop.permute.xlu0 %1186
    %1188 = vrot.lane.b32.xlu0 %v1043, 80
    %v1189 = vpop.permute.xlu0 %1188
    %v1190 = vsel %vm1183, %v1187, %v1189
    %v1191 = vsel %vm1183, %v1189, %v1187
    %v1192 = vstv %s108
    %v1193 = vmul.f32 %v1192, %v1184
    %v1194 = vmul.f32 %v1192, %v1185
    %v1195 = vstv %s157
    %v1196 = vmul.f32 %v1195, %v1190
    %v1197 = vmul.f32 %v1195, %v1191
    %v1198 = vadd.f32 %v1193, %v1196
    %v1199 = vadd.f32 %v1194, %v1197
    %v1200 = vmul.f32 %v1198, %v293
    %v1201 = vmul.f32 %v1199, %v294
    %v1202 = vadd.f32 %v1177, %v1200
    %v1203 = vadd.f32 %v1178, %v1201
    %1204 = vrot.lane.b32.xlu0 %v1023, 2
    %v1205 = vpop.permute.xlu0 %1204
    %1206 = vrot.lane.b32.xlu0 %v1024, 2
    %v1207 = vpop.permute.xlu0 %1206
    %vm1208 = vcmp.lt.s32.totalorder %v165, 2
    %v1209 = vsel %vm1208, %v1205, %v1207
    %v1210 = vsel %vm1208, %v1207, %v1205
    %1211 = vrot.lane.b32.xlu0 %v1025, 2
    %v1212 = vpop.permute.xlu0 %1211
    %1213 = vrot.lane.b32.xlu0 %v1026, 2
    %v1214 = vpop.permute.xlu0 %1213
    %v1215 = vsel %vm1208, %v1212, %v1214
    %v1216 = vsel %vm1208, %v1214, %v1212
    %v1217 = vmul.f32 %v1210, %v217
    %v1218 = vmul.f32 %v1209, %v218
    %v1219 = vmul.f32 %v1216, %v217
    %v1220 = vmul.f32 %v1215, %v218
    %1221 = vrot.lane.b32.xlu0 %v1217, 48
    %v1222 = vpop.permute.xlu0 %1221
    %1223 = vrot.lane.b32.xlu0 %v1218, 48
    %v1224 = vpop.permute.xlu0 %1223
    %v1225 = vsel %vm1048, %v1222, %v1224
    %v1226 = vsel %vm1048, %v1224, %v1222
    %1227 = vrot.lane.b32.xlu0 %v1219, 48
    %v1228 = vpop.permute.xlu0 %1227
    %1229 = vrot.lane.b32.xlu0 %v1220, 48
    %v1230 = vpop.permute.xlu0 %1229
    %v1231 = vsel %vm1048, %v1228, %v1230
    %v1232 = vsel %vm1048, %v1230, %v1228
    %v1233 = vstv %s67
    %v1234 = vmul.f32 %v1233, %v1226
    %v1235 = vmul.f32 %v1233, %v1225
    %v1236 = vstv %s116
    %v1237 = vmul.f32 %v1236, %v1232
    %v1238 = vmul.f32 %v1236, %v1231
    %v1239 = vadd.f32 %v1234, %v1237
    %v1240 = vadd.f32 %v1235, %v1238
    %v1241 = vmul.f32 %v1239, %v209
    %v1242 = vmul.f32 %v1240, %v210
    %v1243 = vadd.f32 %v1202, %v1241
    %v1244 = vadd.f32 %v1203, %v1242
    %1245 = vrot.lane.b32.xlu0 %v1217, 32
    %v1246 = vpop.permute.xlu0 %1245
    %1247 = vrot.lane.b32.xlu0 %v1218, 32
    %v1248 = vpop.permute.xlu0 %1247
    %v1249 = vsel %vm1073, %v1246, %v1248
    %v1250 = vsel %vm1073, %v1248, %v1246
    %1251 = vrot.lane.b32.xlu0 %v1219, 32
    %v1252 = vpop.permute.xlu0 %1251
    %1253 = vrot.lane.b32.xlu0 %v1220, 32
    %v1254 = vpop.permute.xlu0 %1253
    %v1255 = vsel %vm1073, %v1252, %v1254
    %v1256 = vsel %vm1073, %v1254, %v1252
    %v1257 = vstv %s74
    %v1258 = vmul.f32 %v1257, %v1250
    %v1259 = vmul.f32 %v1257, %v1249
    %v1260 = vstv %s123
    %v1261 = vmul.f32 %v1260, %v1256
    %v1262 = vmul.f32 %v1260, %v1255
    %v1263 = vadd.f32 %v1258, %v1261
    %v1264 = vadd.f32 %v1259, %v1262
    %v1265 = vmul.f32 %v1263, %v225
    %v1266 = vmul.f32 %v1264, %v226
    %v1267 = vadd.f32 %v1243, %v1265
    %v1268 = vadd.f32 %v1244, %v1266
    %1269 = vrot.lane.b32.xlu0 %v1217, 16
    %v1270 = vpop.permute.xlu0 %1269
    %1271 = vrot.lane.b32.xlu0 %v1218, 16
    %v1272 = vpop.permute.xlu0 %1271
    %v1273 = vsel %vm1098, %v1270, %v1272
    %v1274 = vsel %vm1098, %v1272, %v1270
    %1275 = vrot.lane.b32.xlu0 %v1219, 16
    %v1276 = vpop.permute.xlu0 %1275
    %1277 = vrot.lane.b32.xlu0 %v1220, 16
    %v1278 = vpop.permute.xlu0 %1277
    %v1279 = vsel %vm1098, %v1276, %v1278
    %v1280 = vsel %vm1098, %v1278, %v1276
    %v1281 = vstv %s81
    %v1282 = vmul.f32 %v1281, %v1274
    %v1283 = vmul.f32 %v1281, %v1273
    %v1284 = vstv %s130
    %v1285 = vmul.f32 %v1284, %v1280
    %v1286 = vmul.f32 %v1284, %v1279
    %v1287 = vadd.f32 %v1282, %v1285
    %v1288 = vadd.f32 %v1283, %v1286
    %v1289 = vmul.f32 %v1287, %v241
    %v1290 = vmul.f32 %v1288, %v242
    %v1291 = vadd.f32 %v1267, %v1289
    %v1292 = vadd.f32 %v1268, %v1290
    %v1293 = vstv %s88
    %v1294 = vmul.f32 %v1293, %v1217
    %v1295 = vmul.f32 %v1293, %v1218
    %v1296 = vstv %s137
    %v1297 = vmul.f32 %v1296, %v1219
    %v1298 = vmul.f32 %v1296, %v1220
    %v1299 = vadd.f32 %v1294, %v1297
    %v1300 = vadd.f32 %v1295, %v1298
    %v1301 = vadd.f32 %v1291, %v1299
    %v1302 = vadd.f32 %v1292, %v1300
    %1303 = vrot.lane.b32.xlu0 %v1217, 112
    %v1304 = vpop.permute.xlu0 %1303
    %1305 = vrot.lane.b32.xlu0 %v1218, 112
    %v1306 = vpop.permute.xlu0 %1305
    %v1307 = vsel %vm1133, %v1304, %v1306
    %v1308 = vsel %vm1133, %v1306, %v1304
    %1309 = vrot.lane.b32.xlu0 %v1219, 112
    %v1310 = vpop.permute.xlu0 %1309
    %1311 = vrot.lane.b32.xlu0 %v1220, 112
    %v1312 = vpop.permute.xlu0 %1311
    %v1313 = vsel %vm1133, %v1310, %v1312
    %v1314 = vsel %vm1133, %v1312, %v1310
    %v1315 = vstv %s95
    %v1316 = vmul.f32 %v1315, %v1307
    %v1317 = vmul.f32 %v1315, %v1308
    %v1318 = vstv %s144
    %v1319 = vmul.f32 %v1318, %v1313
    %v1320 = vmul.f32 %v1318, %v1314
    %v1321 = vadd.f32 %v1316, %v1319
    %v1322 = vadd.f32 %v1317, %v1320
    %v1323 = vmul.f32 %v1321, %v261
    %v1324 = vmul.f32 %v1322, %v262
    %v1325 = vadd.f32 %v1301, %v1323
    %v1326 = vadd.f32 %v1302, %v1324
    %1327 = vrot.lane.b32.xlu0 %v1217, 96
    %v1328 = vpop.permute.xlu0 %1327
    %1329 = vrot.lane.b32.xlu0 %v1218, 96
    %v1330 = vpop.permute.xlu0 %1329
    %v1331 = vsel %vm1158, %v1328, %v1330
    %v1332 = vsel %vm1158, %v1330, %v1328
    %1333 = vrot.lane.b32.xlu0 %v1219, 96
    %v1334 = vpop.permute.xlu0 %1333
    %1335 = vrot.lane.b32.xlu0 %v1220, 96
    %v1336 = vpop.permute.xlu0 %1335
    %v1337 = vsel %vm1158, %v1334, %v1336
    %v1338 = vsel %vm1158, %v1336, %v1334
    %v1339 = vstv %s102
    %v1340 = vmul.f32 %v1339, %v1331
    %v1341 = vmul.f32 %v1339, %v1332
    %v1342 = vstv %s151
    %v1343 = vmul.f32 %v1342, %v1337
    %v1344 = vmul.f32 %v1342, %v1338
    %v1345 = vadd.f32 %v1340, %v1343
    %v1346 = vadd.f32 %v1341, %v1344
    %v1347 = vmul.f32 %v1345, %v277
    %v1348 = vmul.f32 %v1346, %v278
    %v1349 = vadd.f32 %v1325, %v1347
    %v1350 = vadd.f32 %v1326, %v1348
    %1351 = vrot.lane.b32.xlu0 %v1217, 80
    %v1352 = vpop.permute.xlu0 %1351
    %1353 = vrot.lane.b32.xlu0 %v1218, 80
    %v1354 = vpop.permute.xlu0 %1353
    %v1355 = vsel %vm1183, %v1352, %v1354
    %v1356 = vsel %vm1183, %v1354, %v1352
    %1357 = vrot.lane.b32.xlu0 %v1219, 80
    %v1358 = vpop.permute.xlu0 %1357
    %1359 = vrot.lane.b32.xlu0 %v1220, 80
    %v1360 = vpop.permute.xlu0 %1359
    %v1361 = vsel %vm1183, %v1358, %v1360
    %v1362 = vsel %vm1183, %v1360, %v1358
    %v1363 = vstv %s109
    %v1364 = vmul.f32 %v1363, %v1355
    %v1365 = vmul.f32 %v1363, %v1356
    %v1366 = vstv %s158
    %v1367 = vmul.f32 %v1366, %v1361
    %v1368 = vmul.f32 %v1366, %v1362
    %v1369 = vadd.f32 %v1364, %v1367
    %v1370 = vadd.f32 %v1365, %v1368
    %v1371 = vmul.f32 %v1369, %v293
    %v1372 = vmul.f32 %v1370, %v294
    %v1373 = vadd.f32 %v1349, %v1371
    %v1374 = vadd.f32 %v1350, %v1372
    %1375 = vrot.lane.b32.xlu0 %v1023, 1
    %v1376 = vpop.permute.xlu0 %1375
    %1377 = vrot.lane.b32.xlu0 %v1024, 1
    %v1378 = vpop.permute.xlu0 %1377
    %vm1379 = vcmp.lt.s32.totalorder %v165, 1
    %v1380 = vsel %vm1379, %v1376, %v1378
    %v1381 = vsel %vm1379, %v1378, %v1376
    %1382 = vrot.lane.b32.xlu0 %v1025, 1
    %v1383 = vpop.permute.xlu0 %1382
    %1384 = vrot.lane.b32.xlu0 %v1026, 1
    %v1385 = vpop.permute.xlu0 %1384
    %v1386 = vsel %vm1379, %v1383, %v1385
    %v1387 = vsel %vm1379, %v1385, %v1383
    %v1388 = vmul.f32 %v1381, %v233
    %v1389 = vmul.f32 %v1380, %v234
    %v1390 = vmul.f32 %v1387, %v233
    %v1391 = vmul.f32 %v1386, %v234
    %1392 = vrot.lane.b32.xlu0 %v1388, 48
    %v1393 = vpop.permute.xlu0 %1392
    %1394 = vrot.lane.b32.xlu0 %v1389, 48
    %v1395 = vpop.permute.xlu0 %1394
    %v1396 = vsel %vm1048, %v1393, %v1395
    %v1397 = vsel %vm1048, %v1395, %v1393
    %1398 = vrot.lane.b32.xlu0 %v1390, 48
    %v1399 = vpop.permute.xlu0 %1398
    %1400 = vrot.lane.b32.xlu0 %v1391, 48
    %v1401 = vpop.permute.xlu0 %1400
    %v1402 = vsel %vm1048, %v1399, %v1401
    %v1403 = vsel %vm1048, %v1401, %v1399
    %v1404 = vstv %s68
    %v1405 = vmul.f32 %v1404, %v1397
    %v1406 = vmul.f32 %v1404, %v1396
    %v1407 = vstv %s117
    %v1408 = vmul.f32 %v1407, %v1403
    %v1409 = vmul.f32 %v1407, %v1402
    %v1410 = vadd.f32 %v1405, %v1408
    %v1411 = vadd.f32 %v1406, %v1409
    %v1412 = vmul.f32 %v1410, %v209
    %v1413 = vmul.f32 %v1411, %v210
    %v1414 = vadd.f32 %v1373, %v1412
    %v1415 = vadd.f32 %v1374, %v1413
    %1416 = vrot.lane.b32.xlu0 %v1388, 32
    %v1417 = vpop.permute.xlu0 %1416
    %1418 = vrot.lane.b32.xlu0 %v1389, 32
    %v1419 = vpop.permute.xlu0 %1418
    %v1420 = vsel %vm1073, %v1417, %v1419
    %v1421 = vsel %vm1073, %v1419, %v1417
    %1422 = vrot.lane.b32.xlu0 %v1390, 32
    %v1423 = vpop.permute.xlu0 %1422
    %1424 = vrot.lane.b32.xlu0 %v1391, 32
    %v1425 = vpop.permute.xlu0 %1424
    %v1426 = vsel %vm1073, %v1423, %v1425
    %v1427 = vsel %vm1073, %v1425, %v1423
    %v1428 = vstv %s75
    %v1429 = vmul.f32 %v1428, %v1421
    %v1430 = vmul.f32 %v1428, %v1420
    %v1431 = vstv %s124
    %v1432 = vmul.f32 %v1431, %v1427
    %v1433 = vmul.f32 %v1431, %v1426
    %v1434 = vadd.f32 %v1429, %v1432
    %v1435 = vadd.f32 %v1430, %v1433
    %v1436 = vmul.f32 %v1434, %v225
    %v1437 = vmul.f32 %v1435, %v226
    %v1438 = vadd.f32 %v1414, %v1436
    %v1439 = vadd.f32 %v1415, %v1437
    %1440 = vrot.lane.b32.xlu0 %v1388, 16
    %v1441 = vpop.permute.xlu0 %1440
    %1442 = vrot.lane.b32.xlu0 %v1389, 16
    %v1443 = vpop.permute.xlu0 %1442
    %v1444 = vsel %vm1098, %v1441, %v1443
    %v1445 = vsel %vm1098, %v1443, %v1441
    %1446 = vrot.lane.b32.xlu0 %v1390, 16
    %v1447 = vpop.permute.xlu0 %1446
    %1448 = vrot.lane.b32.xlu0 %v1391, 16
    %v1449 = vpop.permute.xlu0 %1448
    %v1450 = vsel %vm1098, %v1447, %v1449
    %v1451 = vsel %vm1098, %v1449, %v1447
    %v1452 = vstv %s82
    %v1453 = vmul.f32 %v1452, %v1445
    %v1454 = vmul.f32 %v1452, %v1444
    %v1455 = vstv %s131
    %v1456 = vmul.f32 %v1455, %v1451
    %v1457 = vmul.f32 %v1455, %v1450
    %v1458 = vadd.f32 %v1453, %v1456
    %v1459 = vadd.f32 %v1454, %v1457
    %v1460 = vmul.f32 %v1458, %v241
    %v1461 = vmul.f32 %v1459, %v242
    %v1462 = vadd.f32 %v1438, %v1460
    %v1463 = vadd.f32 %v1439, %v1461
    %v1464 = vstv %s89
    %v1465 = vmul.f32 %v1464, %v1388
    %v1466 = vmul.f32 %v1464, %v1389
    %v1467 = vstv %s138
    %v1468 = vmul.f32 %v1467, %v1390
    %v1469 = vmul.f32 %v1467, %v1391
    %v1470 = vadd.f32 %v1465, %v1468
    %v1471 = vadd.f32 %v1466, %v1469
    %v1472 = vadd.f32 %v1462, %v1470
    %v1473 = vadd.f32 %v1463, %v1471
    %1474 = vrot.lane.b32.xlu0 %v1388, 112
    %v1475 = vpop.permute.xlu0 %1474
    %1476 = vrot.lane.b32.xlu0 %v1389, 112
    %v1477 = vpop.permute.xlu0 %1476
    %v1478 = vsel %vm1133, %v1475, %v1477
    %v1479 = vsel %vm1133, %v1477, %v1475
    %1480 = vrot.lane.b32.xlu0 %v1390, 112
    %v1481 = vpop.permute.xlu0 %1480
    %1482 = vrot.lane.b32.xlu0 %v1391, 112
    %v1483 = vpop.permute.xlu0 %1482
    %v1484 = vsel %vm1133, %v1481, %v1483
    %v1485 = vsel %vm1133, %v1483, %v1481
    %v1486 = vstv %s96
    %v1487 = vmul.f32 %v1486, %v1478
    %v1488 = vmul.f32 %v1486, %v1479
    %v1489 = vstv %s145
    %v1490 = vmul.f32 %v1489, %v1484
    %v1491 = vmul.f32 %v1489, %v1485
    %v1492 = vadd.f32 %v1487, %v1490
    %v1493 = vadd.f32 %v1488, %v1491
    %v1494 = vmul.f32 %v1492, %v261
    %v1495 = vmul.f32 %v1493, %v262
    %v1496 = vadd.f32 %v1472, %v1494
    %v1497 = vadd.f32 %v1473, %v1495
    %1498 = vrot.lane.b32.xlu0 %v1388, 96
    %v1499 = vpop.permute.xlu0 %1498
    %1500 = vrot.lane.b32.xlu0 %v1389, 96
    %v1501 = vpop.permute.xlu0 %1500
    %v1502 = vsel %vm1158, %v1499, %v1501
    %v1503 = vsel %vm1158, %v1501, %v1499
    %1504 = vrot.lane.b32.xlu0 %v1390, 96
    %v1505 = vpop.permute.xlu0 %1504
    %1506 = vrot.lane.b32.xlu0 %v1391, 96
    %v1507 = vpop.permute.xlu0 %1506
    %v1508 = vsel %vm1158, %v1505, %v1507
    %v1509 = vsel %vm1158, %v1507, %v1505
    %v1510 = vstv %s103
    %v1511 = vmul.f32 %v1510, %v1502
    %v1512 = vmul.f32 %v1510, %v1503
    %v1513 = vstv %s152
    %v1514 = vmul.f32 %v1513, %v1508
    %v1515 = vmul.f32 %v1513, %v1509
    %v1516 = vadd.f32 %v1511, %v1514
    %v1517 = vadd.f32 %v1512, %v1515
    %v1518 = vmul.f32 %v1516, %v277
    %v1519 = vmul.f32 %v1517, %v278
    %v1520 = vadd.f32 %v1496, %v1518
    %v1521 = vadd.f32 %v1497, %v1519
    %1522 = vrot.lane.b32.xlu0 %v1388, 80
    %v1523 = vpop.permute.xlu0 %1522
    %1524 = vrot.lane.b32.xlu0 %v1389, 80
    %v1525 = vpop.permute.xlu0 %1524
    %v1526 = vsel %vm1183, %v1523, %v1525
    %v1527 = vsel %vm1183, %v1525, %v1523
    %1528 = vrot.lane.b32.xlu0 %v1390, 80
    %v1529 = vpop.permute.xlu0 %1528
    %1530 = vrot.lane.b32.xlu0 %v1391, 80
    %v1531 = vpop.permute.xlu0 %1530
    %v1532 = vsel %vm1183, %v1529, %v1531
    %v1533 = vsel %vm1183, %v1531, %v1529
    %v1534 = vstv %s110
    %v1535 = vmul.f32 %v1534, %v1526
    %v1536 = vmul.f32 %v1534, %v1527
    %v1537 = vstv %s159
    %v1538 = vmul.f32 %v1537, %v1532
    %v1539 = vmul.f32 %v1537, %v1533
    %v1540 = vadd.f32 %v1535, %v1538
    %v1541 = vadd.f32 %v1536, %v1539
    %v1542 = vmul.f32 %v1540, %v293
    %v1543 = vmul.f32 %v1541, %v294
    %v1544 = vadd.f32 %v1520, %v1542
    %v1545 = vadd.f32 %v1521, %v1543
    %1546 = vrot.lane.b32.xlu0 %v1023, 48
    %v1547 = vpop.permute.xlu0 %1546
    %1548 = vrot.lane.b32.xlu0 %v1024, 48
    %v1549 = vpop.permute.xlu0 %1548
    %v1550 = vsel %vm1048, %v1547, %v1549
    %v1551 = vsel %vm1048, %v1549, %v1547
    %1552 = vrot.lane.b32.xlu0 %v1025, 48
    %v1553 = vpop.permute.xlu0 %1552
    %1554 = vrot.lane.b32.xlu0 %v1026, 48
    %v1555 = vpop.permute.xlu0 %1554
    %v1556 = vsel %vm1048, %v1553, %v1555
    %v1557 = vsel %vm1048, %v1555, %v1553
    %v1558 = vstv %s69
    %v1559 = vmul.f32 %v1558, %v1551
    %v1560 = vmul.f32 %v1558, %v1550
    %v1561 = vstv %s118
    %v1562 = vmul.f32 %v1561, %v1557
    %v1563 = vmul.f32 %v1561, %v1556
    %v1564 = vadd.f32 %v1559, %v1562
    %v1565 = vadd.f32 %v1560, %v1563
    %v1566 = vmul.f32 %v1564, %v209
    %v1567 = vmul.f32 %v1565, %v210
    %v1568 = vadd.f32 %v1544, %v1566
    %v1569 = vadd.f32 %v1545, %v1567
    %1570 = vrot.lane.b32.xlu0 %v1023, 32
    %v1571 = vpop.permute.xlu0 %1570
    %1572 = vrot.lane.b32.xlu0 %v1024, 32
    %v1573 = vpop.permute.xlu0 %1572
    %v1574 = vsel %vm1073, %v1571, %v1573
    %v1575 = vsel %vm1073, %v1573, %v1571
    %1576 = vrot.lane.b32.xlu0 %v1025, 32
    %v1577 = vpop.permute.xlu0 %1576
    %1578 = vrot.lane.b32.xlu0 %v1026, 32
    %v1579 = vpop.permute.xlu0 %1578
    %v1580 = vsel %vm1073, %v1577, %v1579
    %v1581 = vsel %vm1073, %v1579, %v1577
    %v1582 = vstv %s76
    %v1583 = vmul.f32 %v1582, %v1575
    %v1584 = vmul.f32 %v1582, %v1574
    %v1585 = vstv %s125
    %v1586 = vmul.f32 %v1585, %v1581
    %v1587 = vmul.f32 %v1585, %v1580
    %v1588 = vadd.f32 %v1583, %v1586
    %v1589 = vadd.f32 %v1584, %v1587
    %v1590 = vmul.f32 %v1588, %v225
    %v1591 = vmul.f32 %v1589, %v226
    %v1592 = vadd.f32 %v1568, %v1590
    %v1593 = vadd.f32 %v1569, %v1591
    %1594 = vrot.lane.b32.xlu0 %v1023, 16
    %v1595 = vpop.permute.xlu0 %1594
    %1596 = vrot.lane.b32.xlu0 %v1024, 16
    %v1597 = vpop.permute.xlu0 %1596
    %v1598 = vsel %vm1098, %v1595, %v1597
    %v1599 = vsel %vm1098, %v1597, %v1595
    %1600 = vrot.lane.b32.xlu0 %v1025, 16
    %v1601 = vpop.permute.xlu0 %1600
    %1602 = vrot.lane.b32.xlu0 %v1026, 16
    %v1603 = vpop.permute.xlu0 %1602
    %v1604 = vsel %vm1098, %v1601, %v1603
    %v1605 = vsel %vm1098, %v1603, %v1601
    %v1606 = vstv %s83
    %v1607 = vmul.f32 %v1606, %v1599
    %v1608 = vmul.f32 %v1606, %v1598
    %v1609 = vstv %s132
    %v1610 = vmul.f32 %v1609, %v1605
    %v1611 = vmul.f32 %v1609, %v1604
    %v1612 = vadd.f32 %v1607, %v1610
    %v1613 = vadd.f32 %v1608, %v1611
    %v1614 = vmul.f32 %v1612, %v241
    %v1615 = vmul.f32 %v1613, %v242
    %v1616 = vadd.f32 %v1592, %v1614
    %v1617 = vadd.f32 %v1593, %v1615
    %v1618 = vstv %s90
    %v1619 = vmul.f32 %v1618, %v1023
    %v1620 = vmul.f32 %v1618, %v1024
    %v1621 = vstv %s139
    %v1622 = vmul.f32 %v1621, %v1025
    %v1623 = vmul.f32 %v1621, %v1026
    %v1624 = vadd.f32 %v1619, %v1622
    %v1625 = vadd.f32 %v1620, %v1623
    %v1626 = vadd.f32 %v1616, %v1624
    %v1627 = vadd.f32 %v1617, %v1625
    %1628 = vrot.lane.b32.xlu0 %v1023, 112
    %v1629 = vpop.permute.xlu0 %1628
    %1630 = vrot.lane.b32.xlu0 %v1024, 112
    %v1631 = vpop.permute.xlu0 %1630
    %v1632 = vsel %vm1133, %v1629, %v1631
    %v1633 = vsel %vm1133, %v1631, %v1629
    %1634 = vrot.lane.b32.xlu0 %v1025, 112
    %v1635 = vpop.permute.xlu0 %1634
    %1636 = vrot.lane.b32.xlu0 %v1026, 112
    %v1637 = vpop.permute.xlu0 %1636
    %v1638 = vsel %vm1133, %v1635, %v1637
    %v1639 = vsel %vm1133, %v1637, %v1635
    %v1640 = vstv %s97
    %v1641 = vmul.f32 %v1640, %v1632
    %v1642 = vmul.f32 %v1640, %v1633
    %v1643 = vstv %s146
    %v1644 = vmul.f32 %v1643, %v1638
    %v1645 = vmul.f32 %v1643, %v1639
    %v1646 = vadd.f32 %v1641, %v1644
    %v1647 = vadd.f32 %v1642, %v1645
    %v1648 = vmul.f32 %v1646, %v261
    %v1649 = vmul.f32 %v1647, %v262
    %v1650 = vadd.f32 %v1626, %v1648
    %v1651 = vadd.f32 %v1627, %v1649
    %1652 = vrot.lane.b32.xlu0 %v1023, 96
    %v1653 = vpop.permute.xlu0 %1652
    %1654 = vrot.lane.b32.xlu0 %v1024, 96
    %v1655 = vpop.permute.xlu0 %1654
    %v1656 = vsel %vm1158, %v1653, %v1655
    %v1657 = vsel %vm1158, %v1655, %v1653
    %1658 = vrot.lane.b32.xlu0 %v1025, 96
    %v1659 = vpop.permute.xlu0 %1658
    %1660 = vrot.lane.b32.xlu0 %v1026, 96
    %v1661 = vpop.permute.xlu0 %1660
    %v1662 = vsel %vm1158, %v1659, %v1661
    %v1663 = vsel %vm1158, %v1661, %v1659
    %v1664 = vstv %s104
    %v1665 = vmul.f32 %v1664, %v1656
    %v1666 = vmul.f32 %v1664, %v1657
    %v1667 = vstv %s153
    %v1668 = vmul.f32 %v1667, %v1662
    %v1669 = vmul.f32 %v1667, %v1663
    %v1670 = vadd.f32 %v1665, %v1668
    %v1671 = vadd.f32 %v1666, %v1669
    %v1672 = vmul.f32 %v1670, %v277
    %v1673 = vmul.f32 %v1671, %v278
    %v1674 = vadd.f32 %v1650, %v1672
    %v1675 = vadd.f32 %v1651, %v1673
    %1676 = vrot.lane.b32.xlu0 %v1023, 80
    %v1677 = vpop.permute.xlu0 %1676
    %1678 = vrot.lane.b32.xlu0 %v1024, 80
    %v1679 = vpop.permute.xlu0 %1678
    %v1680 = vsel %vm1183, %v1677, %v1679
    %v1681 = vsel %vm1183, %v1679, %v1677
    %1682 = vrot.lane.b32.xlu0 %v1025, 80
    %v1683 = vpop.permute.xlu0 %1682
    %1684 = vrot.lane.b32.xlu0 %v1026, 80
    %v1685 = vpop.permute.xlu0 %1684
    %v1686 = vsel %vm1183, %v1683, %v1685
    %v1687 = vsel %vm1183, %v1685, %v1683
    %v1688 = vstv %s111
    %v1689 = vmul.f32 %v1688, %v1680
    %v1690 = vmul.f32 %v1688, %v1681
    %v1691 = vstv %s160
    %v1692 = vmul.f32 %v1691, %v1686
    %v1693 = vmul.f32 %v1691, %v1687
    %v1694 = vadd.f32 %v1689, %v1692
    %v1695 = vadd.f32 %v1690, %v1693
    %v1696 = vmul.f32 %v1694, %v293
    %v1697 = vmul.f32 %v1695, %v294
    %v1698 = vadd.f32 %v1674, %v1696
    %v1699 = vadd.f32 %v1675, %v1697
    %1700 = vrot.lane.b32.xlu0 %v1023, 127
    %v1701 = vpop.permute.xlu0 %1700
    %1702 = vrot.lane.b32.xlu0 %v1024, 127
    %v1703 = vpop.permute.xlu0 %1702
    %vm1704 = vcmp.lt.s32.totalorder %v165, 127
    %v1705 = vsel %vm1704, %v1701, %v1703
    %v1706 = vsel %vm1704, %v1703, %v1701
    %1707 = vrot.lane.b32.xlu0 %v1025, 127
    %v1708 = vpop.permute.xlu0 %1707
    %1709 = vrot.lane.b32.xlu0 %v1026, 127
    %v1710 = vpop.permute.xlu0 %1709
    %v1711 = vsel %vm1704, %v1708, %v1710
    %v1712 = vsel %vm1704, %v1710, %v1708
    %v1713 = vmul.f32 %v1705, %v251
    %v1714 = vmul.f32 %v1706, %v252
    %v1715 = vmul.f32 %v1711, %v251
    %v1716 = vmul.f32 %v1712, %v252
    %1717 = vrot.lane.b32.xlu0 %v1713, 48
    %v1718 = vpop.permute.xlu0 %1717
    %1719 = vrot.lane.b32.xlu0 %v1714, 48
    %v1720 = vpop.permute.xlu0 %1719
    %v1721 = vsel %vm1048, %v1718, %v1720
    %v1722 = vsel %vm1048, %v1720, %v1718
    %1723 = vrot.lane.b32.xlu0 %v1715, 48
    %v1724 = vpop.permute.xlu0 %1723
    %1725 = vrot.lane.b32.xlu0 %v1716, 48
    %v1726 = vpop.permute.xlu0 %1725
    %v1727 = vsel %vm1048, %v1724, %v1726
    %v1728 = vsel %vm1048, %v1726, %v1724
    %v1729 = vstv %s70
    %v1730 = vmul.f32 %v1729, %v1722
    %v1731 = vmul.f32 %v1729, %v1721
    %v1732 = vstv %s119
    %v1733 = vmul.f32 %v1732, %v1728
    %v1734 = vmul.f32 %v1732, %v1727
    %v1735 = vadd.f32 %v1730, %v1733
    %v1736 = vadd.f32 %v1731, %v1734
    %v1737 = vmul.f32 %v1735, %v209
    %v1738 = vmul.f32 %v1736, %v210
    %v1739 = vadd.f32 %v1698, %v1737
    %v1740 = vadd.f32 %v1699, %v1738
    %1741 = vrot.lane.b32.xlu0 %v1713, 32
    %v1742 = vpop.permute.xlu0 %1741
    %1743 = vrot.lane.b32.xlu0 %v1714, 32
    %v1744 = vpop.permute.xlu0 %1743
    %v1745 = vsel %vm1073, %v1742, %v1744
    %v1746 = vsel %vm1073, %v1744, %v1742
    %1747 = vrot.lane.b32.xlu0 %v1715, 32
    %v1748 = vpop.permute.xlu0 %1747
    %1749 = vrot.lane.b32.xlu0 %v1716, 32
    %v1750 = vpop.permute.xlu0 %1749
    %v1751 = vsel %vm1073, %v1748, %v1750
    %v1752 = vsel %vm1073, %v1750, %v1748
    %v1753 = vstv %s77
    %v1754 = vmul.f32 %v1753, %v1746
    %v1755 = vmul.f32 %v1753, %v1745
    %v1756 = vstv %s126
    %v1757 = vmul.f32 %v1756, %v1752
    %v1758 = vmul.f32 %v1756, %v1751
    %v1759 = vadd.f32 %v1754, %v1757
    %v1760 = vadd.f32 %v1755, %v1758
    %v1761 = vmul.f32 %v1759, %v225
    %v1762 = vmul.f32 %v1760, %v226
    %v1763 = vadd.f32 %v1739, %v1761
    %v1764 = vadd.f32 %v1740, %v1762
    %1765 = vrot.lane.b32.xlu0 %v1713, 16
    %v1766 = vpop.permute.xlu0 %1765
    %1767 = vrot.lane.b32.xlu0 %v1714, 16
    %v1768 = vpop.permute.xlu0 %1767
    %v1769 = vsel %vm1098, %v1766, %v1768
    %v1770 = vsel %vm1098, %v1768, %v1766
    %1771 = vrot.lane.b32.xlu0 %v1715, 16
    %v1772 = vpop.permute.xlu0 %1771
    %1773 = vrot.lane.b32.xlu0 %v1716, 16
    %v1774 = vpop.permute.xlu0 %1773
    %v1775 = vsel %vm1098, %v1772, %v1774
    %v1776 = vsel %vm1098, %v1774, %v1772
    %v1777 = vstv %s84
    %v1778 = vmul.f32 %v1777, %v1770
    %v1779 = vmul.f32 %v1777, %v1769
    %v1780 = vstv %s133
    %v1781 = vmul.f32 %v1780, %v1776
    %v1782 = vmul.f32 %v1780, %v1775
    %v1783 = vadd.f32 %v1778, %v1781
    %v1784 = vadd.f32 %v1779, %v1782
    %v1785 = vmul.f32 %v1783, %v241
    %v1786 = vmul.f32 %v1784, %v242
    %v1787 = vadd.f32 %v1763, %v1785
    %v1788 = vadd.f32 %v1764, %v1786
    %v1789 = vstv %s91
    %v1790 = vmul.f32 %v1789, %v1713
    %v1791 = vmul.f32 %v1789, %v1714
    %v1792 = vstv %s140
    %v1793 = vmul.f32 %v1792, %v1715
    %v1794 = vmul.f32 %v1792, %v1716
    %v1795 = vadd.f32 %v1790, %v1793
    %v1796 = vadd.f32 %v1791, %v1794
    %v1797 = vadd.f32 %v1787, %v1795
    %v1798 = vadd.f32 %v1788, %v1796
    %1799 = vrot.lane.b32.xlu0 %v1713, 112
    %v1800 = vpop.permute.xlu0 %1799
    %1801 = vrot.lane.b32.xlu0 %v1714, 112
    %v1802 = vpop.permute.xlu0 %1801
    %v1803 = vsel %vm1133, %v1800, %v1802
    %v1804 = vsel %vm1133, %v1802, %v1800
    %1805 = vrot.lane.b32.xlu0 %v1715, 112
    %v1806 = vpop.permute.xlu0 %1805
    %1807 = vrot.lane.b32.xlu0 %v1716, 112
    %v1808 = vpop.permute.xlu0 %1807
    %v1809 = vsel %vm1133, %v1806, %v1808
    %v1810 = vsel %vm1133, %v1808, %v1806
    %v1811 = vstv %s98
    %v1812 = vmul.f32 %v1811, %v1803
    %v1813 = vmul.f32 %v1811, %v1804
    %v1814 = vstv %s147
    %v1815 = vmul.f32 %v1814, %v1809
    %v1816 = vmul.f32 %v1814, %v1810
    %v1817 = vadd.f32 %v1812, %v1815
    %v1818 = vadd.f32 %v1813, %v1816
    %v1819 = vmul.f32 %v1817, %v261
    %v1820 = vmul.f32 %v1818, %v262
    %v1821 = vadd.f32 %v1797, %v1819
    %v1822 = vadd.f32 %v1798, %v1820
    %1823 = vrot.lane.b32.xlu0 %v1713, 96
    %v1824 = vpop.permute.xlu0 %1823
    %1825 = vrot.lane.b32.xlu0 %v1714, 96
    %v1826 = vpop.permute.xlu0 %1825
    %v1827 = vsel %vm1158, %v1824, %v1826
    %v1828 = vsel %vm1158, %v1826, %v1824
    %1829 = vrot.lane.b32.xlu0 %v1715, 96
    %v1830 = vpop.permute.xlu0 %1829
    %1831 = vrot.lane.b32.xlu0 %v1716, 96
    %v1832 = vpop.permute.xlu0 %1831
    %v1833 = vsel %vm1158, %v1830, %v1832
    %v1834 = vsel %vm1158, %v1832, %v1830
    %v1835 = vstv %s105
    %v1836 = vmul.f32 %v1835, %v1827
    %v1837 = vmul.f32 %v1835, %v1828
    %v1838 = vstv %s154
    %v1839 = vmul.f32 %v1838, %v1833
    %v1840 = vmul.f32 %v1838, %v1834
    %v1841 = vadd.f32 %v1836, %v1839
    %v1842 = vadd.f32 %v1837, %v1840
    %v1843 = vmul.f32 %v1841, %v277
    %v1844 = vmul.f32 %v1842, %v278
    %v1845 = vadd.f32 %v1821, %v1843
    %v1846 = vadd.f32 %v1822, %v1844
    %1847 = vrot.lane.b32.xlu0 %v1713, 80
    %v1848 = vpop.permute.xlu0 %1847
    %1849 = vrot.lane.b32.xlu0 %v1714, 80
    %v1850 = vpop.permute.xlu0 %1849
    %v1851 = vsel %vm1183, %v1848, %v1850
    %v1852 = vsel %vm1183, %v1850, %v1848
    %1853 = vrot.lane.b32.xlu0 %v1715, 80
    %v1854 = vpop.permute.xlu0 %1853
    %1855 = vrot.lane.b32.xlu0 %v1716, 80
    %v1856 = vpop.permute.xlu0 %1855
    %v1857 = vsel %vm1183, %v1854, %v1856
    %v1858 = vsel %vm1183, %v1856, %v1854
    %v1859 = vstv %s112
    %v1860 = vmul.f32 %v1859, %v1851
    %v1861 = vmul.f32 %v1859, %v1852
    %v1862 = vstv %s161
    %v1863 = vmul.f32 %v1862, %v1857
    %v1864 = vmul.f32 %v1862, %v1858
    %v1865 = vadd.f32 %v1860, %v1863
    %v1866 = vadd.f32 %v1861, %v1864
    %v1867 = vmul.f32 %v1865, %v293
    %v1868 = vmul.f32 %v1866, %v294
    %v1869 = vadd.f32 %v1845, %v1867
    %v1870 = vadd.f32 %v1846, %v1868
    %1871 = vrot.lane.b32.xlu0 %v1023, 126
    %v1872 = vpop.permute.xlu0 %1871
    %1873 = vrot.lane.b32.xlu0 %v1024, 126
    %v1874 = vpop.permute.xlu0 %1873
    %vm1875 = vcmp.lt.s32.totalorder %v165, 126
    %v1876 = vsel %vm1875, %v1872, %v1874
    %v1877 = vsel %vm1875, %v1874, %v1872
    %1878 = vrot.lane.b32.xlu0 %v1025, 126
    %v1879 = vpop.permute.xlu0 %1878
    %1880 = vrot.lane.b32.xlu0 %v1026, 126
    %v1881 = vpop.permute.xlu0 %1880
    %v1882 = vsel %vm1875, %v1879, %v1881
    %v1883 = vsel %vm1875, %v1881, %v1879
    %v1884 = vmul.f32 %v1876, %v269
    %v1885 = vmul.f32 %v1877, %v270
    %v1886 = vmul.f32 %v1882, %v269
    %v1887 = vmul.f32 %v1883, %v270
    %1888 = vrot.lane.b32.xlu0 %v1884, 48
    %v1889 = vpop.permute.xlu0 %1888
    %1890 = vrot.lane.b32.xlu0 %v1885, 48
    %v1891 = vpop.permute.xlu0 %1890
    %v1892 = vsel %vm1048, %v1889, %v1891
    %v1893 = vsel %vm1048, %v1891, %v1889
    %1894 = vrot.lane.b32.xlu0 %v1886, 48
    %v1895 = vpop.permute.xlu0 %1894
    %1896 = vrot.lane.b32.xlu0 %v1887, 48
    %v1897 = vpop.permute.xlu0 %1896
    %v1898 = vsel %vm1048, %v1895, %v1897
    %v1899 = vsel %vm1048, %v1897, %v1895
    %v1900 = vstv %s71
    %v1901 = vmul.f32 %v1900, %v1893
    %v1902 = vmul.f32 %v1900, %v1892
    %v1903 = vstv %s120
    %v1904 = vmul.f32 %v1903, %v1899
    %v1905 = vmul.f32 %v1903, %v1898
    %v1906 = vadd.f32 %v1901, %v1904
    %v1907 = vadd.f32 %v1902, %v1905
    %v1908 = vmul.f32 %v1906, %v209
    %v1909 = vmul.f32 %v1907, %v210
    %v1910 = vadd.f32 %v1869, %v1908
    %v1911 = vadd.f32 %v1870, %v1909
    %1912 = vrot.lane.b32.xlu0 %v1884, 32
    %v1913 = vpop.permute.xlu0 %1912
    %1914 = vrot.lane.b32.xlu0 %v1885, 32
    %v1915 = vpop.permute.xlu0 %1914
    %v1916 = vsel %vm1073, %v1913, %v1915
    %v1917 = vsel %vm1073, %v1915, %v1913
    %1918 = vrot.lane.b32.xlu0 %v1886, 32
    %v1919 = vpop.permute.xlu0 %1918
    %1920 = vrot.lane.b32.xlu0 %v1887, 32
    %v1921 = vpop.permute.xlu0 %1920
    %v1922 = vsel %vm1073, %v1919, %v1921
    %v1923 = vsel %vm1073, %v1921, %v1919
    %v1924 = vstv %s78
    %v1925 = vmul.f32 %v1924, %v1917
    %v1926 = vmul.f32 %v1924, %v1916
    %v1927 = vstv %s127
    %v1928 = vmul.f32 %v1927, %v1923
    %v1929 = vmul.f32 %v1927, %v1922
    %v1930 = vadd.f32 %v1925, %v1928
    %v1931 = vadd.f32 %v1926, %v1929
    %v1932 = vmul.f32 %v1930, %v225
    %v1933 = vmul.f32 %v1931, %v226
    %v1934 = vadd.f32 %v1910, %v1932
    %v1935 = vadd.f32 %v1911, %v1933
    %1936 = vrot.lane.b32.xlu0 %v1884, 16
    %v1937 = vpop.permute.xlu0 %1936
    %1938 = vrot.lane.b32.xlu0 %v1885, 16
    %v1939 = vpop.permute.xlu0 %1938
    %v1940 = vsel %vm1098, %v1937, %v1939
    %v1941 = vsel %vm1098, %v1939, %v1937
    %1942 = vrot.lane.b32.xlu0 %v1886, 16
    %v1943 = vpop.permute.xlu0 %1942
    %1944 = vrot.lane.b32.xlu0 %v1887, 16
    %v1945 = vpop.permute.xlu0 %1944
    %v1946 = vsel %vm1098, %v1943, %v1945
    %v1947 = vsel %vm1098, %v1945, %v1943
    %v1948 = vstv %s85
    %v1949 = vmul.f32 %v1948, %v1941
    %v1950 = vmul.f32 %v1948, %v1940
    %v1951 = vstv %s134
    %v1952 = vmul.f32 %v1951, %v1947
    %v1953 = vmul.f32 %v1951, %v1946
    %v1954 = vadd.f32 %v1949, %v1952
    %v1955 = vadd.f32 %v1950, %v1953
    %v1956 = vmul.f32 %v1954, %v241
    %v1957 = vmul.f32 %v1955, %v242
    %v1958 = vadd.f32 %v1934, %v1956
    %v1959 = vadd.f32 %v1935, %v1957
    %v1960 = vstv %s92
    %v1961 = vmul.f32 %v1960, %v1884
    %v1962 = vmul.f32 %v1960, %v1885
    %v1963 = vstv %s141
    %v1964 = vmul.f32 %v1963, %v1886
    %v1965 = vmul.f32 %v1963, %v1887
    %v1966 = vadd.f32 %v1961, %v1964
    %v1967 = vadd.f32 %v1962, %v1965
    %v1968 = vadd.f32 %v1958, %v1966
    %v1969 = vadd.f32 %v1959, %v1967
    %1970 = vrot.lane.b32.xlu0 %v1884, 112
    %v1971 = vpop.permute.xlu0 %1970
    %1972 = vrot.lane.b32.xlu0 %v1885, 112
    %v1973 = vpop.permute.xlu0 %1972
    %v1974 = vsel %vm1133, %v1971, %v1973
    %v1975 = vsel %vm1133, %v1973, %v1971
    %1976 = vrot.lane.b32.xlu0 %v1886, 112
    %v1977 = vpop.permute.xlu0 %1976
    %1978 = vrot.lane.b32.xlu0 %v1887, 112
    %v1979 = vpop.permute.xlu0 %1978
    %v1980 = vsel %vm1133, %v1977, %v1979
    %v1981 = vsel %vm1133, %v1979, %v1977
    %v1982 = vstv %s99
    %v1983 = vmul.f32 %v1982, %v1974
    %v1984 = vmul.f32 %v1982, %v1975
    %v1985 = vstv %s148
    %v1986 = vmul.f32 %v1985, %v1980
    %v1987 = vmul.f32 %v1985, %v1981
    %v1988 = vadd.f32 %v1983, %v1986
    %v1989 = vadd.f32 %v1984, %v1987
    %v1990 = vmul.f32 %v1988, %v261
    %v1991 = vmul.f32 %v1989, %v262
    %v1992 = vadd.f32 %v1968, %v1990
    %v1993 = vadd.f32 %v1969, %v1991
    %1994 = vrot.lane.b32.xlu0 %v1884, 96
    %v1995 = vpop.permute.xlu0 %1994
    %1996 = vrot.lane.b32.xlu0 %v1885, 96
    %v1997 = vpop.permute.xlu0 %1996
    %v1998 = vsel %vm1158, %v1995, %v1997
    %v1999 = vsel %vm1158, %v1997, %v1995
    %2000 = vrot.lane.b32.xlu0 %v1886, 96
    %v2001 = vpop.permute.xlu0 %2000
    %2002 = vrot.lane.b32.xlu0 %v1887, 96
    %v2003 = vpop.permute.xlu0 %2002
    %v2004 = vsel %vm1158, %v2001, %v2003
    %v2005 = vsel %vm1158, %v2003, %v2001
    %v2006 = vstv %s106
    %v2007 = vmul.f32 %v2006, %v1998
    %v2008 = vmul.f32 %v2006, %v1999
    %v2009 = vstv %s155
    %v2010 = vmul.f32 %v2009, %v2004
    %v2011 = vmul.f32 %v2009, %v2005
    %v2012 = vadd.f32 %v2007, %v2010
    %v2013 = vadd.f32 %v2008, %v2011
    %v2014 = vmul.f32 %v2012, %v277
    %v2015 = vmul.f32 %v2013, %v278
    %v2016 = vadd.f32 %v1992, %v2014
    %v2017 = vadd.f32 %v1993, %v2015
    %2018 = vrot.lane.b32.xlu0 %v1884, 80
    %v2019 = vpop.permute.xlu0 %2018
    %2020 = vrot.lane.b32.xlu0 %v1885, 80
    %v2021 = vpop.permute.xlu0 %2020
    %v2022 = vsel %vm1183, %v2019, %v2021
    %v2023 = vsel %vm1183, %v2021, %v2019
    %2024 = vrot.lane.b32.xlu0 %v1886, 80
    %v2025 = vpop.permute.xlu0 %2024
    %2026 = vrot.lane.b32.xlu0 %v1887, 80
    %v2027 = vpop.permute.xlu0 %2026
    %v2028 = vsel %vm1183, %v2025, %v2027
    %v2029 = vsel %vm1183, %v2027, %v2025
    %v2030 = vstv %s113
    %v2031 = vmul.f32 %v2030, %v2022
    %v2032 = vmul.f32 %v2030, %v2023
    %v2033 = vstv %s162
    %v2034 = vmul.f32 %v2033, %v2028
    %v2035 = vmul.f32 %v2033, %v2029
    %v2036 = vadd.f32 %v2031, %v2034
    %v2037 = vadd.f32 %v2032, %v2035
    %v2038 = vmul.f32 %v2036, %v293
    %v2039 = vmul.f32 %v2037, %v294
    %v2040 = vadd.f32 %v2016, %v2038
    %v2041 = vadd.f32 %v2017, %v2039
    %2042 = vrot.lane.b32.xlu0 %v1023, 125
    %v2043 = vpop.permute.xlu0 %2042
    %2044 = vrot.lane.b32.xlu0 %v1024, 125
    %v2045 = vpop.permute.xlu0 %2044
    %vm2046 = vcmp.lt.s32.totalorder %v165, 125
    %v2047 = vsel %vm2046, %v2043, %v2045
    %v2048 = vsel %vm2046, %v2045, %v2043
    %2049 = vrot.lane.b32.xlu0 %v1025, 125
    %v2050 = vpop.permute.xlu0 %2049
    %2051 = vrot.lane.b32.xlu0 %v1026, 125
    %v2052 = vpop.permute.xlu0 %2051
    %v2053 = vsel %vm2046, %v2050, %v2052
    %v2054 = vsel %vm2046, %v2052, %v2050
    %v2055 = vmul.f32 %v2047, %v285
    %v2056 = vmul.f32 %v2048, %v286
    %v2057 = vmul.f32 %v2053, %v285
    %v2058 = vmul.f32 %v2054, %v286
    %2059 = vrot.lane.b32.xlu0 %v2055, 48
    %v2060 = vpop.permute.xlu0 %2059
    %2061 = vrot.lane.b32.xlu0 %v2056, 48
    %v2062 = vpop.permute.xlu0 %2061
    %v2063 = vsel %vm1048, %v2060, %v2062
    %v2064 = vsel %vm1048, %v2062, %v2060
    %2065 = vrot.lane.b32.xlu0 %v2057, 48
    %v2066 = vpop.permute.xlu0 %2065
    %2067 = vrot.lane.b32.xlu0 %v2058, 48
    %v2068 = vpop.permute.xlu0 %2067
    %v2069 = vsel %vm1048, %v2066, %v2068
    %v2070 = vsel %vm1048, %v2068, %v2066
    %v2071 = vstv %s72
    %v2072 = vmul.f32 %v2071, %v2064
    %v2073 = vmul.f32 %v2071, %v2063
    %v2074 = vstv %s121
    %v2075 = vmul.f32 %v2074, %v2070
    %v2076 = vmul.f32 %v2074, %v2069
    %v2077 = vadd.f32 %v2072, %v2075
    %v2078 = vadd.f32 %v2073, %v2076
    %v2079 = vmul.f32 %v2077, %v209
    %v2080 = vmul.f32 %v2078, %v210
    %v2081 = vadd.f32 %v2040, %v2079
    %v2082 = vadd.f32 %v2041, %v2080
    %2083 = vrot.lane.b32.xlu0 %v2055, 32
    %v2084 = vpop.permute.xlu0 %2083
    %2085 = vrot.lane.b32.xlu0 %v2056, 32
    %v2086 = vpop.permute.xlu0 %2085
    %v2087 = vsel %vm1073, %v2084, %v2086
    %v2088 = vsel %vm1073, %v2086, %v2084
    %2089 = vrot.lane.b32.xlu0 %v2057, 32
    %v2090 = vpop.permute.xlu0 %2089
    %2091 = vrot.lane.b32.xlu0 %v2058, 32
    %v2092 = vpop.permute.xlu0 %2091
    %v2093 = vsel %vm1073, %v2090, %v2092
    %v2094 = vsel %vm1073, %v2092, %v2090
    %v2095 = vstv %s79
    %v2096 = vmul.f32 %v2095, %v2088
    %v2097 = vmul.f32 %v2095, %v2087
    %v2098 = vstv %s128
    %v2099 = vmul.f32 %v2098, %v2094
    %v2100 = vmul.f32 %v2098, %v2093
    %v2101 = vadd.f32 %v2096, %v2099
    %v2102 = vadd.f32 %v2097, %v2100
    %v2103 = vmul.f32 %v2101, %v225
    %v2104 = vmul.f32 %v2102, %v226
    %v2105 = vadd.f32 %v2081, %v2103
    %v2106 = vadd.f32 %v2082, %v2104
    %2107 = vrot.lane.b32.xlu0 %v2055, 16
    %v2108 = vpop.permute.xlu0 %2107
    %2109 = vrot.lane.b32.xlu0 %v2056, 16
    %v2110 = vpop.permute.xlu0 %2109
    %v2111 = vsel %vm1098, %v2108, %v2110
    %v2112 = vsel %vm1098, %v2110, %v2108
    %2113 = vrot.lane.b32.xlu0 %v2057, 16
    %v2114 = vpop.permute.xlu0 %2113
    %2115 = vrot.lane.b32.xlu0 %v2058, 16
    %v2116 = vpop.permute.xlu0 %2115
    %v2117 = vsel %vm1098, %v2114, %v2116
    %v2118 = vsel %vm1098, %v2116, %v2114
    %v2119 = vstv %s86
    %v2120 = vmul.f32 %v2119, %v2112
    %v2121 = vmul.f32 %v2119, %v2111
    %v2122 = vstv %s135
    %v2123 = vmul.f32 %v2122, %v2118
    %v2124 = vmul.f32 %v2122, %v2117
    %v2125 = vadd.f32 %v2120, %v2123
    %v2126 = vadd.f32 %v2121, %v2124
    %v2127 = vmul.f32 %v2125, %v241
    %v2128 = vmul.f32 %v2126, %v242
    %v2129 = vadd.f32 %v2105, %v2127
    %v2130 = vadd.f32 %v2106, %v2128
    %v2131 = vstv %s93
    %v2132 = vmul.f32 %v2131, %v2055
    %v2133 = vmul.f32 %v2131, %v2056
    %v2134 = vstv %s142
    %v2135 = vmul.f32 %v2134, %v2057
    %v2136 = vmul.f32 %v2134, %v2058
    %v2137 = vadd.f32 %v2132, %v2135
    %v2138 = vadd.f32 %v2133, %v2136
    %v2139 = vadd.f32 %v2129, %v2137
    %v2140 = vadd.f32 %v2130, %v2138
    %2141 = vrot.lane.b32.xlu0 %v2055, 112
    %v2142 = vpop.permute.xlu0 %2141
    %2143 = vrot.lane.b32.xlu0 %v2056, 112
    %v2144 = vpop.permute.xlu0 %2143
    %v2145 = vsel %vm1133, %v2142, %v2144
    %v2146 = vsel %vm1133, %v2144, %v2142
    %2147 = vrot.lane.b32.xlu0 %v2057, 112
    %v2148 = vpop.permute.xlu0 %2147
    %2149 = vrot.lane.b32.xlu0 %v2058, 112
    %v2150 = vpop.permute.xlu0 %2149
    %v2151 = vsel %vm1133, %v2148, %v2150
    %v2152 = vsel %vm1133, %v2150, %v2148
    %v2153 = vstv %s100
    %v2154 = vmul.f32 %v2153, %v2145
    %v2155 = vmul.f32 %v2153, %v2146
    %v2156 = vstv %s149
    %v2157 = vmul.f32 %v2156, %v2151
    %v2158 = vmul.f32 %v2156, %v2152
    %v2159 = vadd.f32 %v2154, %v2157
    %v2160 = vadd.f32 %v2155, %v2158
    %v2161 = vmul.f32 %v2159, %v261
    %v2162 = vmul.f32 %v2160, %v262
    %v2163 = vadd.f32 %v2139, %v2161
    %v2164 = vadd.f32 %v2140, %v2162
    %2165 = vrot.lane.b32.xlu0 %v2055, 96
    %v2166 = vpop.permute.xlu0 %2165
    %2167 = vrot.lane.b32.xlu0 %v2056, 96
    %v2168 = vpop.permute.xlu0 %2167
    %v2169 = vsel %vm1158, %v2166, %v2168
    %v2170 = vsel %vm1158, %v2168, %v2166
    %2171 = vrot.lane.b32.xlu0 %v2057, 96
    %v2172 = vpop.permute.xlu0 %2171
    %2173 = vrot.lane.b32.xlu0 %v2058, 96
    %v2174 = vpop.permute.xlu0 %2173
    %v2175 = vsel %vm1158, %v2172, %v2174
    %v2176 = vsel %vm1158, %v2174, %v2172
    %v2177 = vstv %s107
    %v2178 = vmul.f32 %v2177, %v2169
    %v2179 = vmul.f32 %v2177, %v2170
    %v2180 = vstv %s156
    %v2181 = vmul.f32 %v2180, %v2175
    %v2182 = vmul.f32 %v2180, %v2176
    %v2183 = vadd.f32 %v2178, %v2181
    %v2184 = vadd.f32 %v2179, %v2182
    %v2185 = vmul.f32 %v2183, %v277
    %v2186 = vmul.f32 %v2184, %v278
    %v2187 = vadd.f32 %v2163, %v2185
    %v2188 = vadd.f32 %v2164, %v2186
    %2189 = vrot.lane.b32.xlu0 %v2055, 80
    %v2190 = vpop.permute.xlu0 %2189
    %2191 = vrot.lane.b32.xlu0 %v2056, 80
    %v2192 = vpop.permute.xlu0 %2191
    %v2193 = vsel %vm1183, %v2190, %v2192
    %v2194 = vsel %vm1183, %v2192, %v2190
    %2195 = vrot.lane.b32.xlu0 %v2057, 80
    %v2196 = vpop.permute.xlu0 %2195
    %2197 = vrot.lane.b32.xlu0 %v2058, 80
    %v2198 = vpop.permute.xlu0 %2197
    %v2199 = vsel %vm1183, %v2196, %v2198
    %v2200 = vsel %vm1183, %v2198, %v2196
    %v2201 = vstv %s114
    %v2202 = vmul.f32 %v2201, %v2193
    %v2203 = vmul.f32 %v2201, %v2194
    %v2204 = vstv %s163
    %v2205 = vmul.f32 %v2204, %v2199
    %v2206 = vmul.f32 %v2204, %v2200
    %v2207 = vadd.f32 %v2202, %v2205
    %v2208 = vadd.f32 %v2203, %v2206
    %v2209 = vmul.f32 %v2207, %v293
    %v2210 = vmul.f32 %v2208, %v294
    %v2211 = vadd.f32 %v2187, %v2209
    %v2212 = vadd.f32 %v2188, %v2210
    %v2213 = vxor.u32 %v2211, 2147483648
    %v2214 = vxor.u32 %v2212, 2147483648
    %v2215 = vmul.f32 %v2213, 1.442695
    %v2216 = vpow.pop %v2215
    %v2217 = vmul.f32 %v2214, 1.442695
    %v2218 = vpow.pop %v2217
    %v2219 = vadd.f32 %v2216, 1.0
    %v2220 = vadd.f32 %v2218, 1.0
    %v2221 = vrcp.pop %v2219
    %v2222 = vmul.f32 %v2219, %v2221
    %v2223 = vsub.f32 1.0, %v2222
    %v2224 = vmul.f32 %v2221, %v2223
    %v2225 = vadd.f32 %v2221, %v2224
    %vm2226 = vweird.f32 %v2219
    %vm2227 = vweird.f32 %v2221
    %vm2228 = vmor %vm2226, %vm2227
    %v2229 = vsel %vm2228, %v2221, %v2225
    %v2230 = vand.u32 2147483647, %v2219
    %vm2231 = vcmp.eq.f32.partialorder %v2230, 8.507059e+37
    %v2232 = vand.u32 %v2219, 2147483648
    %v2233 = vor.u32 1.1754944e-38, %v2232
    %v2234 = vsel %vm2231, %v2233, %v2229
    %v2235 = vmul.f32 1.0, %v2234
    %v2236 = vrcp.pop %v2220
    %v2237 = vmul.f32 %v2220, %v2236
    %v2238 = vsub.f32 1.0, %v2237
    %v2239 = vmul.f32 %v2236, %v2238
    %v2240 = vadd.f32 %v2236, %v2239
    %vm2241 = vweird.f32 %v2220
    %vm2242 = vweird.f32 %v2236
    %vm2243 = vmor %vm2241, %vm2242
    %v2244 = vsel %vm2243, %v2236, %v2240
    %v2245 = vand.u32 2147483647, %v2220
    %vm2246 = vcmp.eq.f32.partialorder %v2245, 8.507059e+37
    %v2247 = vand.u32 %v2220, 2147483648
    %v2248 = vor.u32 1.1754944e-38, %v2247
    %v2249 = vsel %vm2246, %v2248, %v2244
    %v2250 = vmul.f32 1.0, %v2249
    %v2251 = vperm.slane %v2235, 0
    %v2252 = vperm.slane %v2250, 0
    %v2253 = vmul.f32 %v2251, %v770
    %v2254 = vmul.f32 %v2252, %v771
    %v2255 = vmul.f32 %v2251, %v772
    %v2256 = vmul.f32 %v2252, %v773
    %v2257 = vmul.f32 %v2251, %v774
    %v2258 = vmul.f32 %v2252, %v775
    %v2259 = vmul.f32 %v2251, %v776
    %v2260 = vmul.f32 %v2252, %v777
    %v2261 = vmul.f32 %v2251, %v778
    %v2262 = vmul.f32 %v2252, %v779
    %v2263 = vmul.f32 %v2251, %v780
    %v2264 = vmul.f32 %v2252, %v781
    %v2265 = vmul.f32 %v2251, %v782
    %v2266 = vmul.f32 %v2252, %v783
    %v2267 = vmul.f32 %v2251, %v784
    %v2268 = vmul.f32 %v2252, %v785
    %2269 = vst [vmem:[#allocation9] sm:$0xff] %v2253
    %2270 = vst [vmem:[#allocation9 + $0x8] sm:$0xff] %v2254
    %2271 = vst [vmem:[#allocation9 + $0x10] sm:$0xff] %v2255
    %2272 = vst [vmem:[#allocation9 + $0x18] sm:$0xff] %v2256
    %2273 = vst [vmem:[#allocation9 + $0x20] sm:$0xff] %v2257
    %2274 = vst [vmem:[#allocation9 + $0x28] sm:$0xff] %v2258
    %2275 = vst [vmem:[#allocation9 + $0x30] sm:$0xff] %v2259
    %2276 = vst [vmem:[#allocation9 + $0x38] sm:$0xff] %v2260
    %2277 = vst [vmem:[#allocation9 + $0x40] sm:$0xff] %v2261
    %2278 = vst [vmem:[#allocation9 + $0x48] sm:$0xff] %v2262
    %2279 = vst [vmem:[#allocation9 + $0x50] sm:$0xff] %v2263
    %2280 = vst [vmem:[#allocation9 + $0x58] sm:$0xff] %v2264
    %2281 = vst [vmem:[#allocation9 + $0x60] sm:$0xff] %v2265
    %2282 = vst [vmem:[#allocation9 + $0x68] sm:$0xff] %v2266
    %2283 = vst [vmem:[#allocation9 + $0x70] sm:$0xff] %v2267
    %2284 = vst [vmem:[#allocation9 + $0x78] sm:$0xff] %v2268
    %v2285 = vld [vmem:[%s903] sm:$0xff]
    %v2286 = vld [vmem:[%s903 + $0x8] sm:$0xff]
    %v2287 = vld [vmem:[%s903 + $0x10] sm:$0xff]
    %v2288 = vld [vmem:[%s903 + $0x18] sm:$0xff]
    %v2289 = vld [vmem:[%s903 + $0x20] sm:$0xff]
    %v2290 = vld [vmem:[%s903 + $0x28] sm:$0xff]
    %v2291 = vld [vmem:[%s903 + $0x30] sm:$0xff]
    %v2292 = vld [vmem:[%s903 + $0x38] sm:$0xff]
    %v2293 = vld [vmem:[%s903 + $0x40] sm:$0xff]
    %v2294 = vld [vmem:[%s903 + $0x48] sm:$0xff]
    %v2295 = vld [vmem:[%s903 + $0x50] sm:$0xff]
    %v2296 = vld [vmem:[%s903 + $0x58] sm:$0xff]
    %v2297 = vld [vmem:[%s903 + $0x60] sm:$0xff]
    %v2298 = vld [vmem:[%s903 + $0x68] sm:$0xff]
    %v2299 = vld [vmem:[%s903 + $0x70] sm:$0xff]
    %v2300 = vld [vmem:[%s903 + $0x78] sm:$0xff]
    %v2301 = vperm.slane %v2235, 1
    %v2302 = vperm.slane %v2250, 1
    %v2303 = vmul.f32 %v2301, %v2285
    %v2304 = vmul.f32 %v2302, %v2286
    %v2305 = vmul.f32 %v2301, %v2287
    %v2306 = vmul.f32 %v2302, %v2288
    %v2307 = vmul.f32 %v2301, %v2289
    %v2308 = vmul.f32 %v2302, %v2290
    %v2309 = vmul.f32 %v2301, %v2291
    %v2310 = vmul.f32 %v2302, %v2292
    %v2311 = vmul.f32 %v2301, %v2293
    %v2312 = vmul.f32 %v2302, %v2294
    %v2313 = vmul.f32 %v2301, %v2295
    %v2314 = vmul.f32 %v2302, %v2296
    %v2315 = vmul.f32 %v2301, %v2297
    %v2316 = vmul.f32 %v2302, %v2298
    %v2317 = vmul.f32 %v2301, %v2299
    %v2318 = vmul.f32 %v2302, %v2300
    %s2319 = scalar_lea.vmem [#allocation9], 128
    %2320 = vst [vmem:[%s2319] sm:$0xff] %v2303
    %2321 = vst [vmem:[%s2319 + $0x8] sm:$0xff] %v2304
    %2322 = vst [vmem:[%s2319 + $0x10] sm:$0xff] %v2305
    %2323 = vst [vmem:[%s2319 + $0x18] sm:$0xff] %v2306
    %2324 = vst [vmem:[%s2319 + $0x20] sm:$0xff] %v2307
    %2325 = vst [vmem:[%s2319 + $0x28] sm:$0xff] %v2308
    %2326 = vst [vmem:[%s2319 + $0x30] sm:$0xff] %v2309
    %2327 = vst [vmem:[%s2319 + $0x38] sm:$0xff] %v2310
    %2328 = vst [vmem:[%s2319 + $0x40] sm:$0xff] %v2311
    %2329 = vst [vmem:[%s2319 + $0x48] sm:$0xff] %v2312
    %2330 = vst [vmem:[%s2319 + $0x50] sm:$0xff] %v2313
    %2331 = vst [vmem:[%s2319 + $0x58] sm:$0xff] %v2314
    %2332 = vst [vmem:[%s2319 + $0x60] sm:$0xff] %v2315
    %2333 = vst [vmem:[%s2319 + $0x68] sm:$0xff] %v2316
    %2334 = vst [vmem:[%s2319 + $0x70] sm:$0xff] %v2317
    %2335 = vst [vmem:[%s2319 + $0x78] sm:$0xff] %v2318
    // Predicated region
    $region34: #{tpu_custom_call.1} parent=1 // pred_check
      _
    $region35: #{tpu_custom_call.1} parent=1 // pred_check_branch
      %2337 = sbr.rel (0) target = $region37
    $region36: #{tpu_custom_call.1} parent=1 // pred_region
      %2339 = vsyncadd [#allocation4], 0
      %s2340 = sshll.u32 [#allocation9], 4
      %s2341 = int_to_ptr.vmem [resolvable:$true] %s2340
      %s2342 = sshll.u32 %s5, 4
      %s2343 = int_to_ptr.hbm [resolvable:$true] %s2342
      %2348 = dma.vmem_to_hbm [thread:$0]  %s2341, 4096, %s2343, [#allocation4], 256, 256, 16
    $region37: #{tpu_custom_call.1} parent=1 // pred_fallthru
      _
    // Predicated region
    $region38: #{tpu_custom_call.1} parent=1 // pred_check
      _
    $region39: #{tpu_custom_call.1} parent=1 // pred_check_branch
      %2350 = sbr.rel (0) target = $region41
    $region40: #{tpu_custom_call.1} parent=1 // pred_region
      %2352 = dma.done [#allocation4], 4096
    $region41: #{tpu_custom_call.1} parent=1 // pred_fallthru
      _
    %2353 = vsyncpa [#allocation3], 1
    %2354 = vsyncpa [#allocation8], 1
    %2355 = vsyncpa [#allocation4], 1
    %2356 = vsyncpa [#allocation5], 1

</llo_original>
